<compile_context>
chip_gen: v6e
topology: v6e:2x2x1
jax: 0.10.0
libtpu: 0.0.40
codegen_flags: <defaults>
</compile_context>

<pallas_src>
import jax
import jax.numpy as jnp
import numpy as np
from jax.experimental import pallas as pl
from jax.experimental.pallas import tpu as pltpu


# Fixed by the module definition.
CIN, C1, C2 = 512, 256, 64
H = W = 7
HW = H * W                      # 49
HWP = ((HW + 7) // 8) * 8       # 56  (sublane-aligned per-batch spatial pad)


# --------------------------------------------------------------------------
# Kernels
# --------------------------------------------------------------------------
def _fused_conv_bn_relu_kernel(x_ref, w1_ref, t1_ref, w2_ref, t2_ref, o_ref):
    # x: (M, 512) bf16, w1: (512, 256) bf16, t1: (1, 256) f32,
    # w2: (256, 64) bf16, t2: (1, 64) f32, o: (M, 64) bf16
    h1 = jnp.dot(x_ref[...], w1_ref[...], preferred_element_type=jnp.float32)
    h1 = jnp.maximum(h1 + t1_ref[...], 0.0)                       # BN1+ReLU (f32)
    h2 = jnp.dot(h1.astype(jnp.bfloat16), w2_ref[...],
                 preferred_element_type=jnp.float32)
    h2 = jnp.maximum(h2 + t2_ref[...], 0.0)                       # BN2+ReLU (f32)
    o_ref[...] = h2.astype(o_ref.dtype)


def _fc_kernel(x_ref, w_ref, b_ref, o_ref):
    # x: (B, HWP*64) bf16, w: (HWP*64, D) bf16, b: (1, D) f32, o: (B, D) f32
    y = jnp.dot(x_ref[...], w_ref[...], preferred_element_type=jnp.float32)
    o_ref[...] = (y + b_ref[...]).astype(o_ref.dtype)


# --------------------------------------------------------------------------
# Pallas wrappers (everything fits in VMEM at these sizes -> single block)
# --------------------------------------------------------------------------
def fused_convs(x2d, w1, t1, w2, t2):
    M = x2d.shape[0]
    return pl.pallas_call(
        _fused_conv_bn_relu_kernel,
        out_shape=jax.ShapeDtypeStruct((M, C2), jnp.bfloat16),
        grid=(1,),
        in_specs=[
            pl.BlockSpec((M, CIN), lambda i: (0, 0)),
            pl.BlockSpec((CIN, C1), lambda i: (0, 0)),
            pl.BlockSpec((1, C1), lambda i: (0, 0)),
            pl.BlockSpec((C1, C2), lambda i: (0, 0)),
            pl.BlockSpec((1, C2), lambda i: (0, 0)),
        ],
        out_specs=pl.BlockSpec((M, C2), lambda i: (0, 0)),
        compiler_params=pltpu.CompilerParams(
            dimension_semantics=("arbitrary",)),
    )(x2d, w1, t1, w2, t2)


def fc(x2d, w, b):
    B, F = x2d.shape
    D = w.shape[1]
    return pl.pallas_call(
        _fc_kernel,
        out_shape=jax.ShapeDtypeStruct((B, D), jnp.float32),
        grid=(1,),
        in_specs=[
            pl.BlockSpec((B, F), lambda i: (0, 0)),
            pl.BlockSpec((F, D), lambda i: (0, 0)),
            pl.BlockSpec((1, D), lambda i: (0, 0)),
        ],
        out_specs=pl.BlockSpec((B, D), lambda i: (0, 0)),
        compiler_params=pltpu.CompilerParams(
            dimension_semantics=("arbitrary",)),
    )(x2d, w, b)


# --------------------------------------------------------------------------
# One-time parameter preparation (BN fold, bf16 cast, FC weight permutation)
# --------------------------------------------------------------------------
def prepare_params(p, eps=1e-5):
    D = p["w_fc"].shape[1]
    # Fold BN1/BN2 (eval mode) into conv weights and per-channel shifts.
    s1 = p["g1"] / jnp.sqrt(p["v1"] + eps)
    t1 = p["be1"] + s1 * (p["b1"] - p["m1"])
    w1 = (p["w1"] * s1[None, :]).astype(jnp.bfloat16)
    s2 = p["g2"] / jnp.sqrt(p["v2"] + eps)
    t2 = p["be2"] + s2 * (p["b2"] - p["m2"])
    w2 = (p["w2"] * s2[None, :]).astype(jnp.bfloat16)
    # FC weight: stored with PyTorch channel-major flatten rows (c*HW + p).
    # Permute to (p*C2 + c) row order and zero-pad the spatial positions
    # 49..55 so it consumes the channels-last, spatially-padded activation.
    wfc = p["w_fc"].reshape(C2, HW, D)                 # [c, p, d]
    wfc = jnp.transpose(wfc, (1, 0, 2))                # [p, c, d]
    wfc = jnp.pad(wfc, ((0, HWP - HW), (0, 0), (0, 0)))
    wfc = wfc.reshape(HWP * C2, D).astype(jnp.bfloat16)
    return {
        "w1": w1, "t1": t1[None, :].astype(jnp.float32),
        "w2": w2, "t2": t2[None, :].astype(jnp.float32),
        "w_fc": wfc, "b_fc": p["b_fc"][None, :].astype(jnp.float32),
    }


# --------------------------------------------------------------------------
# Module forward (jitted: glue ops + both pallas calls in one executable)
# --------------------------------------------------------------------------
@jax.jit
def resnet_visual_encoder(x, prep):
    """x: NCHW float32 (B, 512, 7, 7) -> (B, dframe)."""
    B = x.shape[0]
    # NCHW -> channels-last (B, HW, C), pad spatial 49 -> 56 per batch elem.
    xc = jnp.transpose(x, (0, 2, 3, 1)).reshape(B, HW, CIN)
    xc = jnp.pad(xc, ((0, 0), (0, HWP - HW), (0, 0)))
    x2d = xc.astype(jnp.bfloat16).reshape(B * HWP, CIN)

    h2 = fused_convs(x2d, prep["w1"], prep["t1"], prep["w2"], prep["t2"])
    # Free row-major view: (B*HWP, 64) -> (B, HWP*64); no transpose needed
    # because the FC weight rows were permuted/padded offline.
    h2r = h2.reshape(B, HWP * C2)
    return fc(h2r, prep["w_fc"], prep["b_fc"])


# --------------------------------------------------------------------------
# References
# --------------------------------------------------------------------------
def reference_exact(x, prep):
    """Same math as the kernel path (bf16 weights/activations, f32 accum)."""
    B = x.shape[0]
    xc = jnp.transpose(x, (0, 2, 3, 1)).reshape(B, HW, CIN)
    xc = jnp.pad(xc, ((0, 0), (0, HWP - HW), (0, 0)))
    x2d = xc.astype(jnp.bfloat16).reshape(B * HWP, CIN)
    h1 = jnp.maximum(jnp.dot(x2d, prep["w1"],
                             preferred_element_type=jnp.float32) + prep["t1"], 0.0)
    h2 = jnp.maximum(jnp.dot(h1.astype(jnp.bfloat16), prep["w2"],
                             preferred_element_type=jnp.float32) + prep["t2"], 0.0)
    h2r = h2.astype(jnp.bfloat16).reshape(B, HWP * C2)
    return jnp.dot(h2r, prep["w_fc"],
                   preferred_element_type=jnp.float32) + prep["b_fc"]


def reference_fp32(x, p, eps=1e-5):
    """PyTorch-faithful f32 reference (conv -> BN(eval) -> ReLU, x2, fc)."""
    B = x.shape[0]
    x2d = jnp.transpose(x, (0, 2, 3, 1)).reshape(B * HW, CIN)
    s1 = p["g1"] / jnp.sqrt(p["v1"] + eps)
    t1 = p["be1"] + s1 * (p["b1"] - p["m1"])
    s2 = p["g2"] / jnp.sqrt(p["v2"] + eps)
    t2 = p["be2"] + s2 * (p["b2"] - p["m2"])
    h1 = jnp.maximum(x2d @ (p["w1"] * s1[None, :]) + t1[None, :], 0.0)
    h2 = jnp.maximum(h1 @ (p["w2"] * s2[None, :]) + t2[None, :], 0.0)
    # PyTorch x.view(-1, 64*7*7): NCHW flatten -> channel-major order.
    h2 = h2.reshape(B, HW, C2).transpose(0, 2, 1).reshape(B, C2 * HW)
    return h2 @ p["w_fc"] + p["b_fc"][None, :]


# --------------------------------------------------------------------------
if __name__ == "__main__":
    B, dframe = 2, 128

    key = jax.random.PRNGKey(0)
    ks = jax.random.split(key, 16)

    params = {
        # conv1: 512 -> 256, 1x1 (stored as (Cin, Cout) matmul weight)
        "w1": 0.02 * jax.random.normal(ks[0], (CIN, C1), jnp.float32),
        "b1": 0.01 * jax.random.normal(ks[1], (C1,), jnp.float32),
        "g1": 1.0 + 0.1 * jax.random.normal(ks[2], (C1,), jnp.float32),
        "be1": 0.1 * jax.random.normal(ks[3], (C1,), jnp.float32),
        "m1": 0.05 * jax.random.normal(ks[4], (C1,), jnp.float32),
        "v1": 1.0 + 0.1 * jax.nn.softplus(jax.random.normal(ks[5], (C1,), jnp.float32)),
        # conv2: 256 -> 64, 1x1
        "w2": 0.02 * jax.random.normal(ks[6], (C1, C2), jnp.float32),
        "b2": 0.01 * jax.random.normal(ks[7], (C2,), jnp.float32),
        "g2": 1.0 + 0.1 * jax.random.normal(ks[8], (C2,), jnp.float32),
        "be2": 0.1 * jax.random.normal(ks[9], (C2,), jnp.float32),
        "m2": 0.05 * jax.random.normal(ks[10], (C2,), jnp.float32),
        "v2": 1.0 + 0.1 * jax.nn.softplus(jax.random.normal(ks[11], (C2,), jnp.float32)),
        # fc: 64*7*7 -> dframe, stored (F, dframe) with PyTorch channel-major
        # row order (row = c*49 + p); prepare_params() permutes it.
        "w_fc": 0.02 * jax.random.normal(ks[12], (C2 * HW, dframe), jnp.float32),
        "b_fc": 0.01 * jax.random.normal(ks[13], (dframe,), jnp.float32),
    }
    x = jax.random.normal(ks[14], (B, CIN, H, W), jnp.float32)

    prep = prepare_params(params)           # one-time: BN fold, perm, bf16

    out = jax.block_until_ready(resnet_visual_encoder(x, prep))
    assert out.shape == (B, dframe), out.shape

    # Exact-math check (same bf16 weights / casts, f32 accumulation).
    ref_x = np.asarray(jax.block_until_ready(reference_exact(x, prep)))
    np.testing.assert_allclose(np.asarray(out), ref_x, rtol=2e-5, atol=2e-5)

    # Fidelity vs the f32 PyTorch-equivalent forward (bf16 weight quantization).
    ref_f = np.asarray(jax.block_until_ready(reference_fp32(x, params)))
    np.testing.assert_allclose(np.asarray(out), ref_f, rtol=5e-2, atol=3e-2)

    print("KERNEL_OK")
</pallas_src>

<mosaic_0001>
module attributes {stable_mosaic.version = 11 : i64} {
  func.func @_fused_conv_bn_relu_kernel(%arg0: i32, %arg1: memref<112x512xbf16, #tpu.memory_space<vmem>>, %arg2: memref<512x256xbf16, #tpu.memory_space<vmem>>, %arg3: memref<1x256xf32, #tpu.memory_space<vmem>>, %arg4: memref<256x64xbf16, #tpu.memory_space<vmem>>, %arg5: memref<1x64xf32, #tpu.memory_space<vmem>>, %arg6: memref<112x64xbf16, #tpu.memory_space<vmem>>) attributes {dimension_semantics = [#tpu.dimension_semantics<arbitrary>], iteration_bounds = array<i64: 1>, scalar_prefetch = 0 : i64, scratch_operands = 0 : i64, tpu.core_type = #tpu.core_type<tc>, window_params = [{pipeline_mode = #tpu.pipeline_mode<synchronous>, transform_indices = @transform_0, window_bounds = array<i64: 112, 512>}, {pipeline_mode = #tpu.pipeline_mode<synchronous>, transform_indices = @transform_1, window_bounds = array<i64: 512, 256>}, {pipeline_mode = #tpu.pipeline_mode<synchronous>, transform_indices = @transform_2, window_bounds = array<i64: 1, 256>}, {pipeline_mode = #tpu.pipeline_mode<synchronous>, transform_indices = @transform_3, window_bounds = array<i64: 256, 64>}, {pipeline_mode = #tpu.pipeline_mode<synchronous>, transform_indices = @transform_4, window_bounds = array<i64: 1, 64>}, {pipeline_mode = #tpu.pipeline_mode<synchronous>, transform_indices = @transform_5, window_bounds = array<i64: 112, 64>}]} {
    %c0 = arith.constant 0 : index
    %c0_0 = arith.constant 0 : index
    %0 = vector.load %arg1[%c0, %c0_0] : memref<112x512xbf16, #tpu.memory_space<vmem>>, vector<112x512xbf16>
    %c0_1 = arith.constant 0 : index
    %c0_2 = arith.constant 0 : index
    %1 = vector.load %arg2[%c0_1, %c0_2] : memref<512x256xbf16, #tpu.memory_space<vmem>>, vector<512x256xbf16>
    %cst = arith.constant dense<0.000000e+00> : vector<112x256xf32>
    %2 = tpu.matmul %0, %1, %cst {dimension_numbers = #tpu.dot_dimension_numbers<[1], [0], [0], [1], [0, 0, 1, 1], [], []>} : vector<112x512xbf16>, vector<512x256xbf16>, vector<112x256xf32> -> vector<112x256xf32>
    %c0_3 = arith.constant 0 : index
    %c0_4 = arith.constant 0 : index
    %3 = vector.load %arg3[%c0_3, %c0_4] : memref<1x256xf32, #tpu.memory_space<vmem>>, vector<1x256xf32>
    %4 = vector.broadcast %3 : vector<1x256xf32> to vector<112x256xf32>
    %5 = arith.addf %2, %4 : vector<112x256xf32>
    %cst_5 = arith.constant 0.000000e+00 : f32
    %6 = vector.broadcast %cst_5 : f32 to vector<112x256xf32>
    %7 = arith.maximumf %5, %6 : vector<112x256xf32>
    %8 = arith.truncf %7 : vector<112x256xf32> to vector<112x256xbf16>
    %c0_6 = arith.constant 0 : index
    %c0_7 = arith.constant 0 : index
    %9 = vector.load %arg4[%c0_6, %c0_7] : memref<256x64xbf16, #tpu.memory_space<vmem>>, vector<256x64xbf16>
    %cst_8 = arith.constant dense<0.000000e+00> : vector<112x64xf32>
    %10 = tpu.matmul %8, %9, %cst_8 {dimension_numbers = #tpu.dot_dimension_numbers<[1], [0], [0], [1], [0, 0, 1, 1], [], []>} : vector<112x256xbf16>, vector<256x64xbf16>, vector<112x64xf32> -> vector<112x64xf32>
    %c0_9 = arith.constant 0 : index
    %c0_10 = arith.constant 0 : index
    %11 = vector.load %arg5[%c0_9, %c0_10] : memref<1x64xf32, #tpu.memory_space<vmem>>, vector<1x64xf32>
    %12 = vector.broadcast %11 : vector<1x64xf32> to vector<112x64xf32>
    %13 = arith.addf %10, %12 : vector<112x64xf32>
    %cst_11 = arith.constant 0.000000e+00 : f32
    %14 = vector.broadcast %cst_11 : f32 to vector<112x64xf32>
    %15 = arith.maximumf %13, %14 : vector<112x64xf32>
    %16 = arith.truncf %15 : vector<112x64xf32> to vector<112x64xbf16>
    %c0_12 = arith.constant 0 : index
    %c0_13 = arith.constant 0 : index
    %17 = vector.load %arg6[%c0_12, %c0_13] : memref<112x64xbf16, #tpu.memory_space<vmem>>, vector<112x64xbf16>
    tpu.vector_store %arg6[%c0_12, %c0_13], %16 {strides = array<i32>} : memref<112x64xbf16, #tpu.memory_space<vmem>>, vector<112x64xbf16>,
    return
  }
  func.func @transform_0(%arg0: i32) -> (i32, i32) {
    %c0_i32 = arith.constant 0 : i32
    %c0_i32_0 = arith.constant 0 : i32
    %c0_i32_1 = arith.constant 0 : i32
    return %c0_i32, %c0_i32_0 : i32, i32
  }
  func.func @transform_1(%arg0: i32) -> (i32, i32) {
    %c0_i32 = arith.constant 0 : i32
    %c0_i32_0 = arith.constant 0 : i32
    %c0_i32_1 = arith.constant 0 : i32
    return %c0_i32, %c0_i32_0 : i32, i32
  }
  func.func @transform_2(%arg0: i32) -> (i32, i32) {
    %c0_i32 = arith.constant 0 : i32
    %c0_i32_0 = arith.constant 0 : i32
    %c0_i32_1 = arith.constant 0 : i32
    return %c0_i32, %c0_i32_0 : i32, i32
  }
  func.func @transform_3(%arg0: i32) -> (i32, i32) {
    %c0_i32 = arith.constant 0 : i32
    %c0_i32_0 = arith.constant 0 : i32
    %c0_i32_1 = arith.constant 0 : i32
    return %c0_i32, %c0_i32_0 : i32, i32
  }
  func.func @transform_4(%arg0: i32) -> (i32, i32) {
    %c0_i32 = arith.constant 0 : i32
    %c0_i32_0 = arith.constant 0 : i32
    %c0_i32_1 = arith.constant 0 : i32
    return %c0_i32, %c0_i32_0 : i32, i32
  }
  func.func @transform_5(%arg0: i32) -> (i32, i32) {
    %c0_i32 = arith.constant 0 : i32
    %c0_i32_0 = arith.constant 0 : i32
    %c0_i32_1 = arith.constant 0 : i32
    return %c0_i32, %c0_i32_0 : i32, i32
  }
}

module attributes {stable_mosaic.version = 11 : i64} {
  func.func @_fc_kernel(%arg0: i32, %arg1: memref<2x3584xbf16, #tpu.memory_space<vmem>>, %arg2: memref<3584x128xbf16, #tpu.memory_space<vmem>>, %arg3: memref<1x128xf32, #tpu.memory_space<vmem>>, %arg4: memref<2x128xf32, #tpu.memory_space<vmem>>) attributes {dimension_semantics = [#tpu.dimension_semantics<arbitrary>], iteration_bounds = array<i64: 1>, scalar_prefetch = 0 : i64, scratch_operands = 0 : i64, tpu.core_type = #tpu.core_type<tc>, window_params = [{pipeline_mode = #tpu.pipeline_mode<synchronous>, transform_indices = @transform_0, window_bounds = array<i64: 2, 3584>}, {pipeline_mode = #tpu.pipeline_mode<synchronous>, transform_indices = @transform_1, window_bounds = array<i64: 3584, 128>}, {pipeline_mode = #tpu.pipeline_mode<synchronous>, transform_indices = @transform_2, window_bounds = array<i64: 1, 128>}, {pipeline_mode = #tpu.pipeline_mode<synchronous>, transform_indices = @transform_3, window_bounds = array<i64: 2, 128>}]} {
    %c0 = arith.constant 0 : index
    %c0_0 = arith.constant 0 : index
    %0 = vector.load %arg1[%c0, %c0_0] : memref<2x3584xbf16, #tpu.memory_space<vmem>>, vector<2x3584xbf16>
    %c0_1 = arith.constant 0 : index
    %c0_2 = arith.constant 0 : index
    %1 = vector.load %arg2[%c0_1, %c0_2] : memref<3584x128xbf16, #tpu.memory_space<vmem>>, vector<3584x128xbf16>
    %cst = arith.constant dense<0.000000e+00> : vector<2x128xf32>
    %2 = tpu.matmul %0, %1, %cst {dimension_numbers = #tpu.dot_dimension_numbers<[1], [0], [0], [1], [0, 0, 1, 1], [], []>} : vector<2x3584xbf16>, vector<3584x128xbf16>, vector<2x128xf32> -> vector<2x128xf32>
    %c0_3 = arith.constant 0 : index
    %c0_4 = arith.constant 0 : index
    %3 = vector.load %arg3[%c0_3, %c0_4] : memref<1x128xf32, #tpu.memory_space<vmem>>, vector<1x128xf32>
    %4 = vector.broadcast %3 : vector<1x128xf32> to vector<2x128xf32>
    %5 = arith.addf %2, %4 : vector<2x128xf32>
    %c0_5 = arith.constant 0 : index
    %c0_6 = arith.constant 0 : index
    %6 = vector.load %arg4[%c0_5, %c0_6] : memref<2x128xf32, #tpu.memory_space<vmem>>, vector<2x128xf32>
    tpu.vector_store %arg4[%c0_5, %c0_6], %5 {strides = array<i32>} : memref<2x128xf32, #tpu.memory_space<vmem>>, vector<2x128xf32>,
    return
  }
  func.func @transform_0(%arg0: i32) -> (i32, i32) {
    %c0_i32 = arith.constant 0 : i32
    %c0_i32_0 = arith.constant 0 : i32
    %c0_i32_1 = arith.constant 0 : i32
    return %c0_i32, %c0_i32_0 : i32, i32
  }
  func.func @transform_1(%arg0: i32) -> (i32, i32) {
    %c0_i32 = arith.constant 0 : i32
    %c0_i32_0 = arith.constant 0 : i32
    %c0_i32_1 = arith.constant 0 : i32
    return %c0_i32, %c0_i32_0 : i32, i32
  }
  func.func @transform_2(%arg0: i32) -> (i32, i32) {
    %c0_i32 = arith.constant 0 : i32
    %c0_i32_0 = arith.constant 0 : i32
    %c0_i32_1 = arith.constant 0 : i32
    return %c0_i32, %c0_i32_0 : i32, i32
  }
  func.func @transform_3(%arg0: i32) -> (i32, i32) {
    %c0_i32 = arith.constant 0 : i32
    %c0_i32_0 = arith.constant 0 : i32
    %c0_i32_1 = arith.constant 0 : i32
    return %c0_i32, %c0_i32_0 : i32, i32
  }
}

</mosaic_0001>

<llo_original>
// kernel: resnet_visual_encoder.2
$region0: #{resnet_visual_encoder.2}
  #allocation0 [shape = 'u32[]', space=smem, size = 0x4, offset = 0x4, fixed_abs, tag = 'smem constant byte address 0x4 - core index']
  #allocation1 [shape = 'u32[144,128]{1,0:T(1,128)}', space=vmem, size = 0x12000, scoped, tag = 'internal scratch']
  %s0 = inlined_call_operand.vmem [shape: bf16[112,512], index: 0, kind: input, shape index: {}]
  %s1 = inlined_call_operand.vmem [shape: bf16[512,256], index: 1, kind: input, shape index: {}]
  %s2 = inlined_call_operand.hbm [shape: f32[1,256], index: 2, kind: input, shape index: {}]
  %s3 = inlined_call_operand.vmem [shape: bf16[256,64], index: 3, kind: input, shape index: {}]
  %s4 = inlined_call_operand.hbm [shape: f32[1,64], index: 4, kind: input, shape index: {}]
  %s5 = inlined_call_operand.vmem [shape: bf16[112,64], index: 5, kind: output, shape index: {}]
  %s6 = sld [smem:[#allocation0]]
  $region38: #{resnet_visual_encoder.2} parent=0
    _
  %s8 = ssub.s32 1, %s6
  %s9 = scalar_select 0, %s8, %s6
  $region1: #{resnet_visual_encoder.2} parent=0
    #allocation2 [shape = 'u8[1024]{0}', space=vmem, size = 0x400, scoped, tag = 'input window, operand 2, single buffered']
    #allocation3 [shape = 's32[1]{0}', space=sflag, size = 0x4, scoped, tag = 'scoped memory for resnet_visual_encoder.2']
    #allocation4 [shape = 'u8[512]{0}', space=vmem, size = 0x400, scoped, tag = 'input window, operand 4, single buffered']
    #allocation5 [shape = 's32[1]{0}', space=sflag, size = 0x4, scoped, tag = 'scoped memory for resnet_visual_encoder.2']
    %10 = vsyncpa [#allocation3], 0
    %11 = vsyncpa [#allocation5], 0
    // Predicated region
    $region2: #{resnet_visual_encoder.2} parent=1 // pred_check
      _
    $region3: #{resnet_visual_encoder.2} parent=1 // pred_check_branch
      %13 = sbr.rel (0) target = $region5
    $region4: #{resnet_visual_encoder.2} parent=1 // pred_region
      _
    $region5: #{resnet_visual_encoder.2} parent=1 // pred_fallthru
      _
    // Predicated region
    $region6: #{resnet_visual_encoder.2} parent=1 // pred_check
      _
    $region7: #{resnet_visual_encoder.2} parent=1 // pred_check_branch
      %15 = sbr.rel (0) target = $region9
    $region8: #{resnet_visual_encoder.2} parent=1 // pred_region
      _
    $region9: #{resnet_visual_encoder.2} parent=1 // pred_fallthru
      _
    // Predicated region
    $region10: #{resnet_visual_encoder.2} parent=1 // pred_check
      _
    $region11: #{resnet_visual_encoder.2} parent=1 // pred_check_branch
      %17 = sbr.rel (0) target = $region13
    $region12: #{resnet_visual_encoder.2} parent=1 // pred_region
      %s19 = ssub.s32 32, 32
      %20 = vsyncadd [#allocation3], %s19
      %s22 = sshll.u32 [#allocation2], 4
      %s23 = int_to_ptr.vmem [resolvable:$true] %s22
      %25 = dma.hbm_to_vmem [thread:$0]  %s2, 32, %s23, [#allocation3]
    $region13: #{resnet_visual_encoder.2} parent=1 // pred_fallthru
      _
    // Predicated region
    $region14: #{resnet_visual_encoder.2} parent=1 // pred_check
      _
    $region15: #{resnet_visual_encoder.2} parent=1 // pred_check_branch
      %27 = sbr.rel (0) target = $region17
    $region16: #{resnet_visual_encoder.2} parent=1 // pred_region
      _
    $region17: #{resnet_visual_encoder.2} parent=1 // pred_fallthru
      _
    // Predicated region
    $region18: #{resnet_visual_encoder.2} parent=1 // pred_check
      _
    $region19: #{resnet_visual_encoder.2} parent=1 // pred_check_branch
      %29 = sbr.rel (0) target = $region21
    $region20: #{resnet_visual_encoder.2} parent=1 // pred_region
      %s31 = ssub.s32 16, 16
      %32 = vsyncadd [#allocation5], %s31
      %s34 = sshll.u32 [#allocation4], 4
      %s35 = int_to_ptr.vmem [resolvable:$true] %s34
      %37 = dma.hbm_to_vmem [thread:$0]  %s4, 16, %s35, [#allocation5]
    $region21: #{resnet_visual_encoder.2} parent=1 // pred_fallthru
      _
    // Predicated region
    $region22: #{resnet_visual_encoder.2} parent=1 // pred_check
      _
    $region23: #{resnet_visual_encoder.2} parent=1 // pred_check_branch
      %39 = sbr.rel (0) target = $region25
    $region24: #{resnet_visual_encoder.2} parent=1 // pred_region
      %40 = dma.done [#allocation3], 32
    $region25: #{resnet_visual_encoder.2} parent=1 // pred_fallthru
      _
    // Predicated region
    $region26: #{resnet_visual_encoder.2} parent=1 // pred_check
      _
    $region27: #{resnet_visual_encoder.2} parent=1 // pred_check_branch
      %42 = sbr.rel (0) target = $region29
    $region28: #{resnet_visual_encoder.2} parent=1 // pred_region
      %43 = dma.done [#allocation5], 16
    $region29: #{resnet_visual_encoder.2} parent=1 // pred_fallthru
      _
    %v45 = vld [vmem:[%s0] sm:$0xff]
    %v46 = vld [vmem:[%s0 + $0x8] sm:$0xff]
    %v47 = vld [vmem:[%s0 + $0x10] sm:$0xff]
    %v48 = vld [vmem:[%s0 + $0x18] sm:$0xff]
    %v49 = vld [vmem:[%s0 + $0x20] sm:$0xff]
    %v50 = vld [vmem:[%s0 + $0x28] sm:$0xff]
    %v51 = vld [vmem:[%s0 + $0x30] sm:$0xff]
    %v52 = vld [vmem:[%s0 + $0x38] sm:$0xff]
    %v53 = vld [vmem:[%s0 + $0x40] sm:$0xff]
    %v54 = vld [vmem:[%s0 + $0x48] sm:$0xff]
    %v55 = vld [vmem:[%s0 + $0x50] sm:$0xff]
    %v56 = vld [vmem:[%s0 + $0x58] sm:$0xff]
    %v57 = vld [vmem:[%s0 + $0x60] sm:$0xff]
    %v58 = vld [vmem:[%s0 + $0x68] sm:$0xff]
    %v59 = vld [vmem:[%s0 + $0x70] sm:$0xff]
    %v60 = vld [vmem:[%s0 + $0x78] sm:$0xff]
    %v61 = vld [vmem:[%s0 + $0x80] sm:$0xff]
    %v62 = vld [vmem:[%s0 + $0x88] sm:$0xff]
    %v63 = vld [vmem:[%s0 + $0x90] sm:$0xff]
    %v64 = vld [vmem:[%s0 + $0x98] sm:$0xff]
    %v65 = vld [vmem:[%s0 + $0xa0] sm:$0xff]
    %v66 = vld [vmem:[%s0 + $0xa8] sm:$0xff]
    %v67 = vld [vmem:[%s0 + $0xb0] sm:$0xff]
    %v68 = vld [vmem:[%s0 + $0xb8] sm:$0xff]
    %v69 = vld [vmem:[%s0 + $0xc0] sm:$0xff]
    %v70 = vld [vmem:[%s0 + $0xc8] sm:$0xff]
    %v71 = vld [vmem:[%s0 + $0xd0] sm:$0xff]
    %v72 = vld [vmem:[%s0 + $0xd8] sm:$0xff]
    %v73 = vld [vmem:[%s1] sm:$0xff]
    %v74 = vld [vmem:[%s1 + $0x8] sm:$0xff]
    %v75 = vld [vmem:[%s1 + $0x10] sm:$0xff]
    %v76 = vld [vmem:[%s1 + $0x18] sm:$0xff]
    %v77 = vld [vmem:[%s1 + $0x20] sm:$0xff]
    %v78 = vld [vmem:[%s1 + $0x28] sm:$0xff]
    %v79 = vld [vmem:[%s1 + $0x30] sm:$0xff]
    %v80 = vld [vmem:[%s1 + $0x38] sm:$0xff]
    %v81 = vld [vmem:[%s1 + $0x40] sm:$0xff]
    %v82 = vld [vmem:[%s1 + $0x48] sm:$0xff]
    %v83 = vld [vmem:[%s1 + $0x50] sm:$0xff]
    %v84 = vld [vmem:[%s1 + $0x58] sm:$0xff]
    %v85 = vld [vmem:[%s1 + $0x60] sm:$0xff]
    %v86 = vld [vmem:[%s1 + $0x68] sm:$0xff]
    %v87 = vld [vmem:[%s1 + $0x70] sm:$0xff]
    %v88 = vld [vmem:[%s1 + $0x78] sm:$0xff]
    %v89 = vld [vmem:[%s1 + $0x80] sm:$0xff]
    %v90 = vld [vmem:[%s1 + $0x88] sm:$0xff]
    %v91 = vld [vmem:[%s1 + $0x90] sm:$0xff]
    %v92 = vld [vmem:[%s1 + $0x98] sm:$0xff]
    %v93 = vld [vmem:[%s1 + $0xa0] sm:$0xff]
    %v94 = vld [vmem:[%s1 + $0xa8] sm:$0xff]
    %v95 = vld [vmem:[%s1 + $0xb0] sm:$0xff]
    %v96 = vld [vmem:[%s1 + $0xb8] sm:$0xff]
    %v97 = vld [vmem:[%s1 + $0xc0] sm:$0xff]
    %v98 = vld [vmem:[%s1 + $0xc8] sm:$0xff]
    %v99 = vld [vmem:[%s1 + $0xd0] sm:$0xff]
    %v100 = vld [vmem:[%s1 + $0xd8] sm:$0xff]
    %v101 = vld [vmem:[%s1 + $0xe0] sm:$0xff]
    %v102 = vld [vmem:[%s1 + $0xe8] sm:$0xff]
    %v103 = vld [vmem:[%s1 + $0xf0] sm:$0xff]
    %v104 = vld [vmem:[%s1 + $0xf8] sm:$0xff]
    %v105 = vld [vmem:[%s1 + $0x100] sm:$0xff]
    %v106 = vld [vmem:[%s1 + $0x108] sm:$0xff]
    %v107 = vld [vmem:[%s1 + $0x110] sm:$0xff]
    %v108 = vld [vmem:[%s1 + $0x118] sm:$0xff]
    %v109 = vld [vmem:[%s1 + $0x120] sm:$0xff]
    %v110 = vld [vmem:[%s1 + $0x128] sm:$0xff]
    %v111 = vld [vmem:[%s1 + $0x130] sm:$0xff]
    %v112 = vld [vmem:[%s1 + $0x138] sm:$0xff]
    %v113 = vld [vmem:[%s1 + $0x140] sm:$0xff]
    %v114 = vld [vmem:[%s1 + $0x148] sm:$0xff]
    %v115 = vld [vmem:[%s1 + $0x150] sm:$0xff]
    %v116 = vld [vmem:[%s1 + $0x158] sm:$0xff]
    %v117 = vld [vmem:[%s1 + $0x160] sm:$0xff]
    %v118 = vld [vmem:[%s1 + $0x168] sm:$0xff]
    %v119 = vld [vmem:[%s1 + $0x170] sm:$0xff]
    %v120 = vld [vmem:[%s1 + $0x178] sm:$0xff]
    %v121 = vld [vmem:[%s1 + $0x180] sm:$0xff]
    %v122 = vld [vmem:[%s1 + $0x188] sm:$0xff]
    %v123 = vld [vmem:[%s1 + $0x190] sm:$0xff]
    %v124 = vld [vmem:[%s1 + $0x198] sm:$0xff]
    %v125 = vld [vmem:[%s1 + $0x1a0] sm:$0xff]
    %v126 = vld [vmem:[%s1 + $0x1a8] sm:$0xff]
    %v127 = vld [vmem:[%s1 + $0x1b0] sm:$0xff]
    %v128 = vld [vmem:[%s1 + $0x1b8] sm:$0xff]
    %v129 = vld [vmem:[%s1 + $0x1c0] sm:$0xff]
    %v130 = vld [vmem:[%s1 + $0x1c8] sm:$0xff]
    %v131 = vld [vmem:[%s1 + $0x1d0] sm:$0xff]
    %v132 = vld [vmem:[%s1 + $0x1d8] sm:$0xff]
    %v133 = vld [vmem:[%s1 + $0x1e0] sm:$0xff]
    %v134 = vld [vmem:[%s1 + $0x1e8] sm:$0xff]
    %v135 = vld [vmem:[%s1 + $0x1f0] sm:$0xff]
    %v136 = vld [vmem:[%s1 + $0x1f8] sm:$0xff]
    %v137 = vld [vmem:[#allocation2] sm:$0x3]
    %v139 = vlaneseq
    %v140 = vshrl.u32 %v139, 7
    %v141 = vsub.s32 0, %v140
    %v142 = vrot.slane %v137, %v141
    %v143 = vlaneseq
    %v144 = vshrl.u32 %v143, 7
    %v145 = vsub.s32 1, %v144
    %v146 = vrot.slane %v137, %v145
    %v177 = vunpack.c.l.b16 %v45
    %v178 = vunpack.c.h.b16 %v45
    %v179 = vunpack.c.l.b16 %v46
    %v180 = vunpack.c.h.b16 %v46
    %v181 = vunpack.c.l.b16 %v47
    %v182 = vunpack.c.h.b16 %v47
    %v183 = vunpack.c.l.b16 %v48
    %v184 = vunpack.c.h.b16 %v48
    %v185 = vunpack.c.l.b16 %v49
    %v186 = vunpack.c.h.b16 %v49
    %v187 = vunpack.c.l.b16 %v50
    %v188 = vunpack.c.h.b16 %v50
    %v189 = vunpack.c.l.b16 %v51
    %v190 = vunpack.c.h.b16 %v51
    %v191 = vunpack.c.l.b16 %v52
    %v192 = vunpack.c.h.b16 %v52
    %v193 = vunpack.c.l.b16 %v53
    %v194 = vunpack.c.h.b16 %v53
    %v195 = vunpack.c.l.b16 %v54
    %v196 = vunpack.c.h.b16 %v54
    %v197 = vunpack.c.l.b16 %v55
    %v198 = vunpack.c.h.b16 %v55
    %v199 = vunpack.c.l.b16 %v56
    %v200 = vunpack.c.h.b16 %v56
    %v201 = vunpack.c.l.b16 %v57
    %v202 = vunpack.c.h.b16 %v57
    %v203 = vunpack.c.l.b16 %v58
    %v204 = vunpack.c.h.b16 %v58
    %v205 = vunpack.c.l.b16 %v59
    %v206 = vunpack.c.h.b16 %v59
    %v207 = vunpack.c.l.b16 %v60
    %v208 = vunpack.c.h.b16 %v60
    %v209 = vunpack.c.l.b16 %v61
    %v210 = vunpack.c.h.b16 %v61
    %v211 = vunpack.c.l.b16 %v62
    %v212 = vunpack.c.h.b16 %v62
    %v213 = vunpack.c.l.b16 %v63
    %v214 = vunpack.c.h.b16 %v63
    %v215 = vunpack.c.l.b16 %v64
    %v216 = vunpack.c.h.b16 %v64
    %v217 = vunpack.c.l.b16 %v65
    %v218 = vunpack.c.h.b16 %v65
    %v219 = vunpack.c.l.b16 %v66
    %v220 = vunpack.c.h.b16 %v66
    %v221 = vunpack.c.l.b16 %v67
    %v222 = vunpack.c.h.b16 %v67
    %v223 = vunpack.c.l.b16 %v68
    %v224 = vunpack.c.h.b16 %v68
    %v225 = vunpack.c.l.b16 %v69
    %v226 = vunpack.c.h.b16 %v69
    %v227 = vunpack.c.l.b16 %v70
    %v228 = vunpack.c.h.b16 %v70
    %v229 = vunpack.c.l.b16 %v71
    %v230 = vunpack.c.h.b16 %v71
    %v231 = vunpack.c.l.b16 %v72
    %v232 = vunpack.c.h.b16 %v72
    %v233 = vpack.c.b16 %v181, %v177
    %v234 = vpack.c.b16 %v182, %v178
    %v235 = vpack.c.b16 %v183, %v179
    %v236 = vpack.c.b16 %v184, %v180
    %v237 = vpack.c.b16 %v189, %v185
    %v238 = vpack.c.b16 %v190, %v186
    %v239 = vpack.c.b16 %v191, %v187
    %v240 = vpack.c.b16 %v192, %v188
    %v241 = vpack.c.b16 %v197, %v193
    %v242 = vpack.c.b16 %v198, %v194
    %v243 = vpack.c.b16 %v199, %v195
    %v244 = vpack.c.b16 %v200, %v196
    %v245 = vpack.c.b16 %v205, %v201
    %v246 = vpack.c.b16 %v206, %v202
    %v247 = vpack.c.b16 %v207, %v203
    %v248 = vpack.c.b16 %v208, %v204
    %v249 = vpack.c.b16 %v213, %v209
    %v250 = vpack.c.b16 %v214, %v210
    %v251 = vpack.c.b16 %v215, %v211
    %v252 = vpack.c.b16 %v216, %v212
    %v253 = vpack.c.b16 %v221, %v217
    %v254 = vpack.c.b16 %v222, %v218
    %v255 = vpack.c.b16 %v223, %v219
    %v256 = vpack.c.b16 %v224, %v220
    %v257 = vpack.c.b16 %v229, %v225
    %v258 = vpack.c.b16 %v230, %v226
    %v259 = vpack.c.b16 %v231, %v227
    %v260 = vpack.c.b16 %v232, %v228
    %v353 = vunpack.c.l.b16 %v73
    %v354 = vunpack.c.h.b16 %v73
    %v355 = vunpack.c.l.b16 %v74
    %v356 = vunpack.c.h.b16 %v74
    %v357 = vunpack.c.l.b16 %v75
    %v358 = vunpack.c.h.b16 %v75
    %v359 = vunpack.c.l.b16 %v76
    %v360 = vunpack.c.h.b16 %v76
    %v361 = vunpack.c.l.b16 %v77
    %v362 = vunpack.c.h.b16 %v77
    %v363 = vunpack.c.l.b16 %v78
    %v364 = vunpack.c.h.b16 %v78
    %v365 = vunpack.c.l.b16 %v79
    %v366 = vunpack.c.h.b16 %v79
    %v367 = vunpack.c.l.b16 %v80
    %v368 = vunpack.c.h.b16 %v80
    %v369 = vunpack.c.l.b16 %v81
    %v370 = vunpack.c.h.b16 %v81
    %v371 = vunpack.c.l.b16 %v82
    %v372 = vunpack.c.h.b16 %v82
    %v373 = vunpack.c.l.b16 %v83
    %v374 = vunpack.c.h.b16 %v83
    %v375 = vunpack.c.l.b16 %v84
    %v376 = vunpack.c.h.b16 %v84
    %v377 = vunpack.c.l.b16 %v85
    %v378 = vunpack.c.h.b16 %v85
    %v379 = vunpack.c.l.b16 %v86
    %v380 = vunpack.c.h.b16 %v86
    %v381 = vunpack.c.l.b16 %v87
    %v382 = vunpack.c.h.b16 %v87
    %v383 = vunpack.c.l.b16 %v88
    %v384 = vunpack.c.h.b16 %v88
    %v385 = vunpack.c.l.b16 %v89
    %v386 = vunpack.c.h.b16 %v89
    %v387 = vunpack.c.l.b16 %v90
    %v388 = vunpack.c.h.b16 %v90
    %v389 = vunpack.c.l.b16 %v91
    %v390 = vunpack.c.h.b16 %v91
    %v391 = vunpack.c.l.b16 %v92
    %v392 = vunpack.c.h.b16 %v92
    %v393 = vunpack.c.l.b16 %v93
    %v394 = vunpack.c.h.b16 %v93
    %v395 = vunpack.c.l.b16 %v94
    %v396 = vunpack.c.h.b16 %v94
    %v397 = vunpack.c.l.b16 %v95
    %v398 = vunpack.c.h.b16 %v95
    %v399 = vunpack.c.l.b16 %v96
    %v400 = vunpack.c.h.b16 %v96
    %v401 = vunpack.c.l.b16 %v97
    %v402 = vunpack.c.h.b16 %v97
    %v403 = vunpack.c.l.b16 %v98
    %v404 = vunpack.c.h.b16 %v98
    %v405 = vunpack.c.l.b16 %v99
    %v406 = vunpack.c.h.b16 %v99
    %v407 = vunpack.c.l.b16 %v100
    %v408 = vunpack.c.h.b16 %v100
    %v409 = vunpack.c.l.b16 %v101
    %v410 = vunpack.c.h.b16 %v101
    %v411 = vunpack.c.l.b16 %v102
    %v412 = vunpack.c.h.b16 %v102
    %v413 = vunpack.c.l.b16 %v103
    %v414 = vunpack.c.h.b16 %v103
    %v415 = vunpack.c.l.b16 %v104
    %v416 = vunpack.c.h.b16 %v104
    %v417 = vunpack.c.l.b16 %v105
    %v418 = vunpack.c.h.b16 %v105
    %v419 = vunpack.c.l.b16 %v106
    %v420 = vunpack.c.h.b16 %v106
    %v421 = vunpack.c.l.b16 %v107
    %v422 = vunpack.c.h.b16 %v107
    %v423 = vunpack.c.l.b16 %v108
    %v424 = vunpack.c.h.b16 %v108
    %v425 = vunpack.c.l.b16 %v109
    %v426 = vunpack.c.h.b16 %v109
    %v427 = vunpack.c.l.b16 %v110
    %v428 = vunpack.c.h.b16 %v110
    %v429 = vunpack.c.l.b16 %v111
    %v430 = vunpack.c.h.b16 %v111
    %v431 = vunpack.c.l.b16 %v112
    %v432 = vunpack.c.h.b16 %v112
    %v433 = vunpack.c.l.b16 %v113
    %v434 = vunpack.c.h.b16 %v113
    %v435 = vunpack.c.l.b16 %v114
    %v436 = vunpack.c.h.b16 %v114
    %v437 = vunpack.c.l.b16 %v115
    %v438 = vunpack.c.h.b16 %v115
    %v439 = vunpack.c.l.b16 %v116
    %v440 = vunpack.c.h.b16 %v116
    %v441 = vunpack.c.l.b16 %v117
    %v442 = vunpack.c.h.b16 %v117
    %v443 = vunpack.c.l.b16 %v118
    %v444 = vunpack.c.h.b16 %v118
    %v445 = vunpack.c.l.b16 %v119
    %v446 = vunpack.c.h.b16 %v119
    %v447 = vunpack.c.l.b16 %v120
    %v448 = vunpack.c.h.b16 %v120
    %v449 = vunpack.c.l.b16 %v121
    %v450 = vunpack.c.h.b16 %v121
    %v451 = vunpack.c.l.b16 %v122
    %v452 = vunpack.c.h.b16 %v122
    %v453 = vunpack.c.l.b16 %v123
    %v454 = vunpack.c.h.b16 %v123
    %v455 = vunpack.c.l.b16 %v124
    %v456 = vunpack.c.h.b16 %v124
    %v457 = vunpack.c.l.b16 %v125
    %v458 = vunpack.c.h.b16 %v125
    %v459 = vunpack.c.l.b16 %v126
    %v460 = vunpack.c.h.b16 %v126
    %v461 = vunpack.c.l.b16 %v127
    %v462 = vunpack.c.h.b16 %v127
    %v463 = vunpack.c.l.b16 %v128
    %v464 = vunpack.c.h.b16 %v128
    %v465 = vunpack.c.l.b16 %v129
    %v466 = vunpack.c.h.b16 %v129
    %v467 = vunpack.c.l.b16 %v130
    %v468 = vunpack.c.h.b16 %v130
    %v469 = vunpack.c.l.b16 %v131
    %v470 = vunpack.c.h.b16 %v131
    %v471 = vunpack.c.l.b16 %v132
    %v472 = vunpack.c.h.b16 %v132
    %v473 = vunpack.c.l.b16 %v133
    %v474 = vunpack.c.h.b16 %v133
    %v475 = vunpack.c.l.b16 %v134
    %v476 = vunpack.c.h.b16 %v134
    %v477 = vunpack.c.l.b16 %v135
    %v478 = vunpack.c.h.b16 %v135
    %v479 = vunpack.c.l.b16 %v136
    %v480 = vunpack.c.h.b16 %v136
    %v481 = vpack.c.b16 %v355, %v353
    %v482 = vpack.c.b16 %v356, %v354
    %v483 = vpack.c.b16 %v359, %v357
    %v484 = vpack.c.b16 %v360, %v358
    %v485 = vpack.c.b16 %v363, %v361
    %v486 = vpack.c.b16 %v364, %v362
    %v487 = vpack.c.b16 %v367, %v365
    %v488 = vpack.c.b16 %v368, %v366
    %v489 = vpack.c.b16 %v371, %v369
    %v490 = vpack.c.b16 %v372, %v370
    %v491 = vpack.c.b16 %v375, %v373
    %v492 = vpack.c.b16 %v376, %v374
    %v493 = vpack.c.b16 %v379, %v377
    %v494 = vpack.c.b16 %v380, %v378
    %v495 = vpack.c.b16 %v383, %v381
    %v496 = vpack.c.b16 %v384, %v382
    %v497 = vpack.c.b16 %v387, %v385
    %v498 = vpack.c.b16 %v388, %v386
    %v499 = vpack.c.b16 %v391, %v389
    %v500 = vpack.c.b16 %v392, %v390
    %v501 = vpack.c.b16 %v395, %v393
    %v502 = vpack.c.b16 %v396, %v394
    %v503 = vpack.c.b16 %v399, %v397
    %v504 = vpack.c.b16 %v400, %v398
    %v505 = vpack.c.b16 %v403, %v401
    %v506 = vpack.c.b16 %v404, %v402
    %v507 = vpack.c.b16 %v407, %v405
    %v508 = vpack.c.b16 %v408, %v406
    %v509 = vpack.c.b16 %v411, %v409
    %v510 = vpack.c.b16 %v412, %v410
    %v511 = vpack.c.b16 %v415, %v413
    %v512 = vpack.c.b16 %v416, %v414
    %v513 = vpack.c.b16 %v419, %v417
    %v514 = vpack.c.b16 %v420, %v418
    %v515 = vpack.c.b16 %v423, %v421
    %v516 = vpack.c.b16 %v424, %v422
    %v517 = vpack.c.b16 %v427, %v425
    %v518 = vpack.c.b16 %v428, %v426
    %v519 = vpack.c.b16 %v431, %v429
    %v520 = vpack.c.b16 %v432, %v430
    %v521 = vpack.c.b16 %v435, %v433
    %v522 = vpack.c.b16 %v436, %v434
    %v523 = vpack.c.b16 %v439, %v437
    %v524 = vpack.c.b16 %v440, %v438
    %v525 = vpack.c.b16 %v443, %v441
    %v526 = vpack.c.b16 %v444, %v442
    %v527 = vpack.c.b16 %v447, %v445
    %v528 = vpack.c.b16 %v448, %v446
    %v529 = vpack.c.b16 %v451, %v449
    %v530 = vpack.c.b16 %v452, %v450
    %v531 = vpack.c.b16 %v455, %v453
    %v532 = vpack.c.b16 %v456, %v454
    %v533 = vpack.c.b16 %v459, %v457
    %v534 = vpack.c.b16 %v460, %v458
    %v535 = vpack.c.b16 %v463, %v461
    %v536 = vpack.c.b16 %v464, %v462
    %v537 = vpack.c.b16 %v467, %v465
    %v538 = vpack.c.b16 %v468, %v466
    %v539 = vpack.c.b16 %v471, %v469
    %v540 = vpack.c.b16 %v472, %v470
    %v541 = vpack.c.b16 %v475, %v473
    %v542 = vpack.c.b16 %v476, %v474
    %v543 = vpack.c.b16 %v479, %v477
    %v544 = vpack.c.b16 %v480, %v478
    %609 = vmatprep.subr.bf16.mxu0 %v496
    %610 = vmatpush1.bf16.msra.mxu0 %v495
    %611 = vmatprep.subr.bf16.mxu0 %v494
    %612 = vmatpush1.bf16.msra.mxu0 %v493
    %613 = vmatprep.subr.bf16.mxu0 %v492
    %614 = vmatpush1.bf16.msra.mxu0 %v491
    %615 = vmatprep.subr.bf16.mxu0 %v490
    %616 = vmatpush1.bf16.msra.mxu0 %v489
    %617 = vmatprep.subr.bf16.mxu0 %v488
    %618 = vmatpush1.bf16.msra.mxu0 %v487
    %619 = vmatprep.subr.bf16.mxu0 %v486
    %620 = vmatpush1.bf16.msra.mxu0 %v485
    %621 = vmatprep.subr.bf16.mxu0 %v484
    %622 = vmatpush1.bf16.msra.mxu0 %v483
    %623 = vmatprep.subr.bf16.mxu0 %v482
    %624 = vmatpush1.bf16.msra.mxu0 %v481
    %625 = vmatprep.subr.bf16.mxu0 %v512
    %626 = vmatpush2.bf16.msra.mxu0 %v511
    %627 = vmatprep.subr.bf16.mxu0 %v510
    %628 = vmatpush2.bf16.msra.mxu0 %v509
    %629 = vmatprep.subr.bf16.mxu0 %v508
    %630 = vmatpush2.bf16.msra.mxu0 %v507
    %631 = vmatprep.subr.bf16.mxu0 %v506
    %632 = vmatpush2.bf16.msra.mxu0 %v505
    %633 = vmatprep.subr.bf16.mxu0 %v504
    %634 = vmatpush2.bf16.msra.mxu0 %v503
    %635 = vmatprep.subr.bf16.mxu0 %v502
    %636 = vmatpush2.bf16.msra.mxu0 %v501
    %637 = vmatprep.subr.bf16.mxu0 %v500
    %638 = vmatpush2.bf16.msra.mxu0 %v499
    %639 = vmatprep.subr.bf16.mxu0 %v498
    %640 = vmatpush2.bf16.msra.mxu0 %v497
    %641 = vmatprep.mubr.bf16.mxu0 %v234
    %642 = vmatmul.mubr.bf16.gmra.mxu0 %v233
    %v643 = vpop.f32.mrf.mxu0
    %v644 = vadd.f32 %v142, %v643
    %v645 = vpop.f32.mrf.mxu0
    %v646 = vadd.f32 %v146, %v645
    %v647 = vpop.f32.mrf.mxu0
    %v648 = vadd.f32 %v142, %v647
    %v649 = vpop.f32.mrf.mxu0
    %v650 = vadd.f32 %v146, %v649
    %651 = vmatprep.mubr.bf16.mxu0 %v238
    %652 = vmatmul.mubr.bf16.gmra.mxu0 %v237
    %v653 = vpop.f32.mrf.mxu0
    %v654 = vadd.f32 %v142, %v653
    %v655 = vpop.f32.mrf.mxu0
    %v656 = vadd.f32 %v146, %v655
    %v657 = vpop.f32.mrf.mxu0
    %v658 = vadd.f32 %v142, %v657
    %v659 = vpop.f32.mrf.mxu0
    %v660 = vadd.f32 %v146, %v659
    %661 = vmatprep.mubr.bf16.mxu0 %v242
    %662 = vmatmul.mubr.bf16.gmra.mxu0 %v241
    %v663 = vpop.f32.mrf.mxu0
    %v664 = vadd.f32 %v142, %v663
    %v665 = vpop.f32.mrf.mxu0
    %v666 = vadd.f32 %v146, %v665
    %v667 = vpop.f32.mrf.mxu0
    %v668 = vadd.f32 %v142, %v667
    %v669 = vpop.f32.mrf.mxu0
    %v670 = vadd.f32 %v146, %v669
    %671 = vmatprep.mubr.bf16.mxu0 %v246
    %672 = vmatmul.mubr.bf16.gmra.mxu0 %v245
    %v673 = vpop.f32.mrf.mxu0
    %v674 = vadd.f32 %v142, %v673
    %v675 = vpop.f32.mrf.mxu0
    %v676 = vadd.f32 %v146, %v675
    %v677 = vpop.f32.mrf.mxu0
    %v678 = vadd.f32 %v142, %v677
    %v679 = vpop.f32.mrf.mxu0
    %v680 = vadd.f32 %v146, %v679
    %681 = vmatprep.mubr.bf16.mxu0 %v250
    %682 = vmatmul.mubr.bf16.gmra.mxu0 %v249
    %v683 = vpop.f32.mrf.mxu0
    %v684 = vadd.f32 %v142, %v683
    %v685 = vpop.f32.mrf.mxu0
    %v686 = vadd.f32 %v146, %v685
    %v687 = vpop.f32.mrf.mxu0
    %v688 = vadd.f32 %v142, %v687
    %v689 = vpop.f32.mrf.mxu0
    %v690 = vadd.f32 %v146, %v689
    %691 = vmatprep.mubr.bf16.mxu0 %v254
    %692 = vmatmul.mubr.bf16.gmra.mxu0 %v253
    %v693 = vpop.f32.mrf.mxu0
    %v694 = vadd.f32 %v142, %v693
    %v695 = vpop.f32.mrf.mxu0
    %v696 = vadd.f32 %v146, %v695
    %v697 = vpop.f32.mrf.mxu0
    %v698 = vadd.f32 %v142, %v697
    %v699 = vpop.f32.mrf.mxu0
    %v700 = vadd.f32 %v146, %v699
    %701 = vmatprep.mubr.bf16.mxu0 %v258
    %702 = vmatmul.mubr.bf16.gmra.mxu0 %v257
    %v703 = vpop.f32.mrf.mxu0
    %v704 = vadd.f32 %v142, %v703
    %v705 = vpop.f32.mrf.mxu0
    %v706 = vadd.f32 %v146, %v705
    %v707 = vpop.f32.mrf.mxu0
    %v708 = vadd.f32 %v142, %v707
    %v709 = vpop.f32.mrf.mxu0
    %v710 = vadd.f32 %v146, %v709
    %711 = vdwg.mxu0
    %712 = vmatprep.subr.bf16.mxu0 %v528
    %713 = vmatpush1.bf16.msra.mxu0 %v527
    %714 = vmatprep.subr.bf16.mxu0 %v526
    %715 = vmatpush1.bf16.msra.mxu0 %v525
    %716 = vmatprep.subr.bf16.mxu0 %v524
    %717 = vmatpush1.bf16.msra.mxu0 %v523
    %718 = vmatprep.subr.bf16.mxu0 %v522
    %719 = vmatpush1.bf16.msra.mxu0 %v521
    %720 = vmatprep.subr.bf16.mxu0 %v520
    %721 = vmatpush1.bf16.msra.mxu0 %v519
    %722 = vmatprep.subr.bf16.mxu0 %v518
    %723 = vmatpush1.bf16.msra.mxu0 %v517
    %724 = vmatprep.subr.bf16.mxu0 %v516
    %725 = vmatpush1.bf16.msra.mxu0 %v515
    %726 = vmatprep.subr.bf16.mxu0 %v514
    %727 = vmatpush1.bf16.msra.mxu0 %v513
    %728 = vmatprep.subr.bf16.mxu0 %v544
    %729 = vmatpush2.bf16.msra.mxu0 %v543
    %730 = vmatprep.subr.bf16.mxu0 %v542
    %731 = vmatpush2.bf16.msra.mxu0 %v541
    %732 = vmatprep.subr.bf16.mxu0 %v540
    %733 = vmatpush2.bf16.msra.mxu0 %v539
    %734 = vmatprep.subr.bf16.mxu0 %v538
    %735 = vmatpush2.bf16.msra.mxu0 %v537
    %736 = vmatprep.subr.bf16.mxu0 %v536
    %737 = vmatpush2.bf16.msra.mxu0 %v535
    %738 = vmatprep.subr.bf16.mxu0 %v534
    %739 = vmatpush2.bf16.msra.mxu0 %v533
    %740 = vmatprep.subr.bf16.mxu0 %v532
    %741 = vmatpush2.bf16.msra.mxu0 %v531
    %742 = vmatprep.subr.bf16.mxu0 %v530
    %743 = vmatpush2.bf16.msra.mxu0 %v529
    %744 = vmatprep.mubr.bf16.mxu0 %v236
    %745 = vmatmul.mubr.bf16.gmra.mxu0 %v235
    %v746 = vpop.f32.mrf.mxu0
    %v747 = vadd.f32 %v644, %v746
    %v748 = vpop.f32.mrf.mxu0
    %v749 = vadd.f32 %v646, %v748
    %v750 = vpop.f32.mrf.mxu0
    %v751 = vadd.f32 %v648, %v750
    %v752 = vpop.f32.mrf.mxu0
    %v753 = vadd.f32 %v650, %v752
    %754 = vmatprep.mubr.bf16.mxu0 %v240
    %755 = vmatmul.mubr.bf16.gmra.mxu0 %v239
    %v756 = vpop.f32.mrf.mxu0
    %v757 = vadd.f32 %v654, %v756
    %v758 = vpop.f32.mrf.mxu0
    %v759 = vadd.f32 %v656, %v758
    %v760 = vpop.f32.mrf.mxu0
    %v761 = vadd.f32 %v658, %v760
    %v762 = vpop.f32.mrf.mxu0
    %v763 = vadd.f32 %v660, %v762
    %764 = vmatprep.mubr.bf16.mxu0 %v244
    %765 = vmatmul.mubr.bf16.gmra.mxu0 %v243
    %v766 = vpop.f32.mrf.mxu0
    %v767 = vadd.f32 %v664, %v766
    %v768 = vpop.f32.mrf.mxu0
    %v769 = vadd.f32 %v666, %v768
    %v770 = vpop.f32.mrf.mxu0
    %v771 = vadd.f32 %v668, %v770
    %v772 = vpop.f32.mrf.mxu0
    %v773 = vadd.f32 %v670, %v772
    %774 = vmatprep.mubr.bf16.mxu0 %v248
    %775 = vmatmul.mubr.bf16.gmra.mxu0 %v247
    %v776 = vpop.f32.mrf.mxu0
    %v777 = vadd.f32 %v674, %v776
    %v778 = vpop.f32.mrf.mxu0
    %v779 = vadd.f32 %v676, %v778
    %v780 = vpop.f32.mrf.mxu0
    %v781 = vadd.f32 %v678, %v780
    %v782 = vpop.f32.mrf.mxu0
    %v783 = vadd.f32 %v680, %v782
    %784 = vmatprep.mubr.bf16.mxu0 %v252
    %785 = vmatmul.mubr.bf16.gmra.mxu0 %v251
    %v786 = vpop.f32.mrf.mxu0
    %v787 = vadd.f32 %v684, %v786
    %v788 = vpop.f32.mrf.mxu0
    %v789 = vadd.f32 %v686, %v788
    %v790 = vpop.f32.mrf.mxu0
    %v791 = vadd.f32 %v688, %v790
    %v792 = vpop.f32.mrf.mxu0
    %v793 = vadd.f32 %v690, %v792
    %794 = vmatprep.mubr.bf16.mxu0 %v256
    %795 = vmatmul.mubr.bf16.gmra.mxu0 %v255
    %v796 = vpop.f32.mrf.mxu0
    %v797 = vadd.f32 %v694, %v796
    %v798 = vpop.f32.mrf.mxu0
    %v799 = vadd.f32 %v696, %v798
    %v800 = vpop.f32.mrf.mxu0
    %v801 = vadd.f32 %v698, %v800
    %v802 = vpop.f32.mrf.mxu0
    %v803 = vadd.f32 %v700, %v802
    %804 = vmatprep.mubr.bf16.mxu0 %v260
    %805 = vmatmul.mubr.bf16.gmra.mxu0 %v259
    %v806 = vpop.f32.mrf.mxu0
    %v807 = vadd.f32 %v704, %v806
    %v808 = vpop.f32.mrf.mxu0
    %v809 = vadd.f32 %v706, %v808
    %v810 = vpop.f32.mrf.mxu0
    %v811 = vadd.f32 %v708, %v810
    %v812 = vpop.f32.mrf.mxu0
    %v813 = vadd.f32 %v710, %v812
    %814 = vdwg.mxu0
    %v815 = vmax.f32 %v747, 0.0
    %v816 = vmax.f32 %v749, 0.0
    %v817 = vmax.f32 %v751, 0.0
    %v818 = vmax.f32 %v753, 0.0
    %v819 = vmax.f32 %v757, 0.0
    %v820 = vmax.f32 %v759, 0.0
    %v821 = vmax.f32 %v761, 0.0
    %v822 = vmax.f32 %v763, 0.0
    %v823 = vmax.f32 %v767, 0.0
    %v824 = vmax.f32 %v769, 0.0
    %v825 = vmax.f32 %v771, 0.0
    %v826 = vmax.f32 %v773, 0.0
    %v827 = vmax.f32 %v777, 0.0
    %v828 = vmax.f32 %v779, 0.0
    %v829 = vmax.f32 %v781, 0.0
    %v830 = vmax.f32 %v783, 0.0
    %v831 = vmax.f32 %v787, 0.0
    %v832 = vmax.f32 %v789, 0.0
    %v833 = vmax.f32 %v791, 0.0
    %v834 = vmax.f32 %v793, 0.0
    %v835 = vmax.f32 %v797, 0.0
    %v836 = vmax.f32 %v799, 0.0
    %v837 = vmax.f32 %v801, 0.0
    %v838 = vmax.f32 %v803, 0.0
    %v839 = vmax.f32 %v807, 0.0
    %v840 = vmax.f32 %v809, 0.0
    %v841 = vmax.f32 %v811, 0.0
    %v842 = vmax.f32 %v813, 0.0
    %v843 = vpack.c.bf16 %v817, %v815
    %v844 = vpack.c.bf16 %v818, %v816
    %v845 = vpack.c.bf16 %v821, %v819
    %v846 = vpack.c.bf16 %v822, %v820
    %v847 = vpack.c.bf16 %v825, %v823
    %v848 = vpack.c.bf16 %v826, %v824
    %v849 = vpack.c.bf16 %v829, %v827
    %v850 = vpack.c.bf16 %v830, %v828
    %v851 = vpack.c.bf16 %v833, %v831
    %v852 = vpack.c.bf16 %v834, %v832
    %v853 = vpack.c.bf16 %v837, %v835
    %v854 = vpack.c.bf16 %v838, %v836
    %v855 = vpack.c.bf16 %v841, %v839
    %v856 = vpack.c.bf16 %v842, %v840
    %v857 = vld [vmem:[%s3] sm:$0xf]
    %v858 = vld [vmem:[%s3 + $0x4] sm:$0xf]
    %v859 = vld [vmem:[%s3 + $0x8] sm:$0xf]
    %v860 = vld [vmem:[%s3 + $0xc] sm:$0xf]
    %v861 = vld [vmem:[%s3 + $0x10] sm:$0xf]
    %v862 = vld [vmem:[%s3 + $0x14] sm:$0xf]
    %v863 = vld [vmem:[%s3 + $0x18] sm:$0xf]
    %v864 = vld [vmem:[%s3 + $0x1c] sm:$0xf]
    %v865 = vld [vmem:[%s3 + $0x20] sm:$0xf]
    %v866 = vld [vmem:[%s3 + $0x24] sm:$0xf]
    %v867 = vld [vmem:[%s3 + $0x28] sm:$0xf]
    %v868 = vld [vmem:[%s3 + $0x2c] sm:$0xf]
    %v869 = vld [vmem:[%s3 + $0x30] sm:$0xf]
    %v870 = vld [vmem:[%s3 + $0x34] sm:$0xf]
    %v871 = vld [vmem:[%s3 + $0x38] sm:$0xf]
    %v872 = vld [vmem:[%s3 + $0x3c] sm:$0xf]
    %v873 = vld [vmem:[%s3 + $0x40] sm:$0xf]
    %v874 = vld [vmem:[%s3 + $0x44] sm:$0xf]
    %v875 = vld [vmem:[%s3 + $0x48] sm:$0xf]
    %v876 = vld [vmem:[%s3 + $0x4c] sm:$0xf]
    %v877 = vld [vmem:[%s3 + $0x50] sm:$0xf]
    %v878 = vld [vmem:[%s3 + $0x54] sm:$0xf]
    %v879 = vld [vmem:[%s3 + $0x58] sm:$0xf]
    %v880 = vld [vmem:[%s3 + $0x5c] sm:$0xf]
    %v881 = vld [vmem:[%s3 + $0x60] sm:$0xf]
    %v882 = vld [vmem:[%s3 + $0x64] sm:$0xf]
    %v883 = vld [vmem:[%s3 + $0x68] sm:$0xf]
    %v884 = vld [vmem:[%s3 + $0x6c] sm:$0xf]
    %v885 = vld [vmem:[%s3 + $0x70] sm:$0xf]
    %v886 = vld [vmem:[%s3 + $0x74] sm:$0xf]
    %v887 = vld [vmem:[%s3 + $0x78] sm:$0xf]
    %v888 = vld [vmem:[%s3 + $0x7c] sm:$0xf]
    %v889 = vld [vmem:[#allocation4] sm:$0x1]
    %v891 = vlaneseq
    %v892 = vshrl.u32 %v891, 7
    %v893 = vsub.s32 0, %v892
    %v894 = vrot.slane %v889, %v893
    %v928 = vunpack.c.l.b16 %v857
    %v929 = vunpack.c.l.b16 %v858
    %v930 = vunpack.c.l.b16 %v859
    %v931 = vunpack.c.l.b16 %v860
    %v932 = vunpack.c.l.b16 %v861
    %v933 = vunpack.c.l.b16 %v862
    %v934 = vunpack.c.l.b16 %v863
    %v935 = vunpack.c.l.b16 %v864
    %v936 = vunpack.c.l.b16 %v865
    %v937 = vunpack.c.l.b16 %v866
    %v938 = vunpack.c.l.b16 %v867
    %v939 = vunpack.c.l.b16 %v868
    %v940 = vunpack.c.l.b16 %v869
    %v941 = vunpack.c.l.b16 %v870
    %v942 = vunpack.c.l.b16 %v871
    %v943 = vunpack.c.l.b16 %v872
    %v944 = vunpack.c.l.b16 %v873
    %v945 = vunpack.c.l.b16 %v874
    %v946 = vunpack.c.l.b16 %v875
    %v947 = vunpack.c.l.b16 %v876
    %v948 = vunpack.c.l.b16 %v877
    %v949 = vunpack.c.l.b16 %v878
    %v950 = vunpack.c.l.b16 %v879
    %v951 = vunpack.c.l.b16 %v880
    %v952 = vunpack.c.l.b16 %v881
    %v953 = vunpack.c.l.b16 %v882
    %v954 = vunpack.c.l.b16 %v883
    %v955 = vunpack.c.l.b16 %v884
    %v956 = vunpack.c.l.b16 %v885
    %v957 = vunpack.c.l.b16 %v886
    %v958 = vunpack.c.l.b16 %v887
    %v959 = vunpack.c.l.b16 %v888
    %v960 = vpack.c.b16 %v929, %v928
    %v961 = vpack.c.b16 %v931, %v930
    %v962 = vpack.c.b16 %v933, %v932
    %v963 = vpack.c.b16 %v935, %v934
    %v964 = vpack.c.b16 %v937, %v936
    %v965 = vpack.c.b16 %v939, %v938
    %v966 = vpack.c.b16 %v941, %v940
    %v967 = vpack.c.b16 %v943, %v942
    %v968 = vpack.c.b16 %v945, %v944
    %v969 = vpack.c.b16 %v947, %v946
    %v970 = vpack.c.b16 %v949, %v948
    %v971 = vpack.c.b16 %v951, %v950
    %v972 = vpack.c.b16 %v953, %v952
    %v973 = vpack.c.b16 %v955, %v954
    %v974 = vpack.c.b16 %v957, %v956
    %v975 = vpack.c.b16 %v959, %v958
    %992 = vmatprep.subr.bf16.mxu0 0
    %993 = vmatpush1.bf16.msra.mxu0 %v967
    %994 = vmatprep.subr.bf16.mxu0 0
    %995 = vmatpush1.bf16.msra.mxu0 %v966
    %996 = vmatprep.subr.bf16.mxu0 0
    %997 = vmatpush1.bf16.msra.mxu0 %v965
    %998 = vmatprep.subr.bf16.mxu0 0
    %999 = vmatpush1.bf16.msra.mxu0 %v964
    %1000 = vmatprep.subr.bf16.mxu0 0
    %1001 = vmatpush1.bf16.msra.mxu0 %v963
    %1002 = vmatprep.subr.bf16.mxu0 0
    %1003 = vmatpush1.bf16.msra.mxu0 %v962
    %1004 = vmatprep.subr.bf16.mxu0 0
    %1005 = vmatpush1.bf16.msra.mxu0 %v961
    %1006 = vmatprep.subr.bf16.mxu0 0
    %1007 = vmatpush1.bf16.msra.mxu0 %v960
    %1008 = vmatprep.subr.bf16.mxu0 0
    %1009 = vmatpush2.bf16.msra.mxu0 %v975
    %1010 = vmatprep.subr.bf16.mxu0 0
    %1011 = vmatpush2.bf16.msra.mxu0 %v974
    %1012 = vmatprep.subr.bf16.mxu0 0
    %1013 = vmatpush2.bf16.msra.mxu0 %v973
    %1014 = vmatprep.subr.bf16.mxu0 0
    %1015 = vmatpush2.bf16.msra.mxu0 %v972
    %1016 = vmatprep.subr.bf16.mxu0 0
    %1017 = vmatpush2.bf16.msra.mxu0 %v971
    %1018 = vmatprep.subr.bf16.mxu0 0
    %1019 = vmatpush2.bf16.msra.mxu0 %v970
    %1020 = vmatprep.subr.bf16.mxu0 0
    %1021 = vmatpush2.bf16.msra.mxu0 %v969
    %1022 = vmatprep.subr.bf16.mxu0 0
    %1023 = vmatpush2.bf16.msra.mxu0 %v968
    %1024 = vmatprep.mubr.bf16.mxu0 %v844
    %1025 = vmatmul.mubr.bf16.gmra.mxu0 %v843
    %v1026 = vpop.f32.mrf.mxu0
    %v1027 = vadd.f32 %v894, %v1026
    %v1028 = vpop.f32.mrf.mxu0
    %v1029 = vpop.f32.mrf.mxu0
    %v1030 = vadd.f32 %v894, %v1029
    %v1031 = vpop.f32.mrf.mxu0
    %1032 = vmatprep.mubr.bf16.mxu0 %v846
    %1033 = vmatmul.mubr.bf16.gmra.mxu0 %v845
    %v1034 = vpop.f32.mrf.mxu0
    %v1035 = vadd.f32 %v894, %v1034
    %v1036 = vpop.f32.mrf.mxu0
    %v1037 = vpop.f32.mrf.mxu0
    %v1038 = vadd.f32 %v894, %v1037
    %v1039 = vpop.f32.mrf.mxu0
    %1040 = vmatprep.mubr.bf16.mxu0 %v848
    %1041 = vmatmul.mubr.bf16.gmra.mxu0 %v847
    %v1042 = vpop.f32.mrf.mxu0
    %v1043 = vadd.f32 %v894, %v1042
    %v1044 = vpop.f32.mrf.mxu0
    %v1045 = vpop.f32.mrf.mxu0
    %v1046 = vadd.f32 %v894, %v1045
    %v1047 = vpop.f32.mrf.mxu0
    %1048 = vmatprep.mubr.bf16.mxu0 %v850
    %1049 = vmatmul.mubr.bf16.gmra.mxu0 %v849
    %v1050 = vpop.f32.mrf.mxu0
    %v1051 = vadd.f32 %v894, %v1050
    %v1052 = vpop.f32.mrf.mxu0
    %v1053 = vpop.f32.mrf.mxu0
    %v1054 = vadd.f32 %v894, %v1053
    %v1055 = vpop.f32.mrf.mxu0
    %1056 = vmatprep.mubr.bf16.mxu0 %v852
    %1057 = vmatmul.mubr.bf16.gmra.mxu0 %v851
    %v1058 = vpop.f32.mrf.mxu0
    %v1059 = vadd.f32 %v894, %v1058
    %v1060 = vpop.f32.mrf.mxu0
    %v1061 = vpop.f32.mrf.mxu0
    %v1062 = vadd.f32 %v894, %v1061
    %v1063 = vpop.f32.mrf.mxu0
    %1064 = vmatprep.mubr.bf16.mxu0 %v854
    %1065 = vmatmul.mubr.bf16.gmra.mxu0 %v853
    %v1066 = vpop.f32.mrf.mxu0
    %v1067 = vadd.f32 %v894, %v1066
    %v1068 = vpop.f32.mrf.mxu0
    %v1069 = vpop.f32.mrf.mxu0
    %v1070 = vadd.f32 %v894, %v1069
    %v1071 = vpop.f32.mrf.mxu0
    %1072 = vmatprep.mubr.bf16.mxu0 %v856
    %1073 = vmatmul.mubr.bf16.gmra.mxu0 %v855
    %v1074 = vpop.f32.mrf.mxu0
    %v1075 = vadd.f32 %v894, %v1074
    %v1076 = vpop.f32.mrf.mxu0
    %v1077 = vpop.f32.mrf.mxu0
    %v1078 = vadd.f32 %v894, %v1077
    %v1079 = vpop.f32.mrf.mxu0
    %1080 = vdwg.mxu0
    %v1081 = vmax.f32 %v1027, 0.0
    %v1082 = vmax.f32 %v1030, 0.0
    %v1083 = vmax.f32 %v1035, 0.0
    %v1084 = vmax.f32 %v1038, 0.0
    %v1085 = vmax.f32 %v1043, 0.0
    %v1086 = vmax.f32 %v1046, 0.0
    %v1087 = vmax.f32 %v1051, 0.0
    %v1088 = vmax.f32 %v1054, 0.0
    %v1089 = vmax.f32 %v1059, 0.0
    %v1090 = vmax.f32 %v1062, 0.0
    %v1091 = vmax.f32 %v1067, 0.0
    %v1092 = vmax.f32 %v1070, 0.0
    %v1093 = vmax.f32 %v1075, 0.0
    %v1094 = vmax.f32 %v1078, 0.0
    %v1095 = vpack.c.bf16 %v1082, %v1081
    %v1096 = vpack.c.bf16 %v1084, %v1083
    %v1097 = vpack.c.bf16 %v1086, %v1085
    %v1098 = vpack.c.bf16 %v1088, %v1087
    %v1099 = vpack.c.bf16 %v1090, %v1089
    %v1100 = vpack.c.bf16 %v1092, %v1091
    %v1101 = vpack.c.bf16 %v1094, %v1093
    %v1109 = vunpack.c.l.b16 %v1095
    %v1110 = vunpack.c.h.b16 %v1095
    %v1111 = vunpack.c.l.b16 %v1096
    %v1112 = vunpack.c.h.b16 %v1096
    %v1113 = vunpack.c.l.b16 %v1097
    %v1114 = vunpack.c.h.b16 %v1097
    %v1115 = vunpack.c.l.b16 %v1098
    %v1116 = vunpack.c.h.b16 %v1098
    %v1117 = vunpack.c.l.b16 %v1099
    %v1118 = vunpack.c.h.b16 %v1099
    %v1119 = vunpack.c.l.b16 %v1100
    %v1120 = vunpack.c.h.b16 %v1100
    %v1121 = vunpack.c.l.b16 %v1101
    %v1122 = vunpack.c.h.b16 %v1101
    %v1123 = vpack.c.b16 %v1109, %v1109
    %v1124 = vpack.c.b16 %v1110, %v1110
    %v1125 = vpack.c.b16 %v1111, %v1111
    %v1126 = vpack.c.b16 %v1112, %v1112
    %v1127 = vpack.c.b16 %v1113, %v1113
    %v1128 = vpack.c.b16 %v1114, %v1114
    %v1129 = vpack.c.b16 %v1115, %v1115
    %v1130 = vpack.c.b16 %v1116, %v1116
    %v1131 = vpack.c.b16 %v1117, %v1117
    %v1132 = vpack.c.b16 %v1118, %v1118
    %v1133 = vpack.c.b16 %v1119, %v1119
    %v1134 = vpack.c.b16 %v1120, %v1120
    %v1135 = vpack.c.b16 %v1121, %v1121
    %v1136 = vpack.c.b16 %v1122, %v1122
    %vm1151 = vcmask 519168
    %1152 = vst.msk [vmem:[%s5] sm:$0xf] %vm1151, %v1123
    %1153 = vst.msk [vmem:[%s5 + $0x4] sm:$0xf] %vm1151, %v1124
    %1154 = vst.msk [vmem:[%s5 + $0x8] sm:$0xf] %vm1151, %v1125
    %1155 = vst.msk [vmem:[%s5 + $0xc] sm:$0xf] %vm1151, %v1126
    %1156 = vst.msk [vmem:[%s5 + $0x10] sm:$0xf] %vm1151, %v1127
    %1157 = vst.msk [vmem:[%s5 + $0x14] sm:$0xf] %vm1151, %v1128
    %1158 = vst.msk [vmem:[%s5 + $0x18] sm:$0xf] %vm1151, %v1129
    %1159 = vst.msk [vmem:[%s5 + $0x1c] sm:$0xf] %vm1151, %v1130
    %1160 = vst.msk [vmem:[%s5 + $0x20] sm:$0xf] %vm1151, %v1131
    %1161 = vst.msk [vmem:[%s5 + $0x24] sm:$0xf] %vm1151, %v1132
    %1162 = vst.msk [vmem:[%s5 + $0x28] sm:$0xf] %vm1151, %v1133
    %1163 = vst.msk [vmem:[%s5 + $0x2c] sm:$0xf] %vm1151, %v1134
    %1164 = vst.msk [vmem:[%s5 + $0x30] sm:$0xf] %vm1151, %v1135
    %1165 = vst.msk [vmem:[%s5 + $0x34] sm:$0xf] %vm1151, %v1136
    // Predicated region
    $region30: #{resnet_visual_encoder.2} parent=1 // pred_check
      _
    $region31: #{resnet_visual_encoder.2} parent=1 // pred_check_branch
      %1167 = sbr.rel (0) target = $region33
    $region32: #{resnet_visual_encoder.2} parent=1 // pred_region
      _
    $region33: #{resnet_visual_encoder.2} parent=1 // pred_fallthru
      _
    // Predicated region
    $region34: #{resnet_visual_encoder.2} parent=1 // pred_check
      _
    $region35: #{resnet_visual_encoder.2} parent=1 // pred_check_branch
      %1169 = sbr.rel (0) target = $region37
    $region36: #{resnet_visual_encoder.2} parent=1 // pred_region
      _
    $region37: #{resnet_visual_encoder.2} parent=1 // pred_fallthru
      _
    %1170 = vsyncpa [#allocation3], 1
    %1171 = vsyncpa [#allocation5], 1

// kernel: resnet_visual_encoder.3
$region0: #{resnet_visual_encoder.3}
  #allocation0 [shape = 'u32[]', space=smem, size = 0x4, offset = 0x4, fixed_abs, tag = 'smem constant byte address 0x4 - core index']
  #allocation1 [shape = 'u32[144,128]{1,0:T(1,128)}', space=vmem, size = 0x12000, scoped, tag = 'internal scratch']
  %s0 = inlined_call_operand.vmem [shape: bf16[2,3584], index: 0, kind: input, shape index: {}]
  %s1 = inlined_call_operand.vmem [shape: bf16[3584,128], index: 1, kind: input, shape index: {}]
  %s2 = inlined_call_operand.vmem [shape: f32[1,128], index: 2, kind: input, shape index: {}]
  %s3 = inlined_call_operand.hbm [shape: f32[2,128], index: 3, kind: output, shape index: {}]
  %s4 = sld [smem:[#allocation0]]
  $region22: #{resnet_visual_encoder.3} parent=0
    _
  %s6 = ssub.s32 1, %s4
  %s7 = scalar_select 0, %s6, %s4
  $region1: #{resnet_visual_encoder.3} parent=0
    #allocation2 [shape = 'u8[1024]{0}', space=vmem, size = 0x400, scoped, tag = 'output window, operand 0, single buffered']
    #allocation3 [shape = 's32[1]{0}', space=sflag, size = 0x4, scoped, tag = 'scoped memory for resnet_visual_encoder.3']
    %8 = vsyncpa [#allocation3], 0
    // Predicated region
    $region2: #{resnet_visual_encoder.3} parent=1 // pred_check
      _
    $region3: #{resnet_visual_encoder.3} parent=1 // pred_check_branch
      %10 = sbr.rel (0) target = $region5
    $region4: #{resnet_visual_encoder.3} parent=1 // pred_region
      _
    $region5: #{resnet_visual_encoder.3} parent=1 // pred_fallthru
      _
    // Predicated region
    $region6: #{resnet_visual_encoder.3} parent=1 // pred_check
      _
    $region7: #{resnet_visual_encoder.3} parent=1 // pred_check_branch
      %12 = sbr.rel (0) target = $region9
    $region8: #{resnet_visual_encoder.3} parent=1 // pred_region
      _
    $region9: #{resnet_visual_encoder.3} parent=1 // pred_fallthru
      _
    // Predicated region
    $region10: #{resnet_visual_encoder.3} parent=1 // pred_check
      _
    $region11: #{resnet_visual_encoder.3} parent=1 // pred_check_branch
      %14 = sbr.rel (0) target = $region13
    $region12: #{resnet_visual_encoder.3} parent=1 // pred_region
      _
    $region13: #{resnet_visual_encoder.3} parent=1 // pred_fallthru
      _
    %v16 = vld [vmem:[%s0] sm:$0xff]
    %v17 = vld [vmem:[%s0 + $0x8] sm:$0xff]
    %v18 = vld [vmem:[%s0 + $0x10] sm:$0xff]
    %v19 = vld [vmem:[%s0 + $0x18] sm:$0xf]
    %v20 = vld [vmem:[%s1] sm:$0xf]
    %v21 = vld [vmem:[%s1 + $0x4] sm:$0xf]
    %v22 = vld [vmem:[%s1 + $0x8] sm:$0xf]
    %v23 = vld [vmem:[%s1 + $0xc] sm:$0xf]
    %v24 = vld [vmem:[%s1 + $0x10] sm:$0xf]
    %v25 = vld [vmem:[%s1 + $0x14] sm:$0xf]
    %v26 = vld [vmem:[%s1 + $0x18] sm:$0xf]
    %v27 = vld [vmem:[%s1 + $0x1c] sm:$0xf]
    %v28 = vld [vmem:[%s1 + $0x20] sm:$0xf]
    %v29 = vld [vmem:[%s1 + $0x24] sm:$0xf]
    %v30 = vld [vmem:[%s1 + $0x28] sm:$0xf]
    %v31 = vld [vmem:[%s1 + $0x2c] sm:$0xf]
    %v32 = vld [vmem:[%s1 + $0x30] sm:$0xf]
    %v33 = vld [vmem:[%s1 + $0x34] sm:$0xf]
    %v34 = vld [vmem:[%s1 + $0x38] sm:$0xf]
    %v35 = vld [vmem:[%s1 + $0x3c] sm:$0xf]
    %v36 = vld [vmem:[%s1 + $0x40] sm:$0xf]
    %v37 = vld [vmem:[%s1 + $0x44] sm:$0xf]
    %v38 = vld [vmem:[%s1 + $0x48] sm:$0xf]
    %v39 = vld [vmem:[%s1 + $0x4c] sm:$0xf]
    %v40 = vld [vmem:[%s1 + $0x50] sm:$0xf]
    %v41 = vld [vmem:[%s1 + $0x54] sm:$0xf]
    %v42 = vld [vmem:[%s1 + $0x58] sm:$0xf]
    %v43 = vld [vmem:[%s1 + $0x5c] sm:$0xf]
    %v44 = vld [vmem:[%s1 + $0x60] sm:$0xf]
    %v45 = vld [vmem:[%s1 + $0x64] sm:$0xf]
    %v46 = vld [vmem:[%s1 + $0x68] sm:$0xf]
    %v47 = vld [vmem:[%s1 + $0x6c] sm:$0xf]
    %v48 = vld [vmem:[%s1 + $0x70] sm:$0xf]
    %v49 = vld [vmem:[%s1 + $0x74] sm:$0xf]
    %v50 = vld [vmem:[%s1 + $0x78] sm:$0xf]
    %v51 = vld [vmem:[%s1 + $0x7c] sm:$0xf]
    %v52 = vld [vmem:[%s1 + $0x80] sm:$0xf]
    %v53 = vld [vmem:[%s1 + $0x84] sm:$0xf]
    %v54 = vld [vmem:[%s1 + $0x88] sm:$0xf]
    %v55 = vld [vmem:[%s1 + $0x8c] sm:$0xf]
    %v56 = vld [vmem:[%s1 + $0x90] sm:$0xf]
    %v57 = vld [vmem:[%s1 + $0x94] sm:$0xf]
    %v58 = vld [vmem:[%s1 + $0x98] sm:$0xf]
    %v59 = vld [vmem:[%s1 + $0x9c] sm:$0xf]
    %v60 = vld [vmem:[%s1 + $0xa0] sm:$0xf]
    %v61 = vld [vmem:[%s1 + $0xa4] sm:$0xf]
    %v62 = vld [vmem:[%s1 + $0xa8] sm:$0xf]
    %v63 = vld [vmem:[%s1 + $0xac] sm:$0xf]
    %v64 = vld [vmem:[%s1 + $0xb0] sm:$0xf]
    %v65 = vld [vmem:[%s1 + $0xb4] sm:$0xf]
    %v66 = vld [vmem:[%s1 + $0xb8] sm:$0xf]
    %v67 = vld [vmem:[%s1 + $0xbc] sm:$0xf]
    %v68 = vld [vmem:[%s1 + $0xc0] sm:$0xf]
    %v69 = vld [vmem:[%s1 + $0xc4] sm:$0xf]
    %v70 = vld [vmem:[%s1 + $0xc8] sm:$0xf]
    %v71 = vld [vmem:[%s1 + $0xcc] sm:$0xf]
    %v72 = vld [vmem:[%s1 + $0xd0] sm:$0xf]
    %v73 = vld [vmem:[%s1 + $0xd4] sm:$0xf]
    %v74 = vld [vmem:[%s1 + $0xd8] sm:$0xf]
    %v75 = vld [vmem:[%s1 + $0xdc] sm:$0xf]
    %v76 = vld [vmem:[%s1 + $0xe0] sm:$0xf]
    %v77 = vld [vmem:[%s1 + $0xe4] sm:$0xf]
    %v78 = vld [vmem:[%s1 + $0xe8] sm:$0xf]
    %v79 = vld [vmem:[%s1 + $0xec] sm:$0xf]
    %v80 = vld [vmem:[%s1 + $0xf0] sm:$0xf]
    %v81 = vld [vmem:[%s1 + $0xf4] sm:$0xf]
    %v82 = vld [vmem:[%s1 + $0xf8] sm:$0xf]
    %v83 = vld [vmem:[%s1 + $0xfc] sm:$0xf]
    %v84 = vld [vmem:[%s1 + $0x100] sm:$0xf]
    %v85 = vld [vmem:[%s1 + $0x104] sm:$0xf]
    %v86 = vld [vmem:[%s1 + $0x108] sm:$0xf]
    %v87 = vld [vmem:[%s1 + $0x10c] sm:$0xf]
    %v88 = vld [vmem:[%s1 + $0x110] sm:$0xf]
    %v89 = vld [vmem:[%s1 + $0x114] sm:$0xf]
    %v90 = vld [vmem:[%s1 + $0x118] sm:$0xf]
    %v91 = vld [vmem:[%s1 + $0x11c] sm:$0xf]
    %v92 = vld [vmem:[%s1 + $0x120] sm:$0xf]
    %v93 = vld [vmem:[%s1 + $0x124] sm:$0xf]
    %v94 = vld [vmem:[%s1 + $0x128] sm:$0xf]
    %v95 = vld [vmem:[%s1 + $0x12c] sm:$0xf]
    %v96 = vld [vmem:[%s1 + $0x130] sm:$0xf]
    %v97 = vld [vmem:[%s1 + $0x134] sm:$0xf]
    %v98 = vld [vmem:[%s1 + $0x138] sm:$0xf]
    %v99 = vld [vmem:[%s1 + $0x13c] sm:$0xf]
    %v100 = vld [vmem:[%s1 + $0x140] sm:$0xf]
    %v101 = vld [vmem:[%s1 + $0x144] sm:$0xf]
    %v102 = vld [vmem:[%s1 + $0x148] sm:$0xf]
    %v103 = vld [vmem:[%s1 + $0x14c] sm:$0xf]
    %v104 = vld [vmem:[%s1 + $0x150] sm:$0xf]
    %v105 = vld [vmem:[%s1 + $0x154] sm:$0xf]
    %v106 = vld [vmem:[%s1 + $0x158] sm:$0xf]
    %v107 = vld [vmem:[%s1 + $0x15c] sm:$0xf]
    %v108 = vld [vmem:[%s1 + $0x160] sm:$0xf]
    %v109 = vld [vmem:[%s1 + $0x164] sm:$0xf]
    %v110 = vld [vmem:[%s1 + $0x168] sm:$0xf]
    %v111 = vld [vmem:[%s1 + $0x16c] sm:$0xf]
    %v112 = vld [vmem:[%s1 + $0x170] sm:$0xf]
    %v113 = vld [vmem:[%s1 + $0x174] sm:$0xf]
    %v114 = vld [vmem:[%s1 + $0x178] sm:$0xf]
    %v115 = vld [vmem:[%s1 + $0x17c] sm:$0xf]
    %v116 = vld [vmem:[%s1 + $0x180] sm:$0xf]
    %v117 = vld [vmem:[%s1 + $0x184] sm:$0xf]
    %v118 = vld [vmem:[%s1 + $0x188] sm:$0xf]
    %v119 = vld [vmem:[%s1 + $0x18c] sm:$0xf]
    %v120 = vld [vmem:[%s1 + $0x190] sm:$0xf]
    %v121 = vld [vmem:[%s1 + $0x194] sm:$0xf]
    %v122 = vld [vmem:[%s1 + $0x198] sm:$0xf]
    %v123 = vld [vmem:[%s1 + $0x19c] sm:$0xf]
    %v124 = vld [vmem:[%s1 + $0x1a0] sm:$0xf]
    %v125 = vld [vmem:[%s1 + $0x1a4] sm:$0xf]
    %v126 = vld [vmem:[%s1 + $0x1a8] sm:$0xf]
    %v127 = vld [vmem:[%s1 + $0x1ac] sm:$0xf]
    %v128 = vld [vmem:[%s1 + $0x1b0] sm:$0xf]
    %v129 = vld [vmem:[%s1 + $0x1b4] sm:$0xf]
    %v130 = vld [vmem:[%s1 + $0x1b8] sm:$0xf]
    %v131 = vld [vmem:[%s1 + $0x1bc] sm:$0xf]
    %v132 = vld [vmem:[%s1 + $0x1c0] sm:$0xf]
    %v133 = vld [vmem:[%s1 + $0x1c4] sm:$0xf]
    %v134 = vld [vmem:[%s1 + $0x1c8] sm:$0xf]
    %v135 = vld [vmem:[%s1 + $0x1cc] sm:$0xf]
    %v136 = vld [vmem:[%s1 + $0x1d0] sm:$0xf]
    %v137 = vld [vmem:[%s1 + $0x1d4] sm:$0xf]
    %v138 = vld [vmem:[%s1 + $0x1d8] sm:$0xf]
    %v139 = vld [vmem:[%s1 + $0x1dc] sm:$0xf]
    %v140 = vld [vmem:[%s1 + $0x1e0] sm:$0xf]
    %v141 = vld [vmem:[%s1 + $0x1e4] sm:$0xf]
    %v142 = vld [vmem:[%s1 + $0x1e8] sm:$0xf]
    %v143 = vld [vmem:[%s1 + $0x1ec] sm:$0xf]
    %v144 = vld [vmem:[%s1 + $0x1f0] sm:$0xf]
    %v145 = vld [vmem:[%s1 + $0x1f4] sm:$0xf]
    %v146 = vld [vmem:[%s1 + $0x1f8] sm:$0xf]
    %v147 = vld [vmem:[%s1 + $0x1fc] sm:$0xf]
    %v148 = vld [vmem:[%s1 + $0x200] sm:$0xf]
    %v149 = vld [vmem:[%s1 + $0x204] sm:$0xf]
    %v150 = vld [vmem:[%s1 + $0x208] sm:$0xf]
    %v151 = vld [vmem:[%s1 + $0x20c] sm:$0xf]
    %v152 = vld [vmem:[%s1 + $0x210] sm:$0xf]
    %v153 = vld [vmem:[%s1 + $0x214] sm:$0xf]
    %v154 = vld [vmem:[%s1 + $0x218] sm:$0xf]
    %v155 = vld [vmem:[%s1 + $0x21c] sm:$0xf]
    %v156 = vld [vmem:[%s1 + $0x220] sm:$0xf]
    %v157 = vld [vmem:[%s1 + $0x224] sm:$0xf]
    %v158 = vld [vmem:[%s1 + $0x228] sm:$0xf]
    %v159 = vld [vmem:[%s1 + $0x22c] sm:$0xf]
    %v160 = vld [vmem:[%s1 + $0x230] sm:$0xf]
    %v161 = vld [vmem:[%s1 + $0x234] sm:$0xf]
    %v162 = vld [vmem:[%s1 + $0x238] sm:$0xf]
    %v163 = vld [vmem:[%s1 + $0x23c] sm:$0xf]
    %v164 = vld [vmem:[%s1 + $0x240] sm:$0xf]
    %v165 = vld [vmem:[%s1 + $0x244] sm:$0xf]
    %v166 = vld [vmem:[%s1 + $0x248] sm:$0xf]
    %v167 = vld [vmem:[%s1 + $0x24c] sm:$0xf]
    %v168 = vld [vmem:[%s1 + $0x250] sm:$0xf]
    %v169 = vld [vmem:[%s1 + $0x254] sm:$0xf]
    %v170 = vld [vmem:[%s1 + $0x258] sm:$0xf]
    %v171 = vld [vmem:[%s1 + $0x25c] sm:$0xf]
    %v172 = vld [vmem:[%s1 + $0x260] sm:$0xf]
    %v173 = vld [vmem:[%s1 + $0x264] sm:$0xf]
    %v174 = vld [vmem:[%s1 + $0x268] sm:$0xf]
    %v175 = vld [vmem:[%s1 + $0x26c] sm:$0xf]
    %v176 = vld [vmem:[%s1 + $0x270] sm:$0xf]
    %v177 = vld [vmem:[%s1 + $0x274] sm:$0xf]
    %v178 = vld [vmem:[%s1 + $0x278] sm:$0xf]
    %v179 = vld [vmem:[%s1 + $0x27c] sm:$0xf]
    %v180 = vld [vmem:[%s1 + $0x280] sm:$0xf]
    %v181 = vld [vmem:[%s1 + $0x284] sm:$0xf]
    %v182 = vld [vmem:[%s1 + $0x288] sm:$0xf]
    %v183 = vld [vmem:[%s1 + $0x28c] sm:$0xf]
    %v184 = vld [vmem:[%s1 + $0x290] sm:$0xf]
    %v185 = vld [vmem:[%s1 + $0x294] sm:$0xf]
    %v186 = vld [vmem:[%s1 + $0x298] sm:$0xf]
    %v187 = vld [vmem:[%s1 + $0x29c] sm:$0xf]
    %v188 = vld [vmem:[%s1 + $0x2a0] sm:$0xf]
    %v189 = vld [vmem:[%s1 + $0x2a4] sm:$0xf]
    %v190 = vld [vmem:[%s1 + $0x2a8] sm:$0xf]
    %v191 = vld [vmem:[%s1 + $0x2ac] sm:$0xf]
    %v192 = vld [vmem:[%s1 + $0x2b0] sm:$0xf]
    %v193 = vld [vmem:[%s1 + $0x2b4] sm:$0xf]
    %v194 = vld [vmem:[%s1 + $0x2b8] sm:$0xf]
    %v195 = vld [vmem:[%s1 + $0x2bc] sm:$0xf]
    %v196 = vld [vmem:[%s1 + $0x2c0] sm:$0xf]
    %v197 = vld [vmem:[%s1 + $0x2c4] sm:$0xf]
    %v198 = vld [vmem:[%s1 + $0x2c8] sm:$0xf]
    %v199 = vld [vmem:[%s1 + $0x2cc] sm:$0xf]
    %v200 = vld [vmem:[%s1 + $0x2d0] sm:$0xf]
    %v201 = vld [vmem:[%s1 + $0x2d4] sm:$0xf]
    %v202 = vld [vmem:[%s1 + $0x2d8] sm:$0xf]
    %v203 = vld [vmem:[%s1 + $0x2dc] sm:$0xf]
    %v204 = vld [vmem:[%s1 + $0x2e0] sm:$0xf]
    %v205 = vld [vmem:[%s1 + $0x2e4] sm:$0xf]
    %v206 = vld [vmem:[%s1 + $0x2e8] sm:$0xf]
    %v207 = vld [vmem:[%s1 + $0x2ec] sm:$0xf]
    %v208 = vld [vmem:[%s1 + $0x2f0] sm:$0xf]
    %v209 = vld [vmem:[%s1 + $0x2f4] sm:$0xf]
    %v210 = vld [vmem:[%s1 + $0x2f8] sm:$0xf]
    %v211 = vld [vmem:[%s1 + $0x2fc] sm:$0xf]
    %v212 = vld [vmem:[%s1 + $0x300] sm:$0xf]
    %v213 = vld [vmem:[%s1 + $0x304] sm:$0xf]
    %v214 = vld [vmem:[%s1 + $0x308] sm:$0xf]
    %v215 = vld [vmem:[%s1 + $0x30c] sm:$0xf]
    %v216 = vld [vmem:[%s1 + $0x310] sm:$0xf]
    %v217 = vld [vmem:[%s1 + $0x314] sm:$0xf]
    %v218 = vld [vmem:[%s1 + $0x318] sm:$0xf]
    %v219 = vld [vmem:[%s1 + $0x31c] sm:$0xf]
    %v220 = vld [vmem:[%s1 + $0x320] sm:$0xf]
    %v221 = vld [vmem:[%s1 + $0x324] sm:$0xf]
    %v222 = vld [vmem:[%s1 + $0x328] sm:$0xf]
    %v223 = vld [vmem:[%s1 + $0x32c] sm:$0xf]
    %v224 = vld [vmem:[%s1 + $0x330] sm:$0xf]
    %v225 = vld [vmem:[%s1 + $0x334] sm:$0xf]
    %v226 = vld [vmem:[%s1 + $0x338] sm:$0xf]
    %v227 = vld [vmem:[%s1 + $0x33c] sm:$0xf]
    %v228 = vld [vmem:[%s1 + $0x340] sm:$0xf]
    %v229 = vld [vmem:[%s1 + $0x344] sm:$0xf]
    %v230 = vld [vmem:[%s1 + $0x348] sm:$0xf]
    %v231 = vld [vmem:[%s1 + $0x34c] sm:$0xf]
    %v232 = vld [vmem:[%s1 + $0x350] sm:$0xf]
    %v233 = vld [vmem:[%s1 + $0x354] sm:$0xf]
    %v234 = vld [vmem:[%s1 + $0x358] sm:$0xf]
    %v235 = vld [vmem:[%s1 + $0x35c] sm:$0xf]
    %v236 = vld [vmem:[%s1 + $0x360] sm:$0xf]
    %v237 = vld [vmem:[%s1 + $0x364] sm:$0xf]
    %v238 = vld [vmem:[%s1 + $0x368] sm:$0xf]
    %v239 = vld [vmem:[%s1 + $0x36c] sm:$0xf]
    %v240 = vld [vmem:[%s1 + $0x370] sm:$0xf]
    %v241 = vld [vmem:[%s1 + $0x374] sm:$0xf]
    %v242 = vld [vmem:[%s1 + $0x378] sm:$0xf]
    %v243 = vld [vmem:[%s1 + $0x37c] sm:$0xf]
    %v244 = vld [vmem:[%s1 + $0x380] sm:$0xf]
    %v245 = vld [vmem:[%s1 + $0x384] sm:$0xf]
    %v246 = vld [vmem:[%s1 + $0x388] sm:$0xf]
    %v247 = vld [vmem:[%s1 + $0x38c] sm:$0xf]
    %v248 = vld [vmem:[%s1 + $0x390] sm:$0xf]
    %v249 = vld [vmem:[%s1 + $0x394] sm:$0xf]
    %v250 = vld [vmem:[%s1 + $0x398] sm:$0xf]
    %v251 = vld [vmem:[%s1 + $0x39c] sm:$0xf]
    %v252 = vld [vmem:[%s1 + $0x3a0] sm:$0xf]
    %v253 = vld [vmem:[%s1 + $0x3a4] sm:$0xf]
    %v254 = vld [vmem:[%s1 + $0x3a8] sm:$0xf]
    %v255 = vld [vmem:[%s1 + $0x3ac] sm:$0xf]
    %v256 = vld [vmem:[%s1 + $0x3b0] sm:$0xf]
    %v257 = vld [vmem:[%s1 + $0x3b4] sm:$0xf]
    %v258 = vld [vmem:[%s1 + $0x3b8] sm:$0xf]
    %v259 = vld [vmem:[%s1 + $0x3bc] sm:$0xf]
    %v260 = vld [vmem:[%s1 + $0x3c0] sm:$0xf]
    %v261 = vld [vmem:[%s1 + $0x3c4] sm:$0xf]
    %v262 = vld [vmem:[%s1 + $0x3c8] sm:$0xf]
    %v263 = vld [vmem:[%s1 + $0x3cc] sm:$0xf]
    %v264 = vld [vmem:[%s1 + $0x3d0] sm:$0xf]
    %v265 = vld [vmem:[%s1 + $0x3d4] sm:$0xf]
    %v266 = vld [vmem:[%s1 + $0x3d8] sm:$0xf]
    %v267 = vld [vmem:[%s1 + $0x3dc] sm:$0xf]
    %v268 = vld [vmem:[%s1 + $0x3e0] sm:$0xf]
    %v269 = vld [vmem:[%s1 + $0x3e4] sm:$0xf]
    %v270 = vld [vmem:[%s1 + $0x3e8] sm:$0xf]
    %v271 = vld [vmem:[%s1 + $0x3ec] sm:$0xf]
    %v272 = vld [vmem:[%s1 + $0x3f0] sm:$0xf]
    %v273 = vld [vmem:[%s1 + $0x3f4] sm:$0xf]
    %v274 = vld [vmem:[%s1 + $0x3f8] sm:$0xf]
    %v275 = vld [vmem:[%s1 + $0x3fc] sm:$0xf]
    %v276 = vld [vmem:[%s1 + $0x400] sm:$0xf]
    %v277 = vld [vmem:[%s1 + $0x404] sm:$0xf]
    %v278 = vld [vmem:[%s1 + $0x408] sm:$0xf]
    %v279 = vld [vmem:[%s1 + $0x40c] sm:$0xf]
    %v280 = vld [vmem:[%s1 + $0x410] sm:$0xf]
    %v281 = vld [vmem:[%s1 + $0x414] sm:$0xf]
    %v282 = vld [vmem:[%s1 + $0x418] sm:$0xf]
    %v283 = vld [vmem:[%s1 + $0x41c] sm:$0xf]
    %v284 = vld [vmem:[%s1 + $0x420] sm:$0xf]
    %v285 = vld [vmem:[%s1 + $0x424] sm:$0xf]
    %v286 = vld [vmem:[%s1 + $0x428] sm:$0xf]
    %v287 = vld [vmem:[%s1 + $0x42c] sm:$0xf]
    %v288 = vld [vmem:[%s1 + $0x430] sm:$0xf]
    %v289 = vld [vmem:[%s1 + $0x434] sm:$0xf]
    %v290 = vld [vmem:[%s1 + $0x438] sm:$0xf]
    %v291 = vld [vmem:[%s1 + $0x43c] sm:$0xf]
    %v292 = vld [vmem:[%s1 + $0x440] sm:$0xf]
    %v293 = vld [vmem:[%s1 + $0x444] sm:$0xf]
    %v294 = vld [vmem:[%s1 + $0x448] sm:$0xf]
    %v295 = vld [vmem:[%s1 + $0x44c] sm:$0xf]
    %v296 = vld [vmem:[%s1 + $0x450] sm:$0xf]
    %v297 = vld [vmem:[%s1 + $0x454] sm:$0xf]
    %v298 = vld [vmem:[%s1 + $0x458] sm:$0xf]
    %v299 = vld [vmem:[%s1 + $0x45c] sm:$0xf]
    %v300 = vld [vmem:[%s1 + $0x460] sm:$0xf]
    %v301 = vld [vmem:[%s1 + $0x464] sm:$0xf]
    %v302 = vld [vmem:[%s1 + $0x468] sm:$0xf]
    %v303 = vld [vmem:[%s1 + $0x46c] sm:$0xf]
    %v304 = vld [vmem:[%s1 + $0x470] sm:$0xf]
    %v305 = vld [vmem:[%s1 + $0x474] sm:$0xf]
    %v306 = vld [vmem:[%s1 + $0x478] sm:$0xf]
    %v307 = vld [vmem:[%s1 + $0x47c] sm:$0xf]
    %v308 = vld [vmem:[%s1 + $0x480] sm:$0xf]
    %v309 = vld [vmem:[%s1 + $0x484] sm:$0xf]
    %v310 = vld [vmem:[%s1 + $0x488] sm:$0xf]
    %v311 = vld [vmem:[%s1 + $0x48c] sm:$0xf]
    %v312 = vld [vmem:[%s1 + $0x490] sm:$0xf]
    %v313 = vld [vmem:[%s1 + $0x494] sm:$0xf]
    %v314 = vld [vmem:[%s1 + $0x498] sm:$0xf]
    %v315 = vld [vmem:[%s1 + $0x49c] sm:$0xf]
    %v316 = vld [vmem:[%s1 + $0x4a0] sm:$0xf]
    %v317 = vld [vmem:[%s1 + $0x4a4] sm:$0xf]
    %v318 = vld [vmem:[%s1 + $0x4a8] sm:$0xf]
    %v319 = vld [vmem:[%s1 + $0x4ac] sm:$0xf]
    %v320 = vld [vmem:[%s1 + $0x4b0] sm:$0xf]
    %v321 = vld [vmem:[%s1 + $0x4b4] sm:$0xf]
    %v322 = vld [vmem:[%s1 + $0x4b8] sm:$0xf]
    %v323 = vld [vmem:[%s1 + $0x4bc] sm:$0xf]
    %v324 = vld [vmem:[%s1 + $0x4c0] sm:$0xf]
    %v325 = vld [vmem:[%s1 + $0x4c4] sm:$0xf]
    %v326 = vld [vmem:[%s1 + $0x4c8] sm:$0xf]
    %v327 = vld [vmem:[%s1 + $0x4cc] sm:$0xf]
    %v328 = vld [vmem:[%s1 + $0x4d0] sm:$0xf]
    %v329 = vld [vmem:[%s1 + $0x4d4] sm:$0xf]
    %v330 = vld [vmem:[%s1 + $0x4d8] sm:$0xf]
    %v331 = vld [vmem:[%s1 + $0x4dc] sm:$0xf]
    %v332 = vld [vmem:[%s1 + $0x4e0] sm:$0xf]
    %v333 = vld [vmem:[%s1 + $0x4e4] sm:$0xf]
    %v334 = vld [vmem:[%s1 + $0x4e8] sm:$0xf]
    %v335 = vld [vmem:[%s1 + $0x4ec] sm:$0xf]
    %v336 = vld [vmem:[%s1 + $0x4f0] sm:$0xf]
    %v337 = vld [vmem:[%s1 + $0x4f4] sm:$0xf]
    %v338 = vld [vmem:[%s1 + $0x4f8] sm:$0xf]
    %v339 = vld [vmem:[%s1 + $0x4fc] sm:$0xf]
    %v340 = vld [vmem:[%s1 + $0x500] sm:$0xf]
    %v341 = vld [vmem:[%s1 + $0x504] sm:$0xf]
    %v342 = vld [vmem:[%s1 + $0x508] sm:$0xf]
    %v343 = vld [vmem:[%s1 + $0x50c] sm:$0xf]
    %v344 = vld [vmem:[%s1 + $0x510] sm:$0xf]
    %v345 = vld [vmem:[%s1 + $0x514] sm:$0xf]
    %v346 = vld [vmem:[%s1 + $0x518] sm:$0xf]
    %v347 = vld [vmem:[%s1 + $0x51c] sm:$0xf]
    %v348 = vld [vmem:[%s1 + $0x520] sm:$0xf]
    %v349 = vld [vmem:[%s1 + $0x524] sm:$0xf]
    %v350 = vld [vmem:[%s1 + $0x528] sm:$0xf]
    %v351 = vld [vmem:[%s1 + $0x52c] sm:$0xf]
    %v352 = vld [vmem:[%s1 + $0x530] sm:$0xf]
    %v353 = vld [vmem:[%s1 + $0x534] sm:$0xf]
    %v354 = vld [vmem:[%s1 + $0x538] sm:$0xf]
    %v355 = vld [vmem:[%s1 + $0x53c] sm:$0xf]
    %v356 = vld [vmem:[%s1 + $0x540] sm:$0xf]
    %v357 = vld [vmem:[%s1 + $0x544] sm:$0xf]
    %v358 = vld [vmem:[%s1 + $0x548] sm:$0xf]
    %v359 = vld [vmem:[%s1 + $0x54c] sm:$0xf]
    %v360 = vld [vmem:[%s1 + $0x550] sm:$0xf]
    %v361 = vld [vmem:[%s1 + $0x554] sm:$0xf]
    %v362 = vld [vmem:[%s1 + $0x558] sm:$0xf]
    %v363 = vld [vmem:[%s1 + $0x55c] sm:$0xf]
    %v364 = vld [vmem:[%s1 + $0x560] sm:$0xf]
    %v365 = vld [vmem:[%s1 + $0x564] sm:$0xf]
    %v366 = vld [vmem:[%s1 + $0x568] sm:$0xf]
    %v367 = vld [vmem:[%s1 + $0x56c] sm:$0xf]
    %v368 = vld [vmem:[%s1 + $0x570] sm:$0xf]
    %v369 = vld [vmem:[%s1 + $0x574] sm:$0xf]
    %v370 = vld [vmem:[%s1 + $0x578] sm:$0xf]
    %v371 = vld [vmem:[%s1 + $0x57c] sm:$0xf]
    %v372 = vld [vmem:[%s1 + $0x580] sm:$0xf]
    %v373 = vld [vmem:[%s1 + $0x584] sm:$0xf]
    %v374 = vld [vmem:[%s1 + $0x588] sm:$0xf]
    %v375 = vld [vmem:[%s1 + $0x58c] sm:$0xf]
    %v376 = vld [vmem:[%s1 + $0x590] sm:$0xf]
    %v377 = vld [vmem:[%s1 + $0x594] sm:$0xf]
    %v378 = vld [vmem:[%s1 + $0x598] sm:$0xf]
    %v379 = vld [vmem:[%s1 + $0x59c] sm:$0xf]
    %v380 = vld [vmem:[%s1 + $0x5a0] sm:$0xf]
    %v381 = vld [vmem:[%s1 + $0x5a4] sm:$0xf]
    %v382 = vld [vmem:[%s1 + $0x5a8] sm:$0xf]
    %v383 = vld [vmem:[%s1 + $0x5ac] sm:$0xf]
    %v384 = vld [vmem:[%s1 + $0x5b0] sm:$0xf]
    %v385 = vld [vmem:[%s1 + $0x5b4] sm:$0xf]
    %v386 = vld [vmem:[%s1 + $0x5b8] sm:$0xf]
    %v387 = vld [vmem:[%s1 + $0x5bc] sm:$0xf]
    %v388 = vld [vmem:[%s1 + $0x5c0] sm:$0xf]
    %v389 = vld [vmem:[%s1 + $0x5c4] sm:$0xf]
    %v390 = vld [vmem:[%s1 + $0x5c8] sm:$0xf]
    %v391 = vld [vmem:[%s1 + $0x5cc] sm:$0xf]
    %v392 = vld [vmem:[%s1 + $0x5d0] sm:$0xf]
    %v393 = vld [vmem:[%s1 + $0x5d4] sm:$0xf]
    %v394 = vld [vmem:[%s1 + $0x5d8] sm:$0xf]
    %v395 = vld [vmem:[%s1 + $0x5dc] sm:$0xf]
    %v396 = vld [vmem:[%s1 + $0x5e0] sm:$0xf]
    %v397 = vld [vmem:[%s1 + $0x5e4] sm:$0xf]
    %v398 = vld [vmem:[%s1 + $0x5e8] sm:$0xf]
    %v399 = vld [vmem:[%s1 + $0x5ec] sm:$0xf]
    %v400 = vld [vmem:[%s1 + $0x5f0] sm:$0xf]
    %v401 = vld [vmem:[%s1 + $0x5f4] sm:$0xf]
    %v402 = vld [vmem:[%s1 + $0x5f8] sm:$0xf]
    %v403 = vld [vmem:[%s1 + $0x5fc] sm:$0xf]
    %v404 = vld [vmem:[%s1 + $0x600] sm:$0xf]
    %v405 = vld [vmem:[%s1 + $0x604] sm:$0xf]
    %v406 = vld [vmem:[%s1 + $0x608] sm:$0xf]
    %v407 = vld [vmem:[%s1 + $0x60c] sm:$0xf]
    %v408 = vld [vmem:[%s1 + $0x610] sm:$0xf]
    %v409 = vld [vmem:[%s1 + $0x614] sm:$0xf]
    %v410 = vld [vmem:[%s1 + $0x618] sm:$0xf]
    %v411 = vld [vmem:[%s1 + $0x61c] sm:$0xf]
    %v412 = vld [vmem:[%s1 + $0x620] sm:$0xf]
    %v413 = vld [vmem:[%s1 + $0x624] sm:$0xf]
    %v414 = vld [vmem:[%s1 + $0x628] sm:$0xf]
    %v415 = vld [vmem:[%s1 + $0x62c] sm:$0xf]
    %v416 = vld [vmem:[%s1 + $0x630] sm:$0xf]
    %v417 = vld [vmem:[%s1 + $0x634] sm:$0xf]
    %v418 = vld [vmem:[%s1 + $0x638] sm:$0xf]
    %v419 = vld [vmem:[%s1 + $0x63c] sm:$0xf]
    %v420 = vld [vmem:[%s1 + $0x640] sm:$0xf]
    %v421 = vld [vmem:[%s1 + $0x644] sm:$0xf]
    %v422 = vld [vmem:[%s1 + $0x648] sm:$0xf]
    %v423 = vld [vmem:[%s1 + $0x64c] sm:$0xf]
    %v424 = vld [vmem:[%s1 + $0x650] sm:$0xf]
    %v425 = vld [vmem:[%s1 + $0x654] sm:$0xf]
    %v426 = vld [vmem:[%s1 + $0x658] sm:$0xf]
    %v427 = vld [vmem:[%s1 + $0x65c] sm:$0xf]
    %v428 = vld [vmem:[%s1 + $0x660] sm:$0xf]
    %v429 = vld [vmem:[%s1 + $0x664] sm:$0xf]
    %v430 = vld [vmem:[%s1 + $0x668] sm:$0xf]
    %v431 = vld [vmem:[%s1 + $0x66c] sm:$0xf]
    %v432 = vld [vmem:[%s1 + $0x670] sm:$0xf]
    %v433 = vld [vmem:[%s1 + $0x674] sm:$0xf]
    %v434 = vld [vmem:[%s1 + $0x678] sm:$0xf]
    %v435 = vld [vmem:[%s1 + $0x67c] sm:$0xf]
    %v436 = vld [vmem:[%s1 + $0x680] sm:$0xf]
    %v437 = vld [vmem:[%s1 + $0x684] sm:$0xf]
    %v438 = vld [vmem:[%s1 + $0x688] sm:$0xf]
    %v439 = vld [vmem:[%s1 + $0x68c] sm:$0xf]
    %v440 = vld [vmem:[%s1 + $0x690] sm:$0xf]
    %v441 = vld [vmem:[%s1 + $0x694] sm:$0xf]
    %v442 = vld [vmem:[%s1 + $0x698] sm:$0xf]
    %v443 = vld [vmem:[%s1 + $0x69c] sm:$0xf]
    %v444 = vld [vmem:[%s1 + $0x6a0] sm:$0xf]
    %v445 = vld [vmem:[%s1 + $0x6a4] sm:$0xf]
    %v446 = vld [vmem:[%s1 + $0x6a8] sm:$0xf]
    %v447 = vld [vmem:[%s1 + $0x6ac] sm:$0xf]
    %v448 = vld [vmem:[%s1 + $0x6b0] sm:$0xf]
    %v449 = vld [vmem:[%s1 + $0x6b4] sm:$0xf]
    %v450 = vld [vmem:[%s1 + $0x6b8] sm:$0xf]
    %v451 = vld [vmem:[%s1 + $0x6bc] sm:$0xf]
    %v452 = vld [vmem:[%s1 + $0x6c0] sm:$0xf]
    %v453 = vld [vmem:[%s1 + $0x6c4] sm:$0xf]
    %v454 = vld [vmem:[%s1 + $0x6c8] sm:$0xf]
    %v455 = vld [vmem:[%s1 + $0x6cc] sm:$0xf]
    %v456 = vld [vmem:[%s1 + $0x6d0] sm:$0xf]
    %v457 = vld [vmem:[%s1 + $0x6d4] sm:$0xf]
    %v458 = vld [vmem:[%s1 + $0x6d8] sm:$0xf]
    %v459 = vld [vmem:[%s1 + $0x6dc] sm:$0xf]
    %v460 = vld [vmem:[%s1 + $0x6e0] sm:$0xf]
    %v461 = vld [vmem:[%s1 + $0x6e4] sm:$0xf]
    %v462 = vld [vmem:[%s1 + $0x6e8] sm:$0xf]
    %v463 = vld [vmem:[%s1 + $0x6ec] sm:$0xf]
    %v464 = vld [vmem:[%s1 + $0x6f0] sm:$0xf]
    %v465 = vld [vmem:[%s1 + $0x6f4] sm:$0xf]
    %v466 = vld [vmem:[%s1 + $0x6f8] sm:$0xf]
    %v467 = vld [vmem:[%s1 + $0x6fc] sm:$0xf]
    %v468 = vld [vmem:[%s2] sm:$0x1]
    %v470 = vlaneseq
    %v471 = vshrl.u32 %v470, 7
    %v472 = vsub.s32 0, %v471
    %v473 = vrot.slane %v468, %v472
    %v479 = vcombine.high %v16, %v16
    %v481 = vunpack.c.l.s4 1966171168
    %v482 = vunpack.c.0.s8 %v481
    %v483 = vlaneseq
    %v484 = vshrl.u32 %v483, 7
    %v485 = vsub.s32 %v482, %v484
    %v486 = vrot.slane %v16, %v485
    %v488 = vunpack.c.l.s4 1966171168
    %v489 = vunpack.c.0.s8 %v488
    %v490 = vlaneseq
    %v491 = vshrl.u32 %v490, 7
    %v492 = vsub.s32 %v489, %v491
    %v493 = vrot.slane %v479, %v492
    %v494 = vcombine.high %v486, %v486
    %v495 = vcombine.high %v493, %v493
    %v497 = vunpack.c.l.s4 1966171168
    %v498 = vunpack.c.0.s8 %v497
    %v499 = vlaneseq
    %v500 = vshrl.u32 %v499, 7
    %v501 = vsub.s32 %v498, %v500
    %v502 = vrot.slane %v486, %v501
    %v504 = vunpack.c.l.s4 1966171168
    %v505 = vunpack.c.0.s8 %v504
    %v506 = vlaneseq
    %v507 = vshrl.u32 %v506, 7
    %v508 = vsub.s32 %v505, %v507
    %v509 = vrot.slane %v493, %v508
    %v511 = vunpack.c.l.s4 1966171168
    %v512 = vunpack.c.0.s8 %v511
    %v513 = vlaneseq
    %v514 = vshrl.u32 %v513, 7
    %v515 = vsub.s32 %v512, %v514
    %v516 = vrot.slane %v494, %v515
    %v518 = vunpack.c.l.s4 1966171168
    %v519 = vunpack.c.0.s8 %v518
    %v520 = vlaneseq
    %v521 = vshrl.u32 %v520, 7
    %v522 = vsub.s32 %v519, %v521
    %v523 = vrot.slane %v495, %v522
    %v524 = vcombine.high %v502, %v502
    %v525 = vcombine.high %v509, %v509
    %v526 = vcombine.high %v516, %v516
    %v527 = vcombine.high %v523, %v523
    %v528 = vcombine.high %v17, %v17
    %v530 = vunpack.c.l.s4 1966171168
    %v531 = vunpack.c.0.s8 %v530
    %v532 = vlaneseq
    %v533 = vshrl.u32 %v532, 7
    %v534 = vsub.s32 %v531, %v533
    %v535 = vrot.slane %v17, %v534
    %v537 = vunpack.c.l.s4 1966171168
    %v538 = vunpack.c.0.s8 %v537
    %v539 = vlaneseq
    %v540 = vshrl.u32 %v539, 7
    %v541 = vsub.s32 %v538, %v540
    %v542 = vrot.slane %v528, %v541
    %v543 = vcombine.high %v535, %v535
    %v544 = vcombine.high %v542, %v542
    %v546 = vunpack.c.l.s4 1966171168
    %v547 = vunpack.c.0.s8 %v546
    %v548 = vlaneseq
    %v549 = vshrl.u32 %v548, 7
    %v550 = vsub.s32 %v547, %v549
    %v551 = vrot.slane %v535, %v550
    %v553 = vunpack.c.l.s4 1966171168
    %v554 = vunpack.c.0.s8 %v553
    %v555 = vlaneseq
    %v556 = vshrl.u32 %v555, 7
    %v557 = vsub.s32 %v554, %v556
    %v558 = vrot.slane %v542, %v557
    %v560 = vunpack.c.l.s4 1966171168
    %v561 = vunpack.c.0.s8 %v560
    %v562 = vlaneseq
    %v563 = vshrl.u32 %v562, 7
    %v564 = vsub.s32 %v561, %v563
    %v565 = vrot.slane %v543, %v564
    %v567 = vunpack.c.l.s4 1966171168
    %v568 = vunpack.c.0.s8 %v567
    %v569 = vlaneseq
    %v570 = vshrl.u32 %v569, 7
    %v571 = vsub.s32 %v568, %v570
    %v572 = vrot.slane %v544, %v571
    %v573 = vcombine.high %v551, %v551
    %v574 = vcombine.high %v558, %v558
    %v575 = vcombine.high %v565, %v565
    %v576 = vcombine.high %v572, %v572
    %v577 = vcombine.high %v18, %v18
    %v579 = vunpack.c.l.s4 1966171168
    %v580 = vunpack.c.0.s8 %v579
    %v581 = vlaneseq
    %v582 = vshrl.u32 %v581, 7
    %v583 = vsub.s32 %v580, %v582
    %v584 = vrot.slane %v18, %v583
    %v586 = vunpack.c.l.s4 1966171168
    %v587 = vunpack.c.0.s8 %v586
    %v588 = vlaneseq
    %v589 = vshrl.u32 %v588, 7
    %v590 = vsub.s32 %v587, %v589
    %v591 = vrot.slane %v577, %v590
    %v592 = vcombine.high %v584, %v584
    %v593 = vcombine.high %v591, %v591
    %v595 = vunpack.c.l.s4 1966171168
    %v596 = vunpack.c.0.s8 %v595
    %v597 = vlaneseq
    %v598 = vshrl.u32 %v597, 7
    %v599 = vsub.s32 %v596, %v598
    %v600 = vrot.slane %v584, %v599
    %v602 = vunpack.c.l.s4 1966171168
    %v603 = vunpack.c.0.s8 %v602
    %v604 = vlaneseq
    %v605 = vshrl.u32 %v604, 7
    %v606 = vsub.s32 %v603, %v605
    %v607 = vrot.slane %v591, %v606
    %v609 = vunpack.c.l.s4 1966171168
    %v610 = vunpack.c.0.s8 %v609
    %v611 = vlaneseq
    %v612 = vshrl.u32 %v611, 7
    %v613 = vsub.s32 %v610, %v612
    %v614 = vrot.slane %v592, %v613
    %v616 = vunpack.c.l.s4 1966171168
    %v617 = vunpack.c.0.s8 %v616
    %v618 = vlaneseq
    %v619 = vshrl.u32 %v618, 7
    %v620 = vsub.s32 %v617, %v619
    %v621 = vrot.slane %v593, %v620
    %v622 = vcombine.high %v600, %v600
    %v623 = vcombine.high %v607, %v607
    %v624 = vcombine.high %v614, %v614
    %v625 = vcombine.high %v621, %v621
    %v627 = vunpack.c.l.s4 1966171168
    %v628 = vunpack.c.0.s8 %v627
    %v629 = vlaneseq
    %v630 = vshrl.u32 %v629, 7
    %v631 = vsub.s32 %v628, %v630
    %v632 = vrot.slane %v19, %v631
    %v633 = vcombine.high %v632, %v632
    %v635 = vunpack.c.l.s4 1966171168
    %v636 = vunpack.c.0.s8 %v635
    %v637 = vlaneseq
    %v638 = vshrl.u32 %v637, 7
    %v639 = vsub.s32 %v636, %v638
    %v640 = vrot.slane %v632, %v639
    %v642 = vunpack.c.l.s4 1966171168
    %v643 = vunpack.c.0.s8 %v642
    %v644 = vlaneseq
    %v645 = vshrl.u32 %v644, 7
    %v646 = vsub.s32 %v643, %v645
    %v647 = vrot.slane %v633, %v646
    %v648 = vcombine.high %v640, %v640
    %v649 = vcombine.high %v647, %v647
    %v1126 = vunpack.c.l.b16 %v20
    %v1127 = vunpack.c.l.b16 %v21
    %v1128 = vunpack.c.l.b16 %v22
    %v1129 = vunpack.c.l.b16 %v23
    %v1130 = vunpack.c.l.b16 %v24
    %v1131 = vunpack.c.l.b16 %v25
    %v1132 = vunpack.c.l.b16 %v26
    %v1133 = vunpack.c.l.b16 %v27
    %v1134 = vunpack.c.l.b16 %v28
    %v1135 = vunpack.c.l.b16 %v29
    %v1136 = vunpack.c.l.b16 %v30
    %v1137 = vunpack.c.l.b16 %v31
    %v1138 = vunpack.c.l.b16 %v32
    %v1139 = vunpack.c.l.b16 %v33
    %v1140 = vunpack.c.l.b16 %v34
    %v1141 = vunpack.c.l.b16 %v35
    %v1142 = vunpack.c.l.b16 %v36
    %v1143 = vunpack.c.l.b16 %v37
    %v1144 = vunpack.c.l.b16 %v38
    %v1145 = vunpack.c.l.b16 %v39
    %v1146 = vunpack.c.l.b16 %v40
    %v1147 = vunpack.c.l.b16 %v41
    %v1148 = vunpack.c.l.b16 %v42
    %v1149 = vunpack.c.l.b16 %v43
    %v1150 = vunpack.c.l.b16 %v44
    %v1151 = vunpack.c.l.b16 %v45
    %v1152 = vunpack.c.l.b16 %v46
    %v1153 = vunpack.c.l.b16 %v47
    %v1154 = vunpack.c.l.b16 %v48
    %v1155 = vunpack.c.l.b16 %v49
    %v1156 = vunpack.c.l.b16 %v50
    %v1157 = vunpack.c.l.b16 %v51
    %v1158 = vunpack.c.l.b16 %v52
    %v1159 = vunpack.c.l.b16 %v53
    %v1160 = vunpack.c.l.b16 %v54
    %v1161 = vunpack.c.l.b16 %v55
    %v1162 = vunpack.c.l.b16 %v56
    %v1163 = vunpack.c.l.b16 %v57
    %v1164 = vunpack.c.l.b16 %v58
    %v1165 = vunpack.c.l.b16 %v59
    %v1166 = vunpack.c.l.b16 %v60
    %v1167 = vunpack.c.l.b16 %v61
    %v1168 = vunpack.c.l.b16 %v62
    %v1169 = vunpack.c.l.b16 %v63
    %v1170 = vunpack.c.l.b16 %v64
    %v1171 = vunpack.c.l.b16 %v65
    %v1172 = vunpack.c.l.b16 %v66
    %v1173 = vunpack.c.l.b16 %v67
    %v1174 = vunpack.c.l.b16 %v68
    %v1175 = vunpack.c.l.b16 %v69
    %v1176 = vunpack.c.l.b16 %v70
    %v1177 = vunpack.c.l.b16 %v71
    %v1178 = vunpack.c.l.b16 %v72
    %v1179 = vunpack.c.l.b16 %v73
    %v1180 = vunpack.c.l.b16 %v74
    %v1181 = vunpack.c.l.b16 %v75
    %v1182 = vunpack.c.l.b16 %v76
    %v1183 = vunpack.c.l.b16 %v77
    %v1184 = vunpack.c.l.b16 %v78
    %v1185 = vunpack.c.l.b16 %v79
    %v1186 = vunpack.c.l.b16 %v80
    %v1187 = vunpack.c.l.b16 %v81
    %v1188 = vunpack.c.l.b16 %v82
    %v1189 = vunpack.c.l.b16 %v83
    %v1190 = vunpack.c.l.b16 %v84
    %v1191 = vunpack.c.l.b16 %v85
    %v1192 = vunpack.c.l.b16 %v86
    %v1193 = vunpack.c.l.b16 %v87
    %v1194 = vunpack.c.l.b16 %v88
    %v1195 = vunpack.c.l.b16 %v89
    %v1196 = vunpack.c.l.b16 %v90
    %v1197 = vunpack.c.l.b16 %v91
    %v1198 = vunpack.c.l.b16 %v92
    %v1199 = vunpack.c.l.b16 %v93
    %v1200 = vunpack.c.l.b16 %v94
    %v1201 = vunpack.c.l.b16 %v95
    %v1202 = vunpack.c.l.b16 %v96
    %v1203 = vunpack.c.l.b16 %v97
    %v1204 = vunpack.c.l.b16 %v98
    %v1205 = vunpack.c.l.b16 %v99
    %v1206 = vunpack.c.l.b16 %v100
    %v1207 = vunpack.c.l.b16 %v101
    %v1208 = vunpack.c.l.b16 %v102
    %v1209 = vunpack.c.l.b16 %v103
    %v1210 = vunpack.c.l.b16 %v104
    %v1211 = vunpack.c.l.b16 %v105
    %v1212 = vunpack.c.l.b16 %v106
    %v1213 = vunpack.c.l.b16 %v107
    %v1214 = vunpack.c.l.b16 %v108
    %v1215 = vunpack.c.l.b16 %v109
    %v1216 = vunpack.c.l.b16 %v110
    %v1217 = vunpack.c.l.b16 %v111
    %v1218 = vunpack.c.l.b16 %v112
    %v1219 = vunpack.c.l.b16 %v113
    %v1220 = vunpack.c.l.b16 %v114
    %v1221 = vunpack.c.l.b16 %v115
    %v1222 = vunpack.c.l.b16 %v116
    %v1223 = vunpack.c.l.b16 %v117
    %v1224 = vunpack.c.l.b16 %v118
    %v1225 = vunpack.c.l.b16 %v119
    %v1226 = vunpack.c.l.b16 %v120
    %v1227 = vunpack.c.l.b16 %v121
    %v1228 = vunpack.c.l.b16 %v122
    %v1229 = vunpack.c.l.b16 %v123
    %v1230 = vunpack.c.l.b16 %v124
    %v1231 = vunpack.c.l.b16 %v125
    %v1232 = vunpack.c.l.b16 %v126
    %v1233 = vunpack.c.l.b16 %v127
    %v1234 = vunpack.c.l.b16 %v128
    %v1235 = vunpack.c.l.b16 %v129
    %v1236 = vunpack.c.l.b16 %v130
    %v1237 = vunpack.c.l.b16 %v131
    %v1238 = vunpack.c.l.b16 %v132
    %v1239 = vunpack.c.l.b16 %v133
    %v1240 = vunpack.c.l.b16 %v134
    %v1241 = vunpack.c.l.b16 %v135
    %v1242 = vunpack.c.l.b16 %v136
    %v1243 = vunpack.c.l.b16 %v137
    %v1244 = vunpack.c.l.b16 %v138
    %v1245 = vunpack.c.l.b16 %v139
    %v1246 = vunpack.c.l.b16 %v140
    %v1247 = vunpack.c.l.b16 %v141
    %v1248 = vunpack.c.l.b16 %v142
    %v1249 = vunpack.c.l.b16 %v143
    %v1250 = vunpack.c.l.b16 %v144
    %v1251 = vunpack.c.l.b16 %v145
    %v1252 = vunpack.c.l.b16 %v146
    %v1253 = vunpack.c.l.b16 %v147
    %v1254 = vunpack.c.l.b16 %v148
    %v1255 = vunpack.c.l.b16 %v149
    %v1256 = vunpack.c.l.b16 %v150
    %v1257 = vunpack.c.l.b16 %v151
    %v1258 = vunpack.c.l.b16 %v152
    %v1259 = vunpack.c.l.b16 %v153
    %v1260 = vunpack.c.l.b16 %v154
    %v1261 = vunpack.c.l.b16 %v155
    %v1262 = vunpack.c.l.b16 %v156
    %v1263 = vunpack.c.l.b16 %v157
    %v1264 = vunpack.c.l.b16 %v158
    %v1265 = vunpack.c.l.b16 %v159
    %v1266 = vunpack.c.l.b16 %v160
    %v1267 = vunpack.c.l.b16 %v161
    %v1268 = vunpack.c.l.b16 %v162
    %v1269 = vunpack.c.l.b16 %v163
    %v1270 = vunpack.c.l.b16 %v164
    %v1271 = vunpack.c.l.b16 %v165
    %v1272 = vunpack.c.l.b16 %v166
    %v1273 = vunpack.c.l.b16 %v167
    %v1274 = vunpack.c.l.b16 %v168
    %v1275 = vunpack.c.l.b16 %v169
    %v1276 = vunpack.c.l.b16 %v170
    %v1277 = vunpack.c.l.b16 %v171
    %v1278 = vunpack.c.l.b16 %v172
    %v1279 = vunpack.c.l.b16 %v173
    %v1280 = vunpack.c.l.b16 %v174
    %v1281 = vunpack.c.l.b16 %v175
    %v1282 = vunpack.c.l.b16 %v176
    %v1283 = vunpack.c.l.b16 %v177
    %v1284 = vunpack.c.l.b16 %v178
    %v1285 = vunpack.c.l.b16 %v179
    %v1286 = vunpack.c.l.b16 %v180
    %v1287 = vunpack.c.l.b16 %v181
    %v1288 = vunpack.c.l.b16 %v182
    %v1289 = vunpack.c.l.b16 %v183
    %v1290 = vunpack.c.l.b16 %v184
    %v1291 = vunpack.c.l.b16 %v185
    %v1292 = vunpack.c.l.b16 %v186
    %v1293 = vunpack.c.l.b16 %v187
    %v1294 = vunpack.c.l.b16 %v188
    %v1295 = vunpack.c.l.b16 %v189
    %v1296 = vunpack.c.l.b16 %v190
    %v1297 = vunpack.c.l.b16 %v191
    %v1298 = vunpack.c.l.b16 %v192
    %v1299 = vunpack.c.l.b16 %v193
    %v1300 = vunpack.c.l.b16 %v194
    %v1301 = vunpack.c.l.b16 %v195
    %v1302 = vunpack.c.l.b16 %v196
    %v1303 = vunpack.c.l.b16 %v197
    %v1304 = vunpack.c.l.b16 %v198
    %v1305 = vunpack.c.l.b16 %v199
    %v1306 = vunpack.c.l.b16 %v200
    %v1307 = vunpack.c.l.b16 %v201
    %v1308 = vunpack.c.l.b16 %v202
    %v1309 = vunpack.c.l.b16 %v203
    %v1310 = vunpack.c.l.b16 %v204
    %v1311 = vunpack.c.l.b16 %v205
    %v1312 = vunpack.c.l.b16 %v206
    %v1313 = vunpack.c.l.b16 %v207
    %v1314 = vunpack.c.l.b16 %v208
    %v1315 = vunpack.c.l.b16 %v209
    %v1316 = vunpack.c.l.b16 %v210
    %v1317 = vunpack.c.l.b16 %v211
    %v1318 = vunpack.c.l.b16 %v212
    %v1319 = vunpack.c.l.b16 %v213
    %v1320 = vunpack.c.l.b16 %v214
    %v1321 = vunpack.c.l.b16 %v215
    %v1322 = vunpack.c.l.b16 %v216
    %v1323 = vunpack.c.l.b16 %v217
    %v1324 = vunpack.c.l.b16 %v218
    %v1325 = vunpack.c.l.b16 %v219
    %v1326 = vunpack.c.l.b16 %v220
    %v1327 = vunpack.c.l.b16 %v221
    %v1328 = vunpack.c.l.b16 %v222
    %v1329 = vunpack.c.l.b16 %v223
    %v1330 = vunpack.c.l.b16 %v224
    %v1331 = vunpack.c.l.b16 %v225
    %v1332 = vunpack.c.l.b16 %v226
    %v1333 = vunpack.c.l.b16 %v227
    %v1334 = vunpack.c.l.b16 %v228
    %v1335 = vunpack.c.l.b16 %v229
    %v1336 = vunpack.c.l.b16 %v230
    %v1337 = vunpack.c.l.b16 %v231
    %v1338 = vunpack.c.l.b16 %v232
    %v1339 = vunpack.c.l.b16 %v233
    %v1340 = vunpack.c.l.b16 %v234
    %v1341 = vunpack.c.l.b16 %v235
    %v1342 = vunpack.c.l.b16 %v236
    %v1343 = vunpack.c.l.b16 %v237
    %v1344 = vunpack.c.l.b16 %v238
    %v1345 = vunpack.c.l.b16 %v239
    %v1346 = vunpack.c.l.b16 %v240
    %v1347 = vunpack.c.l.b16 %v241
    %v1348 = vunpack.c.l.b16 %v242
    %v1349 = vunpack.c.l.b16 %v243
    %v1350 = vunpack.c.l.b16 %v244
    %v1351 = vunpack.c.l.b16 %v245
    %v1352 = vunpack.c.l.b16 %v246
    %v1353 = vunpack.c.l.b16 %v247
    %v1354 = vunpack.c.l.b16 %v248
    %v1355 = vunpack.c.l.b16 %v249
    %v1356 = vunpack.c.l.b16 %v250
    %v1357 = vunpack.c.l.b16 %v251
    %v1358 = vunpack.c.l.b16 %v252
    %v1359 = vunpack.c.l.b16 %v253
    %v1360 = vunpack.c.l.b16 %v254
    %v1361 = vunpack.c.l.b16 %v255
    %v1362 = vunpack.c.l.b16 %v256
    %v1363 = vunpack.c.l.b16 %v257
    %v1364 = vunpack.c.l.b16 %v258
    %v1365 = vunpack.c.l.b16 %v259
    %v1366 = vunpack.c.l.b16 %v260
    %v1367 = vunpack.c.l.b16 %v261
    %v1368 = vunpack.c.l.b16 %v262
    %v1369 = vunpack.c.l.b16 %v263
    %v1370 = vunpack.c.l.b16 %v264
    %v1371 = vunpack.c.l.b16 %v265
    %v1372 = vunpack.c.l.b16 %v266
    %v1373 = vunpack.c.l.b16 %v267
    %v1374 = vunpack.c.l.b16 %v268
    %v1375 = vunpack.c.l.b16 %v269
    %v1376 = vunpack.c.l.b16 %v270
    %v1377 = vunpack.c.l.b16 %v271
    %v1378 = vunpack.c.l.b16 %v272
    %v1379 = vunpack.c.l.b16 %v273
    %v1380 = vunpack.c.l.b16 %v274
    %v1381 = vunpack.c.l.b16 %v275
    %v1382 = vunpack.c.l.b16 %v276
    %v1383 = vunpack.c.l.b16 %v277
    %v1384 = vunpack.c.l.b16 %v278
    %v1385 = vunpack.c.l.b16 %v279
    %v1386 = vunpack.c.l.b16 %v280
    %v1387 = vunpack.c.l.b16 %v281
    %v1388 = vunpack.c.l.b16 %v282
    %v1389 = vunpack.c.l.b16 %v283
    %v1390 = vunpack.c.l.b16 %v284
    %v1391 = vunpack.c.l.b16 %v285
    %v1392 = vunpack.c.l.b16 %v286
    %v1393 = vunpack.c.l.b16 %v287
    %v1394 = vunpack.c.l.b16 %v288
    %v1395 = vunpack.c.l.b16 %v289
    %v1396 = vunpack.c.l.b16 %v290
    %v1397 = vunpack.c.l.b16 %v291
    %v1398 = vunpack.c.l.b16 %v292
    %v1399 = vunpack.c.l.b16 %v293
    %v1400 = vunpack.c.l.b16 %v294
    %v1401 = vunpack.c.l.b16 %v295
    %v1402 = vunpack.c.l.b16 %v296
    %v1403 = vunpack.c.l.b16 %v297
    %v1404 = vunpack.c.l.b16 %v298
    %v1405 = vunpack.c.l.b16 %v299
    %v1406 = vunpack.c.l.b16 %v300
    %v1407 = vunpack.c.l.b16 %v301
    %v1408 = vunpack.c.l.b16 %v302
    %v1409 = vunpack.c.l.b16 %v303
    %v1410 = vunpack.c.l.b16 %v304
    %v1411 = vunpack.c.l.b16 %v305
    %v1412 = vunpack.c.l.b16 %v306
    %v1413 = vunpack.c.l.b16 %v307
    %v1414 = vunpack.c.l.b16 %v308
    %v1415 = vunpack.c.l.b16 %v309
    %v1416 = vunpack.c.l.b16 %v310
    %v1417 = vunpack.c.l.b16 %v311
    %v1418 = vunpack.c.l.b16 %v312
    %v1419 = vunpack.c.l.b16 %v313
    %v1420 = vunpack.c.l.b16 %v314
    %v1421 = vunpack.c.l.b16 %v315
    %v1422 = vunpack.c.l.b16 %v316
    %v1423 = vunpack.c.l.b16 %v317
    %v1424 = vunpack.c.l.b16 %v318
    %v1425 = vunpack.c.l.b16 %v319
    %v1426 = vunpack.c.l.b16 %v320
    %v1427 = vunpack.c.l.b16 %v321
    %v1428 = vunpack.c.l.b16 %v322
    %v1429 = vunpack.c.l.b16 %v323
    %v1430 = vunpack.c.l.b16 %v324
    %v1431 = vunpack.c.l.b16 %v325
    %v1432 = vunpack.c.l.b16 %v326
    %v1433 = vunpack.c.l.b16 %v327
    %v1434 = vunpack.c.l.b16 %v328
    %v1435 = vunpack.c.l.b16 %v329
    %v1436 = vunpack.c.l.b16 %v330
    %v1437 = vunpack.c.l.b16 %v331
    %v1438 = vunpack.c.l.b16 %v332
    %v1439 = vunpack.c.l.b16 %v333
    %v1440 = vunpack.c.l.b16 %v334
    %v1441 = vunpack.c.l.b16 %v335
    %v1442 = vunpack.c.l.b16 %v336
    %v1443 = vunpack.c.l.b16 %v337
    %v1444 = vunpack.c.l.b16 %v338
    %v1445 = vunpack.c.l.b16 %v339
    %v1446 = vunpack.c.l.b16 %v340
    %v1447 = vunpack.c.l.b16 %v341
    %v1448 = vunpack.c.l.b16 %v342
    %v1449 = vunpack.c.l.b16 %v343
    %v1450 = vunpack.c.l.b16 %v344
    %v1451 = vunpack.c.l.b16 %v345
    %v1452 = vunpack.c.l.b16 %v346
    %v1453 = vunpack.c.l.b16 %v347
    %v1454 = vunpack.c.l.b16 %v348
    %v1455 = vunpack.c.l.b16 %v349
    %v1456 = vunpack.c.l.b16 %v350
    %v1457 = vunpack.c.l.b16 %v351
    %v1458 = vunpack.c.l.b16 %v352
    %v1459 = vunpack.c.l.b16 %v353
    %v1460 = vunpack.c.l.b16 %v354
    %v1461 = vunpack.c.l.b16 %v355
    %v1462 = vunpack.c.l.b16 %v356
    %v1463 = vunpack.c.l.b16 %v357
    %v1464 = vunpack.c.l.b16 %v358
    %v1465 = vunpack.c.l.b16 %v359
    %v1466 = vunpack.c.l.b16 %v360
    %v1467 = vunpack.c.l.b16 %v361
    %v1468 = vunpack.c.l.b16 %v362
    %v1469 = vunpack.c.l.b16 %v363
    %v1470 = vunpack.c.l.b16 %v364
    %v1471 = vunpack.c.l.b16 %v365
    %v1472 = vunpack.c.l.b16 %v366
    %v1473 = vunpack.c.l.b16 %v367
    %v1474 = vunpack.c.l.b16 %v368
    %v1475 = vunpack.c.l.b16 %v369
    %v1476 = vunpack.c.l.b16 %v370
    %v1477 = vunpack.c.l.b16 %v371
    %v1478 = vunpack.c.l.b16 %v372
    %v1479 = vunpack.c.l.b16 %v373
    %v1480 = vunpack.c.l.b16 %v374
    %v1481 = vunpack.c.l.b16 %v375
    %v1482 = vunpack.c.l.b16 %v376
    %v1483 = vunpack.c.l.b16 %v377
    %v1484 = vunpack.c.l.b16 %v378
    %v1485 = vunpack.c.l.b16 %v379
    %v1486 = vunpack.c.l.b16 %v380
    %v1487 = vunpack.c.l.b16 %v381
    %v1488 = vunpack.c.l.b16 %v382
    %v1489 = vunpack.c.l.b16 %v383
    %v1490 = vunpack.c.l.b16 %v384
    %v1491 = vunpack.c.l.b16 %v385
    %v1492 = vunpack.c.l.b16 %v386
    %v1493 = vunpack.c.l.b16 %v387
    %v1494 = vunpack.c.l.b16 %v388
    %v1495 = vunpack.c.l.b16 %v389
    %v1496 = vunpack.c.l.b16 %v390
    %v1497 = vunpack.c.l.b16 %v391
    %v1498 = vunpack.c.l.b16 %v392
    %v1499 = vunpack.c.l.b16 %v393
    %v1500 = vunpack.c.l.b16 %v394
    %v1501 = vunpack.c.l.b16 %v395
    %v1502 = vunpack.c.l.b16 %v396
    %v1503 = vunpack.c.l.b16 %v397
    %v1504 = vunpack.c.l.b16 %v398
    %v1505 = vunpack.c.l.b16 %v399
    %v1506 = vunpack.c.l.b16 %v400
    %v1507 = vunpack.c.l.b16 %v401
    %v1508 = vunpack.c.l.b16 %v402
    %v1509 = vunpack.c.l.b16 %v403
    %v1510 = vunpack.c.l.b16 %v404
    %v1511 = vunpack.c.l.b16 %v405
    %v1512 = vunpack.c.l.b16 %v406
    %v1513 = vunpack.c.l.b16 %v407
    %v1514 = vunpack.c.l.b16 %v408
    %v1515 = vunpack.c.l.b16 %v409
    %v1516 = vunpack.c.l.b16 %v410
    %v1517 = vunpack.c.l.b16 %v411
    %v1518 = vunpack.c.l.b16 %v412
    %v1519 = vunpack.c.l.b16 %v413
    %v1520 = vunpack.c.l.b16 %v414
    %v1521 = vunpack.c.l.b16 %v415
    %v1522 = vunpack.c.l.b16 %v416
    %v1523 = vunpack.c.l.b16 %v417
    %v1524 = vunpack.c.l.b16 %v418
    %v1525 = vunpack.c.l.b16 %v419
    %v1526 = vunpack.c.l.b16 %v420
    %v1527 = vunpack.c.l.b16 %v421
    %v1528 = vunpack.c.l.b16 %v422
    %v1529 = vunpack.c.l.b16 %v423
    %v1530 = vunpack.c.l.b16 %v424
    %v1531 = vunpack.c.l.b16 %v425
    %v1532 = vunpack.c.l.b16 %v426
    %v1533 = vunpack.c.l.b16 %v427
    %v1534 = vunpack.c.l.b16 %v428
    %v1535 = vunpack.c.l.b16 %v429
    %v1536 = vunpack.c.l.b16 %v430
    %v1537 = vunpack.c.l.b16 %v431
    %v1538 = vunpack.c.l.b16 %v432
    %v1539 = vunpack.c.l.b16 %v433
    %v1540 = vunpack.c.l.b16 %v434
    %v1541 = vunpack.c.l.b16 %v435
    %v1542 = vunpack.c.l.b16 %v436
    %v1543 = vunpack.c.l.b16 %v437
    %v1544 = vunpack.c.l.b16 %v438
    %v1545 = vunpack.c.l.b16 %v439
    %v1546 = vunpack.c.l.b16 %v440
    %v1547 = vunpack.c.l.b16 %v441
    %v1548 = vunpack.c.l.b16 %v442
    %v1549 = vunpack.c.l.b16 %v443
    %v1550 = vunpack.c.l.b16 %v444
    %v1551 = vunpack.c.l.b16 %v445
    %v1552 = vunpack.c.l.b16 %v446
    %v1553 = vunpack.c.l.b16 %v447
    %v1554 = vunpack.c.l.b16 %v448
    %v1555 = vunpack.c.l.b16 %v449
    %v1556 = vunpack.c.l.b16 %v450
    %v1557 = vunpack.c.l.b16 %v451
    %v1558 = vunpack.c.l.b16 %v452
    %v1559 = vunpack.c.l.b16 %v453
    %v1560 = vunpack.c.l.b16 %v454
    %v1561 = vunpack.c.l.b16 %v455
    %v1562 = vunpack.c.l.b16 %v456
    %v1563 = vunpack.c.l.b16 %v457
    %v1564 = vunpack.c.l.b16 %v458
    %v1565 = vunpack.c.l.b16 %v459
    %v1566 = vunpack.c.l.b16 %v460
    %v1567 = vunpack.c.l.b16 %v461
    %v1568 = vunpack.c.l.b16 %v462
    %v1569 = vunpack.c.l.b16 %v463
    %v1570 = vunpack.c.l.b16 %v464
    %v1571 = vunpack.c.l.b16 %v465
    %v1572 = vunpack.c.l.b16 %v466
    %v1573 = vunpack.c.l.b16 %v467
    %v1574 = vpack.c.b16 %v1127, %v1126
    %v1575 = vpack.c.b16 %v1129, %v1128
    %v1576 = vpack.c.b16 %v1131, %v1130
    %v1577 = vpack.c.b16 %v1133, %v1132
    %v1578 = vpack.c.b16 %v1135, %v1134
    %v1579 = vpack.c.b16 %v1137, %v1136
    %v1580 = vpack.c.b16 %v1139, %v1138
    %v1581 = vpack.c.b16 %v1141, %v1140
    %v1582 = vpack.c.b16 %v1143, %v1142
    %v1583 = vpack.c.b16 %v1145, %v1144
    %v1584 = vpack.c.b16 %v1147, %v1146
    %v1585 = vpack.c.b16 %v1149, %v1148
    %v1586 = vpack.c.b16 %v1151, %v1150
    %v1587 = vpack.c.b16 %v1153, %v1152
    %v1588 = vpack.c.b16 %v1155, %v1154
    %v1589 = vpack.c.b16 %v1157, %v1156
    %v1590 = vpack.c.b16 %v1159, %v1158
    %v1591 = vpack.c.b16 %v1161, %v1160
    %v1592 = vpack.c.b16 %v1163, %v1162
    %v1593 = vpack.c.b16 %v1165, %v1164
    %v1594 = vpack.c.b16 %v1167, %v1166
    %v1595 = vpack.c.b16 %v1169, %v1168
    %v1596 = vpack.c.b16 %v1171, %v1170
    %v1597 = vpack.c.b16 %v1173, %v1172
    %v1598 = vpack.c.b16 %v1175, %v1174
    %v1599 = vpack.c.b16 %v1177, %v1176
    %v1600 = vpack.c.b16 %v1179, %v1178
    %v1601 = vpack.c.b16 %v1181, %v1180
    %v1602 = vpack.c.b16 %v1183, %v1182
    %v1603 = vpack.c.b16 %v1185, %v1184
    %v1604 = vpack.c.b16 %v1187, %v1186
    %v1605 = vpack.c.b16 %v1189, %v1188
    %v1606 = vpack.c.b16 %v1191, %v1190
    %v1607 = vpack.c.b16 %v1193, %v1192
    %v1608 = vpack.c.b16 %v1195, %v1194
    %v1609 = vpack.c.b16 %v1197, %v1196
    %v1610 = vpack.c.b16 %v1199, %v1198
    %v1611 = vpack.c.b16 %v1201, %v1200
    %v1612 = vpack.c.b16 %v1203, %v1202
    %v1613 = vpack.c.b16 %v1205, %v1204
    %v1614 = vpack.c.b16 %v1207, %v1206
    %v1615 = vpack.c.b16 %v1209, %v1208
    %v1616 = vpack.c.b16 %v1211, %v1210
    %v1617 = vpack.c.b16 %v1213, %v1212
    %v1618 = vpack.c.b16 %v1215, %v1214
    %v1619 = vpack.c.b16 %v1217, %v1216
    %v1620 = vpack.c.b16 %v1219, %v1218
    %v1621 = vpack.c.b16 %v1221, %v1220
    %v1622 = vpack.c.b16 %v1223, %v1222
    %v1623 = vpack.c.b16 %v1225, %v1224
    %v1624 = vpack.c.b16 %v1227, %v1226
    %v1625 = vpack.c.b16 %v1229, %v1228
    %v1626 = vpack.c.b16 %v1231, %v1230
    %v1627 = vpack.c.b16 %v1233, %v1232
    %v1628 = vpack.c.b16 %v1235, %v1234
    %v1629 = vpack.c.b16 %v1237, %v1236
    %v1630 = vpack.c.b16 %v1239, %v1238
    %v1631 = vpack.c.b16 %v1241, %v1240
    %v1632 = vpack.c.b16 %v1243, %v1242
    %v1633 = vpack.c.b16 %v1245, %v1244
    %v1634 = vpack.c.b16 %v1247, %v1246
    %v1635 = vpack.c.b16 %v1249, %v1248
    %v1636 = vpack.c.b16 %v1251, %v1250
    %v1637 = vpack.c.b16 %v1253, %v1252
    %v1638 = vpack.c.b16 %v1255, %v1254
    %v1639 = vpack.c.b16 %v1257, %v1256
    %v1640 = vpack.c.b16 %v1259, %v1258
    %v1641 = vpack.c.b16 %v1261, %v1260
    %v1642 = vpack.c.b16 %v1263, %v1262
    %v1643 = vpack.c.b16 %v1265, %v1264
    %v1644 = vpack.c.b16 %v1267, %v1266
    %v1645 = vpack.c.b16 %v1269, %v1268
    %v1646 = vpack.c.b16 %v1271, %v1270
    %v1647 = vpack.c.b16 %v1273, %v1272
    %v1648 = vpack.c.b16 %v1275, %v1274
    %v1649 = vpack.c.b16 %v1277, %v1276
    %v1650 = vpack.c.b16 %v1279, %v1278
    %v1651 = vpack.c.b16 %v1281, %v1280
    %v1652 = vpack.c.b16 %v1283, %v1282
    %v1653 = vpack.c.b16 %v1285, %v1284
    %v1654 = vpack.c.b16 %v1287, %v1286
    %v1655 = vpack.c.b16 %v1289, %v1288
    %v1656 = vpack.c.b16 %v1291, %v1290
    %v1657 = vpack.c.b16 %v1293, %v1292
    %v1658 = vpack.c.b16 %v1295, %v1294
    %v1659 = vpack.c.b16 %v1297, %v1296
    %v1660 = vpack.c.b16 %v1299, %v1298
    %v1661 = vpack.c.b16 %v1301, %v1300
    %v1662 = vpack.c.b16 %v1303, %v1302
    %v1663 = vpack.c.b16 %v1305, %v1304
    %v1664 = vpack.c.b16 %v1307, %v1306
    %v1665 = vpack.c.b16 %v1309, %v1308
    %v1666 = vpack.c.b16 %v1311, %v1310
    %v1667 = vpack.c.b16 %v1313, %v1312
    %v1668 = vpack.c.b16 %v1315, %v1314
    %v1669 = vpack.c.b16 %v1317, %v1316
    %v1670 = vpack.c.b16 %v1319, %v1318
    %v1671 = vpack.c.b16 %v1321, %v1320
    %v1672 = vpack.c.b16 %v1323, %v1322
    %v1673 = vpack.c.b16 %v1325, %v1324
    %v1674 = vpack.c.b16 %v1327, %v1326
    %v1675 = vpack.c.b16 %v1329, %v1328
    %v1676 = vpack.c.b16 %v1331, %v1330
    %v1677 = vpack.c.b16 %v1333, %v1332
    %v1678 = vpack.c.b16 %v1335, %v1334
    %v1679 = vpack.c.b16 %v1337, %v1336
    %v1680 = vpack.c.b16 %v1339, %v1338
    %v1681 = vpack.c.b16 %v1341, %v1340
    %v1682 = vpack.c.b16 %v1343, %v1342
    %v1683 = vpack.c.b16 %v1345, %v1344
    %v1684 = vpack.c.b16 %v1347, %v1346
    %v1685 = vpack.c.b16 %v1349, %v1348
    %v1686 = vpack.c.b16 %v1351, %v1350
    %v1687 = vpack.c.b16 %v1353, %v1352
    %v1688 = vpack.c.b16 %v1355, %v1354
    %v1689 = vpack.c.b16 %v1357, %v1356
    %v1690 = vpack.c.b16 %v1359, %v1358
    %v1691 = vpack.c.b16 %v1361, %v1360
    %v1692 = vpack.c.b16 %v1363, %v1362
    %v1693 = vpack.c.b16 %v1365, %v1364
    %v1694 = vpack.c.b16 %v1367, %v1366
    %v1695 = vpack.c.b16 %v1369, %v1368
    %v1696 = vpack.c.b16 %v1371, %v1370
    %v1697 = vpack.c.b16 %v1373, %v1372
    %v1698 = vpack.c.b16 %v1375, %v1374
    %v1699 = vpack.c.b16 %v1377, %v1376
    %v1700 = vpack.c.b16 %v1379, %v1378
    %v1701 = vpack.c.b16 %v1381, %v1380
    %v1702 = vpack.c.b16 %v1383, %v1382
    %v1703 = vpack.c.b16 %v1385, %v1384
    %v1704 = vpack.c.b16 %v1387, %v1386
    %v1705 = vpack.c.b16 %v1389, %v1388
    %v1706 = vpack.c.b16 %v1391, %v1390
    %v1707 = vpack.c.b16 %v1393, %v1392
    %v1708 = vpack.c.b16 %v1395, %v1394
    %v1709 = vpack.c.b16 %v1397, %v1396
    %v1710 = vpack.c.b16 %v1399, %v1398
    %v1711 = vpack.c.b16 %v1401, %v1400
    %v1712 = vpack.c.b16 %v1403, %v1402
    %v1713 = vpack.c.b16 %v1405, %v1404
    %v1714 = vpack.c.b16 %v1407, %v1406
    %v1715 = vpack.c.b16 %v1409, %v1408
    %v1716 = vpack.c.b16 %v1411, %v1410
    %v1717 = vpack.c.b16 %v1413, %v1412
    %v1718 = vpack.c.b16 %v1415, %v1414
    %v1719 = vpack.c.b16 %v1417, %v1416
    %v1720 = vpack.c.b16 %v1419, %v1418
    %v1721 = vpack.c.b16 %v1421, %v1420
    %v1722 = vpack.c.b16 %v1423, %v1422
    %v1723 = vpack.c.b16 %v1425, %v1424
    %v1724 = vpack.c.b16 %v1427, %v1426
    %v1725 = vpack.c.b16 %v1429, %v1428
    %v1726 = vpack.c.b16 %v1431, %v1430
    %v1727 = vpack.c.b16 %v1433, %v1432
    %v1728 = vpack.c.b16 %v1435, %v1434
    %v1729 = vpack.c.b16 %v1437, %v1436
    %v1730 = vpack.c.b16 %v1439, %v1438
    %v1731 = vpack.c.b16 %v1441, %v1440
    %v1732 = vpack.c.b16 %v1443, %v1442
    %v1733 = vpack.c.b16 %v1445, %v1444
    %v1734 = vpack.c.b16 %v1447, %v1446
    %v1735 = vpack.c.b16 %v1449, %v1448
    %v1736 = vpack.c.b16 %v1451, %v1450
    %v1737 = vpack.c.b16 %v1453, %v1452
    %v1738 = vpack.c.b16 %v1455, %v1454
    %v1739 = vpack.c.b16 %v1457, %v1456
    %v1740 = vpack.c.b16 %v1459, %v1458
    %v1741 = vpack.c.b16 %v1461, %v1460
    %v1742 = vpack.c.b16 %v1463, %v1462
    %v1743 = vpack.c.b16 %v1465, %v1464
    %v1744 = vpack.c.b16 %v1467, %v1466
    %v1745 = vpack.c.b16 %v1469, %v1468
    %v1746 = vpack.c.b16 %v1471, %v1470
    %v1747 = vpack.c.b16 %v1473, %v1472
    %v1748 = vpack.c.b16 %v1475, %v1474
    %v1749 = vpack.c.b16 %v1477, %v1476
    %v1750 = vpack.c.b16 %v1479, %v1478
    %v1751 = vpack.c.b16 %v1481, %v1480
    %v1752 = vpack.c.b16 %v1483, %v1482
    %v1753 = vpack.c.b16 %v1485, %v1484
    %v1754 = vpack.c.b16 %v1487, %v1486
    %v1755 = vpack.c.b16 %v1489, %v1488
    %v1756 = vpack.c.b16 %v1491, %v1490
    %v1757 = vpack.c.b16 %v1493, %v1492
    %v1758 = vpack.c.b16 %v1495, %v1494
    %v1759 = vpack.c.b16 %v1497, %v1496
    %v1760 = vpack.c.b16 %v1499, %v1498
    %v1761 = vpack.c.b16 %v1501, %v1500
    %v1762 = vpack.c.b16 %v1503, %v1502
    %v1763 = vpack.c.b16 %v1505, %v1504
    %v1764 = vpack.c.b16 %v1507, %v1506
    %v1765 = vpack.c.b16 %v1509, %v1508
    %v1766 = vpack.c.b16 %v1511, %v1510
    %v1767 = vpack.c.b16 %v1513, %v1512
    %v1768 = vpack.c.b16 %v1515, %v1514
    %v1769 = vpack.c.b16 %v1517, %v1516
    %v1770 = vpack.c.b16 %v1519, %v1518
    %v1771 = vpack.c.b16 %v1521, %v1520
    %v1772 = vpack.c.b16 %v1523, %v1522
    %v1773 = vpack.c.b16 %v1525, %v1524
    %v1774 = vpack.c.b16 %v1527, %v1526
    %v1775 = vpack.c.b16 %v1529, %v1528
    %v1776 = vpack.c.b16 %v1531, %v1530
    %v1777 = vpack.c.b16 %v1533, %v1532
    %v1778 = vpack.c.b16 %v1535, %v1534
    %v1779 = vpack.c.b16 %v1537, %v1536
    %v1780 = vpack.c.b16 %v1539, %v1538
    %v1781 = vpack.c.b16 %v1541, %v1540
    %v1782 = vpack.c.b16 %v1543, %v1542
    %v1783 = vpack.c.b16 %v1545, %v1544
    %v1784 = vpack.c.b16 %v1547, %v1546
    %v1785 = vpack.c.b16 %v1549, %v1548
    %v1786 = vpack.c.b16 %v1551, %v1550
    %v1787 = vpack.c.b16 %v1553, %v1552
    %v1788 = vpack.c.b16 %v1555, %v1554
    %v1789 = vpack.c.b16 %v1557, %v1556
    %v1790 = vpack.c.b16 %v1559, %v1558
    %v1791 = vpack.c.b16 %v1561, %v1560
    %v1792 = vpack.c.b16 %v1563, %v1562
    %v1793 = vpack.c.b16 %v1565, %v1564
    %v1794 = vpack.c.b16 %v1567, %v1566
    %v1795 = vpack.c.b16 %v1569, %v1568
    %v1796 = vpack.c.b16 %v1571, %v1570
    %v1797 = vpack.c.b16 %v1573, %v1572
    %2022 = vmatprep.subr.bf16.mxu0 0
    %2023 = vmatpush1.bf16.msra.mxu0 %v1581
    %2024 = vmatprep.subr.bf16.mxu0 0
    %2025 = vmatpush1.bf16.msra.mxu0 %v1580
    %2026 = vmatprep.subr.bf16.mxu0 0
    %2027 = vmatpush1.bf16.msra.mxu0 %v1579
    %2028 = vmatprep.subr.bf16.mxu0 0
    %2029 = vmatpush1.bf16.msra.mxu0 %v1578
    %2030 = vmatprep.subr.bf16.mxu0 0
    %2031 = vmatpush1.bf16.msra.mxu0 %v1577
    %2032 = vmatprep.subr.bf16.mxu0 0
    %2033 = vmatpush1.bf16.msra.mxu0 %v1576
    %2034 = vmatprep.subr.bf16.mxu0 0
    %2035 = vmatpush1.bf16.msra.mxu0 %v1575
    %2036 = vmatprep.subr.bf16.mxu0 0
    %2037 = vmatpush1.bf16.msra.mxu0 %v1574
    %2038 = vmatprep.subr.bf16.mxu0 0
    %2039 = vmatpush2.bf16.msra.mxu0 %v1589
    %2040 = vmatprep.subr.bf16.mxu0 0
    %2041 = vmatpush2.bf16.msra.mxu0 %v1588
    %2042 = vmatprep.subr.bf16.mxu0 0
    %2043 = vmatpush2.bf16.msra.mxu0 %v1587
    %2044 = vmatprep.subr.bf16.mxu0 0
    %2045 = vmatpush2.bf16.msra.mxu0 %v1586
    %2046 = vmatprep.subr.bf16.mxu0 0
    %2047 = vmatpush2.bf16.msra.mxu0 %v1585
    %2048 = vmatprep.subr.bf16.mxu0 0
    %2049 = vmatpush2.bf16.msra.mxu0 %v1584
    %2050 = vmatprep.subr.bf16.mxu0 0
    %2051 = vmatpush2.bf16.msra.mxu0 %v1583
    %2052 = vmatprep.subr.bf16.mxu0 0
    %2053 = vmatpush2.bf16.msra.mxu0 %v1582
    %2054 = vmatprep.mubr.bf16.mxu0 %v516
    %2055 = vmatmul.mubr.bf16.gmra.mxu0 %v502
    %v2056 = vpop.f32.mrf.mxu0
    %v2057 = vadd.f32 %v473, %v2056
    %v2058 = vpop.f32.mrf.mxu0
    %v2059 = vpop.f32.mrf.mxu0
    %v2060 = vpop.f32.mrf.mxu0
    %2061 = vdwg.mxu0
    %2062 = vmatprep.subr.bf16.mxu0 0
    %2063 = vmatpush1.bf16.msra.mxu0 %v1597
    %2064 = vmatprep.subr.bf16.mxu0 0
    %2065 = vmatpush1.bf16.msra.mxu0 %v1596
    %2066 = vmatprep.subr.bf16.mxu0 0
    %2067 = vmatpush1.bf16.msra.mxu0 %v1595
    %2068 = vmatprep.subr.bf16.mxu0 0
    %2069 = vmatpush1.bf16.msra.mxu0 %v1594
    %2070 = vmatprep.subr.bf16.mxu0 0
    %2071 = vmatpush1.bf16.msra.mxu0 %v1593
    %2072 = vmatprep.subr.bf16.mxu0 0
    %2073 = vmatpush1.bf16.msra.mxu0 %v1592
    %2074 = vmatprep.subr.bf16.mxu0 0
    %2075 = vmatpush1.bf16.msra.mxu0 %v1591
    %2076 = vmatprep.subr.bf16.mxu0 0
    %2077 = vmatpush1.bf16.msra.mxu0 %v1590
    %2078 = vmatprep.subr.bf16.mxu0 0
    %2079 = vmatpush2.bf16.msra.mxu0 %v1605
    %2080 = vmatprep.subr.bf16.mxu0 0
    %2081 = vmatpush2.bf16.msra.mxu0 %v1604
    %2082 = vmatprep.subr.bf16.mxu0 0
    %2083 = vmatpush2.bf16.msra.mxu0 %v1603
    %2084 = vmatprep.subr.bf16.mxu0 0
    %2085 = vmatpush2.bf16.msra.mxu0 %v1602
    %2086 = vmatprep.subr.bf16.mxu0 0
    %2087 = vmatpush2.bf16.msra.mxu0 %v1601
    %2088 = vmatprep.subr.bf16.mxu0 0
    %2089 = vmatpush2.bf16.msra.mxu0 %v1600
    %2090 = vmatprep.subr.bf16.mxu0 0
    %2091 = vmatpush2.bf16.msra.mxu0 %v1599
    %2092 = vmatprep.subr.bf16.mxu0 0
    %2093 = vmatpush2.bf16.msra.mxu0 %v1598
    %2094 = vmatprep.mubr.bf16.mxu0 %v526
    %2095 = vmatmul.mubr.bf16.gmra.mxu0 %v524
    %v2096 = vpop.f32.mrf.mxu0
    %v2097 = vadd.f32 %v2057, %v2096
    %v2098 = vpop.f32.mrf.mxu0
    %v2099 = vpop.f32.mrf.mxu0
    %v2100 = vpop.f32.mrf.mxu0
    %2101 = vdwg.mxu0
    %2102 = vmatprep.subr.bf16.mxu0 0
    %2103 = vmatpush1.bf16.msra.mxu0 %v1613
    %2104 = vmatprep.subr.bf16.mxu0 0
    %2105 = vmatpush1.bf16.msra.mxu0 %v1612
    %2106 = vmatprep.subr.bf16.mxu0 0
    %2107 = vmatpush1.bf16.msra.mxu0 %v1611
    %2108 = vmatprep.subr.bf16.mxu0 0
    %2109 = vmatpush1.bf16.msra.mxu0 %v1610
    %2110 = vmatprep.subr.bf16.mxu0 0
    %2111 = vmatpush1.bf16.msra.mxu0 %v1609
    %2112 = vmatprep.subr.bf16.mxu0 0
    %2113 = vmatpush1.bf16.msra.mxu0 %v1608
    %2114 = vmatprep.subr.bf16.mxu0 0
    %2115 = vmatpush1.bf16.msra.mxu0 %v1607
    %2116 = vmatprep.subr.bf16.mxu0 0
    %2117 = vmatpush1.bf16.msra.mxu0 %v1606
    %2118 = vmatprep.subr.bf16.mxu0 0
    %2119 = vmatpush2.bf16.msra.mxu0 %v1621
    %2120 = vmatprep.subr.bf16.mxu0 0
    %2121 = vmatpush2.bf16.msra.mxu0 %v1620
    %2122 = vmatprep.subr.bf16.mxu0 0
    %2123 = vmatpush2.bf16.msra.mxu0 %v1619
    %2124 = vmatprep.subr.bf16.mxu0 0
    %2125 = vmatpush2.bf16.msra.mxu0 %v1618
    %2126 = vmatprep.subr.bf16.mxu0 0
    %2127 = vmatpush2.bf16.msra.mxu0 %v1617
    %2128 = vmatprep.subr.bf16.mxu0 0
    %2129 = vmatpush2.bf16.msra.mxu0 %v1616
    %2130 = vmatprep.subr.bf16.mxu0 0
    %2131 = vmatpush2.bf16.msra.mxu0 %v1615
    %2132 = vmatprep.subr.bf16.mxu0 0
    %2133 = vmatpush2.bf16.msra.mxu0 %v1614
    %2134 = vmatprep.mubr.bf16.mxu0 %v523
    %2135 = vmatmul.mubr.bf16.gmra.mxu0 %v509
    %v2136 = vpop.f32.mrf.mxu0
    %v2137 = vadd.f32 %v2097, %v2136
    %v2138 = vpop.f32.mrf.mxu0
    %v2139 = vpop.f32.mrf.mxu0
    %v2140 = vpop.f32.mrf.mxu0
    %2141 = vdwg.mxu0
    %2142 = vmatprep.subr.bf16.mxu0 0
    %2143 = vmatpush1.bf16.msra.mxu0 %v1629
    %2144 = vmatprep.subr.bf16.mxu0 0
    %2145 = vmatpush1.bf16.msra.mxu0 %v1628
    %2146 = vmatprep.subr.bf16.mxu0 0
    %2147 = vmatpush1.bf16.msra.mxu0 %v1627
    %2148 = vmatprep.subr.bf16.mxu0 0
    %2149 = vmatpush1.bf16.msra.mxu0 %v1626
    %2150 = vmatprep.subr.bf16.mxu0 0
    %2151 = vmatpush1.bf16.msra.mxu0 %v1625
    %2152 = vmatprep.subr.bf16.mxu0 0
    %2153 = vmatpush1.bf16.msra.mxu0 %v1624
    %2154 = vmatprep.subr.bf16.mxu0 0
    %2155 = vmatpush1.bf16.msra.mxu0 %v1623
    %2156 = vmatprep.subr.bf16.mxu0 0
    %2157 = vmatpush1.bf16.msra.mxu0 %v1622
    %2158 = vmatprep.subr.bf16.mxu0 0
    %2159 = vmatpush2.bf16.msra.mxu0 %v1637
    %2160 = vmatprep.subr.bf16.mxu0 0
    %2161 = vmatpush2.bf16.msra.mxu0 %v1636
    %2162 = vmatprep.subr.bf16.mxu0 0
    %2163 = vmatpush2.bf16.msra.mxu0 %v1635
    %2164 = vmatprep.subr.bf16.mxu0 0
    %2165 = vmatpush2.bf16.msra.mxu0 %v1634
    %2166 = vmatprep.subr.bf16.mxu0 0
    %2167 = vmatpush2.bf16.msra.mxu0 %v1633
    %2168 = vmatprep.subr.bf16.mxu0 0
    %2169 = vmatpush2.bf16.msra.mxu0 %v1632
    %2170 = vmatprep.subr.bf16.mxu0 0
    %2171 = vmatpush2.bf16.msra.mxu0 %v1631
    %2172 = vmatprep.subr.bf16.mxu0 0
    %2173 = vmatpush2.bf16.msra.mxu0 %v1630
    %2174 = vmatprep.mubr.bf16.mxu0 %v527
    %2175 = vmatmul.mubr.bf16.gmra.mxu0 %v525
    %v2176 = vpop.f32.mrf.mxu0
    %v2177 = vadd.f32 %v2137, %v2176
    %v2178 = vpop.f32.mrf.mxu0
    %v2179 = vpop.f32.mrf.mxu0
    %v2180 = vpop.f32.mrf.mxu0
    %2181 = vdwg.mxu0
    %2182 = vmatprep.subr.bf16.mxu0 0
    %2183 = vmatpush1.bf16.msra.mxu0 %v1645
    %2184 = vmatprep.subr.bf16.mxu0 0
    %2185 = vmatpush1.bf16.msra.mxu0 %v1644
    %2186 = vmatprep.subr.bf16.mxu0 0
    %2187 = vmatpush1.bf16.msra.mxu0 %v1643
    %2188 = vmatprep.subr.bf16.mxu0 0
    %2189 = vmatpush1.bf16.msra.mxu0 %v1642
    %2190 = vmatprep.subr.bf16.mxu0 0
    %2191 = vmatpush1.bf16.msra.mxu0 %v1641
    %2192 = vmatprep.subr.bf16.mxu0 0
    %2193 = vmatpush1.bf16.msra.mxu0 %v1640
    %2194 = vmatprep.subr.bf16.mxu0 0
    %2195 = vmatpush1.bf16.msra.mxu0 %v1639
    %2196 = vmatprep.subr.bf16.mxu0 0
    %2197 = vmatpush1.bf16.msra.mxu0 %v1638
    %2198 = vmatprep.subr.bf16.mxu0 0
    %2199 = vmatpush2.bf16.msra.mxu0 %v1653
    %2200 = vmatprep.subr.bf16.mxu0 0
    %2201 = vmatpush2.bf16.msra.mxu0 %v1652
    %2202 = vmatprep.subr.bf16.mxu0 0
    %2203 = vmatpush2.bf16.msra.mxu0 %v1651
    %2204 = vmatprep.subr.bf16.mxu0 0
    %2205 = vmatpush2.bf16.msra.mxu0 %v1650
    %2206 = vmatprep.subr.bf16.mxu0 0
    %2207 = vmatpush2.bf16.msra.mxu0 %v1649
    %2208 = vmatprep.subr.bf16.mxu0 0
    %2209 = vmatpush2.bf16.msra.mxu0 %v1648
    %2210 = vmatprep.subr.bf16.mxu0 0
    %2211 = vmatpush2.bf16.msra.mxu0 %v1647
    %2212 = vmatprep.subr.bf16.mxu0 0
    %2213 = vmatpush2.bf16.msra.mxu0 %v1646
    %2214 = vmatprep.mubr.bf16.mxu0 %v565
    %2215 = vmatmul.mubr.bf16.gmra.mxu0 %v551
    %v2216 = vpop.f32.mrf.mxu0
    %v2217 = vadd.f32 %v2177, %v2216
    %v2218 = vpop.f32.mrf.mxu0
    %v2219 = vpop.f32.mrf.mxu0
    %v2220 = vpop.f32.mrf.mxu0
    %2221 = vdwg.mxu0
    %2222 = vmatprep.subr.bf16.mxu0 0
    %2223 = vmatpush1.bf16.msra.mxu0 %v1661
    %2224 = vmatprep.subr.bf16.mxu0 0
    %2225 = vmatpush1.bf16.msra.mxu0 %v1660
    %2226 = vmatprep.subr.bf16.mxu0 0
    %2227 = vmatpush1.bf16.msra.mxu0 %v1659
    %2228 = vmatprep.subr.bf16.mxu0 0
    %2229 = vmatpush1.bf16.msra.mxu0 %v1658
    %2230 = vmatprep.subr.bf16.mxu0 0
    %2231 = vmatpush1.bf16.msra.mxu0 %v1657
    %2232 = vmatprep.subr.bf16.mxu0 0
    %2233 = vmatpush1.bf16.msra.mxu0 %v1656
    %2234 = vmatprep.subr.bf16.mxu0 0
    %2235 = vmatpush1.bf16.msra.mxu0 %v1655
    %2236 = vmatprep.subr.bf16.mxu0 0
    %2237 = vmatpush1.bf16.msra.mxu0 %v1654
    %2238 = vmatprep.subr.bf16.mxu0 0
    %2239 = vmatpush2.bf16.msra.mxu0 %v1669
    %2240 = vmatprep.subr.bf16.mxu0 0
    %2241 = vmatpush2.bf16.msra.mxu0 %v1668
    %2242 = vmatprep.subr.bf16.mxu0 0
    %2243 = vmatpush2.bf16.msra.mxu0 %v1667
    %2244 = vmatprep.subr.bf16.mxu0 0
    %2245 = vmatpush2.bf16.msra.mxu0 %v1666
    %2246 = vmatprep.subr.bf16.mxu0 0
    %2247 = vmatpush2.bf16.msra.mxu0 %v1665
    %2248 = vmatprep.subr.bf16.mxu0 0
    %2249 = vmatpush2.bf16.msra.mxu0 %v1664
    %2250 = vmatprep.subr.bf16.mxu0 0
    %2251 = vmatpush2.bf16.msra.mxu0 %v1663
    %2252 = vmatprep.subr.bf16.mxu0 0
    %2253 = vmatpush2.bf16.msra.mxu0 %v1662
    %2254 = vmatprep.mubr.bf16.mxu0 %v575
    %2255 = vmatmul.mubr.bf16.gmra.mxu0 %v573
    %v2256 = vpop.f32.mrf.mxu0
    %v2257 = vadd.f32 %v2217, %v2256
    %v2258 = vpop.f32.mrf.mxu0
    %v2259 = vpop.f32.mrf.mxu0
    %v2260 = vpop.f32.mrf.mxu0
    %2261 = vdwg.mxu0
    %2262 = vmatprep.subr.bf16.mxu0 0
    %2263 = vmatpush1.bf16.msra.mxu0 %v1677
    %2264 = vmatprep.subr.bf16.mxu0 0
    %2265 = vmatpush1.bf16.msra.mxu0 %v1676
    %2266 = vmatprep.subr.bf16.mxu0 0
    %2267 = vmatpush1.bf16.msra.mxu0 %v1675
    %2268 = vmatprep.subr.bf16.mxu0 0
    %2269 = vmatpush1.bf16.msra.mxu0 %v1674
    %2270 = vmatprep.subr.bf16.mxu0 0
    %2271 = vmatpush1.bf16.msra.mxu0 %v1673
    %2272 = vmatprep.subr.bf16.mxu0 0
    %2273 = vmatpush1.bf16.msra.mxu0 %v1672
    %2274 = vmatprep.subr.bf16.mxu0 0
    %2275 = vmatpush1.bf16.msra.mxu0 %v1671
    %2276 = vmatprep.subr.bf16.mxu0 0
    %2277 = vmatpush1.bf16.msra.mxu0 %v1670
    %2278 = vmatprep.subr.bf16.mxu0 0
    %2279 = vmatpush2.bf16.msra.mxu0 %v1685
    %2280 = vmatprep.subr.bf16.mxu0 0
    %2281 = vmatpush2.bf16.msra.mxu0 %v1684
    %2282 = vmatprep.subr.bf16.mxu0 0
    %2283 = vmatpush2.bf16.msra.mxu0 %v1683
    %2284 = vmatprep.subr.bf16.mxu0 0
    %2285 = vmatpush2.bf16.msra.mxu0 %v1682
    %2286 = vmatprep.subr.bf16.mxu0 0
    %2287 = vmatpush2.bf16.msra.mxu0 %v1681
    %2288 = vmatprep.subr.bf16.mxu0 0
    %2289 = vmatpush2.bf16.msra.mxu0 %v1680
    %2290 = vmatprep.subr.bf16.mxu0 0
    %2291 = vmatpush2.bf16.msra.mxu0 %v1679
    %2292 = vmatprep.subr.bf16.mxu0 0
    %2293 = vmatpush2.bf16.msra.mxu0 %v1678
    %2294 = vmatprep.mubr.bf16.mxu0 %v572
    %2295 = vmatmul.mubr.bf16.gmra.mxu0 %v558
    %v2296 = vpop.f32.mrf.mxu0
    %v2297 = vadd.f32 %v2257, %v2296
    %v2298 = vpop.f32.mrf.mxu0
    %v2299 = vpop.f32.mrf.mxu0
    %v2300 = vpop.f32.mrf.mxu0
    %2301 = vdwg.mxu0
    %2302 = vmatprep.subr.bf16.mxu0 0
    %2303 = vmatpush1.bf16.msra.mxu0 %v1693
    %2304 = vmatprep.subr.bf16.mxu0 0
    %2305 = vmatpush1.bf16.msra.mxu0 %v1692
    %2306 = vmatprep.subr.bf16.mxu0 0
    %2307 = vmatpush1.bf16.msra.mxu0 %v1691
    %2308 = vmatprep.subr.bf16.mxu0 0
    %2309 = vmatpush1.bf16.msra.mxu0 %v1690
    %2310 = vmatprep.subr.bf16.mxu0 0
    %2311 = vmatpush1.bf16.msra.mxu0 %v1689
    %2312 = vmatprep.subr.bf16.mxu0 0
    %2313 = vmatpush1.bf16.msra.mxu0 %v1688
    %2314 = vmatprep.subr.bf16.mxu0 0
    %2315 = vmatpush1.bf16.msra.mxu0 %v1687
    %2316 = vmatprep.subr.bf16.mxu0 0
    %2317 = vmatpush1.bf16.msra.mxu0 %v1686
    %2318 = vmatprep.subr.bf16.mxu0 0
    %2319 = vmatpush2.bf16.msra.mxu0 %v1701
    %2320 = vmatprep.subr.bf16.mxu0 0
    %2321 = vmatpush2.bf16.msra.mxu0 %v1700
    %2322 = vmatprep.subr.bf16.mxu0 0
    %2323 = vmatpush2.bf16.msra.mxu0 %v1699
    %2324 = vmatprep.subr.bf16.mxu0 0
    %2325 = vmatpush2.bf16.msra.mxu0 %v1698
    %2326 = vmatprep.subr.bf16.mxu0 0
    %2327 = vmatpush2.bf16.msra.mxu0 %v1697
    %2328 = vmatprep.subr.bf16.mxu0 0
    %2329 = vmatpush2.bf16.msra.mxu0 %v1696
    %2330 = vmatprep.subr.bf16.mxu0 0
    %2331 = vmatpush2.bf16.msra.mxu0 %v1695
    %2332 = vmatprep.subr.bf16.mxu0 0
    %2333 = vmatpush2.bf16.msra.mxu0 %v1694
    %2334 = vmatprep.mubr.bf16.mxu0 %v576
    %2335 = vmatmul.mubr.bf16.gmra.mxu0 %v574
    %v2336 = vpop.f32.mrf.mxu0
    %v2337 = vadd.f32 %v2297, %v2336
    %v2338 = vpop.f32.mrf.mxu0
    %v2339 = vpop.f32.mrf.mxu0
    %v2340 = vpop.f32.mrf.mxu0
    %2341 = vdwg.mxu0
    %2342 = vmatprep.subr.bf16.mxu0 0
    %2343 = vmatpush1.bf16.msra.mxu0 %v1709
    %2344 = vmatprep.subr.bf16.mxu0 0
    %2345 = vmatpush1.bf16.msra.mxu0 %v1708
    %2346 = vmatprep.subr.bf16.mxu0 0
    %2347 = vmatpush1.bf16.msra.mxu0 %v1707
    %2348 = vmatprep.subr.bf16.mxu0 0
    %2349 = vmatpush1.bf16.msra.mxu0 %v1706
    %2350 = vmatprep.subr.bf16.mxu0 0
    %2351 = vmatpush1.bf16.msra.mxu0 %v1705
    %2352 = vmatprep.subr.bf16.mxu0 0
    %2353 = vmatpush1.bf16.msra.mxu0 %v1704
    %2354 = vmatprep.subr.bf16.mxu0 0
    %2355 = vmatpush1.bf16.msra.mxu0 %v1703
    %2356 = vmatprep.subr.bf16.mxu0 0
    %2357 = vmatpush1.bf16.msra.mxu0 %v1702
    %2358 = vmatprep.subr.bf16.mxu0 0
    %2359 = vmatpush2.bf16.msra.mxu0 %v1717
    %2360 = vmatprep.subr.bf16.mxu0 0
    %2361 = vmatpush2.bf16.msra.mxu0 %v1716
    %2362 = vmatprep.subr.bf16.mxu0 0
    %2363 = vmatpush2.bf16.msra.mxu0 %v1715
    %2364 = vmatprep.subr.bf16.mxu0 0
    %2365 = vmatpush2.bf16.msra.mxu0 %v1714
    %2366 = vmatprep.subr.bf16.mxu0 0
    %2367 = vmatpush2.bf16.msra.mxu0 %v1713
    %2368 = vmatprep.subr.bf16.mxu0 0
    %2369 = vmatpush2.bf16.msra.mxu0 %v1712
    %2370 = vmatprep.subr.bf16.mxu0 0
    %2371 = vmatpush2.bf16.msra.mxu0 %v1711
    %2372 = vmatprep.subr.bf16.mxu0 0
    %2373 = vmatpush2.bf16.msra.mxu0 %v1710
    %2374 = vmatprep.mubr.bf16.mxu0 %v614
    %2375 = vmatmul.mubr.bf16.gmra.mxu0 %v600
    %v2376 = vpop.f32.mrf.mxu0
    %v2377 = vadd.f32 %v2337, %v2376
    %v2378 = vpop.f32.mrf.mxu0
    %v2379 = vpop.f32.mrf.mxu0
    %v2380 = vpop.f32.mrf.mxu0
    %2381 = vdwg.mxu0
    %2382 = vmatprep.subr.bf16.mxu0 0
    %2383 = vmatpush1.bf16.msra.mxu0 %v1725
    %2384 = vmatprep.subr.bf16.mxu0 0
    %2385 = vmatpush1.bf16.msra.mxu0 %v1724
    %2386 = vmatprep.subr.bf16.mxu0 0
    %2387 = vmatpush1.bf16.msra.mxu0 %v1723
    %2388 = vmatprep.subr.bf16.mxu0 0
    %2389 = vmatpush1.bf16.msra.mxu0 %v1722
    %2390 = vmatprep.subr.bf16.mxu0 0
    %2391 = vmatpush1.bf16.msra.mxu0 %v1721
    %2392 = vmatprep.subr.bf16.mxu0 0
    %2393 = vmatpush1.bf16.msra.mxu0 %v1720
    %2394 = vmatprep.subr.bf16.mxu0 0
    %2395 = vmatpush1.bf16.msra.mxu0 %v1719
    %2396 = vmatprep.subr.bf16.mxu0 0
    %2397 = vmatpush1.bf16.msra.mxu0 %v1718
    %2398 = vmatprep.subr.bf16.mxu0 0
    %2399 = vmatpush2.bf16.msra.mxu0 %v1733
    %2400 = vmatprep.subr.bf16.mxu0 0
    %2401 = vmatpush2.bf16.msra.mxu0 %v1732
    %2402 = vmatprep.subr.bf16.mxu0 0
    %2403 = vmatpush2.bf16.msra.mxu0 %v1731
    %2404 = vmatprep.subr.bf16.mxu0 0
    %2405 = vmatpush2.bf16.msra.mxu0 %v1730
    %2406 = vmatprep.subr.bf16.mxu0 0
    %2407 = vmatpush2.bf16.msra.mxu0 %v1729
    %2408 = vmatprep.subr.bf16.mxu0 0
    %2409 = vmatpush2.bf16.msra.mxu0 %v1728
    %2410 = vmatprep.subr.bf16.mxu0 0
    %2411 = vmatpush2.bf16.msra.mxu0 %v1727
    %2412 = vmatprep.subr.bf16.mxu0 0
    %2413 = vmatpush2.bf16.msra.mxu0 %v1726
    %2414 = vmatprep.mubr.bf16.mxu0 %v624
    %2415 = vmatmul.mubr.bf16.gmra.mxu0 %v622
    %v2416 = vpop.f32.mrf.mxu0
    %v2417 = vadd.f32 %v2377, %v2416
    %v2418 = vpop.f32.mrf.mxu0
    %v2419 = vpop.f32.mrf.mxu0
    %v2420 = vpop.f32.mrf.mxu0
    %2421 = vdwg.mxu0
    %2422 = vmatprep.subr.bf16.mxu0 0
    %2423 = vmatpush1.bf16.msra.mxu0 %v1741
    %2424 = vmatprep.subr.bf16.mxu0 0
    %2425 = vmatpush1.bf16.msra.mxu0 %v1740
    %2426 = vmatprep.subr.bf16.mxu0 0
    %2427 = vmatpush1.bf16.msra.mxu0 %v1739
    %2428 = vmatprep.subr.bf16.mxu0 0
    %2429 = vmatpush1.bf16.msra.mxu0 %v1738
    %2430 = vmatprep.subr.bf16.mxu0 0
    %2431 = vmatpush1.bf16.msra.mxu0 %v1737
    %2432 = vmatprep.subr.bf16.mxu0 0
    %2433 = vmatpush1.bf16.msra.mxu0 %v1736
    %2434 = vmatprep.subr.bf16.mxu0 0
    %2435 = vmatpush1.bf16.msra.mxu0 %v1735
    %2436 = vmatprep.subr.bf16.mxu0 0
    %2437 = vmatpush1.bf16.msra.mxu0 %v1734
    %2438 = vmatprep.subr.bf16.mxu0 0
    %2439 = vmatpush2.bf16.msra.mxu0 %v1749
    %2440 = vmatprep.subr.bf16.mxu0 0
    %2441 = vmatpush2.bf16.msra.mxu0 %v1748
    %2442 = vmatprep.subr.bf16.mxu0 0
    %2443 = vmatpush2.bf16.msra.mxu0 %v1747
    %2444 = vmatprep.subr.bf16.mxu0 0
    %2445 = vmatpush2.bf16.msra.mxu0 %v1746
    %2446 = vmatprep.subr.bf16.mxu0 0
    %2447 = vmatpush2.bf16.msra.mxu0 %v1745
    %2448 = vmatprep.subr.bf16.mxu0 0
    %2449 = vmatpush2.bf16.msra.mxu0 %v1744
    %2450 = vmatprep.subr.bf16.mxu0 0
    %2451 = vmatpush2.bf16.msra.mxu0 %v1743
    %2452 = vmatprep.subr.bf16.mxu0 0
    %2453 = vmatpush2.bf16.msra.mxu0 %v1742
    %2454 = vmatprep.mubr.bf16.mxu0 %v621
    %2455 = vmatmul.mubr.bf16.gmra.mxu0 %v607
    %v2456 = vpop.f32.mrf.mxu0
    %v2457 = vadd.f32 %v2417, %v2456
    %v2458 = vpop.f32.mrf.mxu0
    %v2459 = vpop.f32.mrf.mxu0
    %v2460 = vpop.f32.mrf.mxu0
    %2461 = vdwg.mxu0
    %2462 = vmatprep.subr.bf16.mxu0 0
    %2463 = vmatpush1.bf16.msra.mxu0 %v1757
    %2464 = vmatprep.subr.bf16.mxu0 0
    %2465 = vmatpush1.bf16.msra.mxu0 %v1756
    %2466 = vmatprep.subr.bf16.mxu0 0
    %2467 = vmatpush1.bf16.msra.mxu0 %v1755
    %2468 = vmatprep.subr.bf16.mxu0 0
    %2469 = vmatpush1.bf16.msra.mxu0 %v1754
    %2470 = vmatprep.subr.bf16.mxu0 0
    %2471 = vmatpush1.bf16.msra.mxu0 %v1753
    %2472 = vmatprep.subr.bf16.mxu0 0
    %2473 = vmatpush1.bf16.msra.mxu0 %v1752
    %2474 = vmatprep.subr.bf16.mxu0 0
    %2475 = vmatpush1.bf16.msra.mxu0 %v1751
    %2476 = vmatprep.subr.bf16.mxu0 0
    %2477 = vmatpush1.bf16.msra.mxu0 %v1750
    %2478 = vmatprep.subr.bf16.mxu0 0
    %2479 = vmatpush2.bf16.msra.mxu0 %v1765
    %2480 = vmatprep.subr.bf16.mxu0 0
    %2481 = vmatpush2.bf16.msra.mxu0 %v1764
    %2482 = vmatprep.subr.bf16.mxu0 0
    %2483 = vmatpush2.bf16.msra.mxu0 %v1763
    %2484 = vmatprep.subr.bf16.mxu0 0
    %2485 = vmatpush2.bf16.msra.mxu0 %v1762
    %2486 = vmatprep.subr.bf16.mxu0 0
    %2487 = vmatpush2.bf16.msra.mxu0 %v1761
    %2488 = vmatprep.subr.bf16.mxu0 0
    %2489 = vmatpush2.bf16.msra.mxu0 %v1760
    %2490 = vmatprep.subr.bf16.mxu0 0
    %2491 = vmatpush2.bf16.msra.mxu0 %v1759
    %2492 = vmatprep.subr.bf16.mxu0 0
    %2493 = vmatpush2.bf16.msra.mxu0 %v1758
    %2494 = vmatprep.mubr.bf16.mxu0 %v625
    %2495 = vmatmul.mubr.bf16.gmra.mxu0 %v623
    %v2496 = vpop.f32.mrf.mxu0
    %v2497 = vadd.f32 %v2457, %v2496
    %v2498 = vpop.f32.mrf.mxu0
    %v2499 = vpop.f32.mrf.mxu0
    %v2500 = vpop.f32.mrf.mxu0
    %2501 = vdwg.mxu0
    %2502 = vmatprep.subr.bf16.mxu0 0
    %2503 = vmatpush1.bf16.msra.mxu0 %v1773
    %2504 = vmatprep.subr.bf16.mxu0 0
    %2505 = vmatpush1.bf16.msra.mxu0 %v1772
    %2506 = vmatprep.subr.bf16.mxu0 0
    %2507 = vmatpush1.bf16.msra.mxu0 %v1771
    %2508 = vmatprep.subr.bf16.mxu0 0
    %2509 = vmatpush1.bf16.msra.mxu0 %v1770
    %2510 = vmatprep.subr.bf16.mxu0 0
    %2511 = vmatpush1.bf16.msra.mxu0 %v1769
    %2512 = vmatprep.subr.bf16.mxu0 0
    %2513 = vmatpush1.bf16.msra.mxu0 %v1768
    %2514 = vmatprep.subr.bf16.mxu0 0
    %2515 = vmatpush1.bf16.msra.mxu0 %v1767
    %2516 = vmatprep.subr.bf16.mxu0 0
    %2517 = vmatpush1.bf16.msra.mxu0 %v1766
    %2518 = vmatprep.subr.bf16.mxu0 0
    %2519 = vmatpush2.bf16.msra.mxu0 %v1781
    %2520 = vmatprep.subr.bf16.mxu0 0
    %2521 = vmatpush2.bf16.msra.mxu0 %v1780
    %2522 = vmatprep.subr.bf16.mxu0 0
    %2523 = vmatpush2.bf16.msra.mxu0 %v1779
    %2524 = vmatprep.subr.bf16.mxu0 0
    %2525 = vmatpush2.bf16.msra.mxu0 %v1778
    %2526 = vmatprep.subr.bf16.mxu0 0
    %2527 = vmatpush2.bf16.msra.mxu0 %v1777
    %2528 = vmatprep.subr.bf16.mxu0 0
    %2529 = vmatpush2.bf16.msra.mxu0 %v1776
    %2530 = vmatprep.subr.bf16.mxu0 0
    %2531 = vmatpush2.bf16.msra.mxu0 %v1775
    %2532 = vmatprep.subr.bf16.mxu0 0
    %2533 = vmatpush2.bf16.msra.mxu0 %v1774
    %2534 = vmatprep.mubr.bf16.mxu0 %v647
    %2535 = vmatmul.mubr.bf16.gmra.mxu0 %v640
    %v2536 = vpop.f32.mrf.mxu0
    %v2537 = vadd.f32 %v2497, %v2536
    %v2538 = vpop.f32.mrf.mxu0
    %v2539 = vpop.f32.mrf.mxu0
    %v2540 = vpop.f32.mrf.mxu0
    %2541 = vdwg.mxu0
    %2542 = vmatprep.subr.bf16.mxu0 0
    %2543 = vmatpush1.bf16.msra.mxu0 %v1789
    %2544 = vmatprep.subr.bf16.mxu0 0
    %2545 = vmatpush1.bf16.msra.mxu0 %v1788
    %2546 = vmatprep.subr.bf16.mxu0 0
    %2547 = vmatpush1.bf16.msra.mxu0 %v1787
    %2548 = vmatprep.subr.bf16.mxu0 0
    %2549 = vmatpush1.bf16.msra.mxu0 %v1786
    %2550 = vmatprep.subr.bf16.mxu0 0
    %2551 = vmatpush1.bf16.msra.mxu0 %v1785
    %2552 = vmatprep.subr.bf16.mxu0 0
    %2553 = vmatpush1.bf16.msra.mxu0 %v1784
    %2554 = vmatprep.subr.bf16.mxu0 0
    %2555 = vmatpush1.bf16.msra.mxu0 %v1783
    %2556 = vmatprep.subr.bf16.mxu0 0
    %2557 = vmatpush1.bf16.msra.mxu0 %v1782
    %2558 = vmatprep.subr.bf16.mxu0 0
    %2559 = vmatpush2.bf16.msra.mxu0 %v1797
    %2560 = vmatprep.subr.bf16.mxu0 0
    %2561 = vmatpush2.bf16.msra.mxu0 %v1796
    %2562 = vmatprep.subr.bf16.mxu0 0
    %2563 = vmatpush2.bf16.msra.mxu0 %v1795
    %2564 = vmatprep.subr.bf16.mxu0 0
    %2565 = vmatpush2.bf16.msra.mxu0 %v1794
    %2566 = vmatprep.subr.bf16.mxu0 0
    %2567 = vmatpush2.bf16.msra.mxu0 %v1793
    %2568 = vmatprep.subr.bf16.mxu0 0
    %2569 = vmatpush2.bf16.msra.mxu0 %v1792
    %2570 = vmatprep.subr.bf16.mxu0 0
    %2571 = vmatpush2.bf16.msra.mxu0 %v1791
    %2572 = vmatprep.subr.bf16.mxu0 0
    %2573 = vmatpush2.bf16.msra.mxu0 %v1790
    %2574 = vmatprep.mubr.bf16.mxu0 %v649
    %2575 = vmatmul.mubr.bf16.gmra.mxu0 %v648
    %v2576 = vpop.f32.mrf.mxu0
    %v2577 = vadd.f32 %v2537, %v2576
    %v2578 = vpop.f32.mrf.mxu0
    %v2579 = vpop.f32.mrf.mxu0
    %v2580 = vpop.f32.mrf.mxu0
    %2581 = vdwg.mxu0
    %2582 = vst [vmem:[#allocation2] sm:$0x3] %v2577
    // Predicated region
    $region14: #{resnet_visual_encoder.3} parent=1 // pred_check
      _
    $region15: #{resnet_visual_encoder.3} parent=1 // pred_check_branch
      %2584 = sbr.rel (0) target = $region17
    $region16: #{resnet_visual_encoder.3} parent=1 // pred_region
      %s2586 = ssub.s32 32, 32
      %2587 = vsyncadd [#allocation3], %s2586
      %s2589 = sshll.u32 [#allocation2], 4
      %s2590 = int_to_ptr.vmem [resolvable:$true] %s2589
      %2592 = dma.vmem_to_hbm [thread:$0]  %s2590, 32, %s3, [#allocation3]
    $region17: #{resnet_visual_encoder.3} parent=1 // pred_fallthru
      _
    // Predicated region
    $region18: #{resnet_visual_encoder.3} parent=1 // pred_check
      _
    $region19: #{resnet_visual_encoder.3} parent=1 // pred_check_branch
      %2594 = sbr.rel (0) target = $region21
    $region20: #{resnet_visual_encoder.3} parent=1 // pred_region
      %2595 = dma.done [#allocation3], 32
    $region21: #{resnet_visual_encoder.3} parent=1 // pred_fallthru
      _
    %2596 = vsyncpa [#allocation3], 1

</llo_original>
